<compile_context>
chip_gen: v6e
topology: v6e:2x2x1
jax: 0.10.0
libtpu: 0.0.40
codegen_flags: <defaults>
</compile_context>

<pallas_src>
import math
from functools import partial

import numpy as np
import jax
import jax.numpy as jnp
from jax import lax
from jax.experimental import pallas as pl
from jax.experimental.pallas import tpu as pltpu


# ----------------------------- configuration --------------------------------
IMG = 16
PATCH = 4
IN_CHANS = 3
EMBED_DIM = 32
DEPTH = 2
NUM_HEADS = 4
MLP_RATIO = 4.0
INIT_VALUES = 0.1
HEAD_DIM = EMBED_DIM // NUM_HEADS
SCALE = HEAD_DIM ** (-0.5)
PATCH_SHAPE = (IMG // PATCH, IMG // PATCH)      # (4, 4)
NUM_PATCHES = PATCH_SHAPE[0] * PATCH_SHAPE[1]   # 16
SEQ = NUM_PATCHES + 1                           # 17
MLP_HIDDEN = int(EMBED_DIM * MLP_RATIO)         # 128
PATCH_DIM = IN_CHANS * PATCH * PATCH            # 48
LN_EPS = 1e-6
BATCH = 2


# ----------------------- relative position index buffer ----------------------

def make_rel_pos_index(window_size):
    """Reproduces the torch relative_position_index buffer construction."""
    wh, ww = window_size
    coords = np.stack(np.meshgrid(np.arange(wh), np.arange(ww), indexing="ij"))
    coords_flatten = coords.reshape(2, -1)                          # (2, wh*ww)
    rel = coords_flatten[:, :, None] - coords_flatten[:, None, :]   # (2, P, P)
    rel = rel.transpose(1, 2, 0).copy()                             # (P, P, 2)
    rel[:, :, 0] += wh - 1
    rel[:, :, 1] += ww - 1
    rel[:, :, 0] *= 2 * ww - 1
    num_rel = (2 * wh - 1) * (2 * ww - 1) + 3
    idx = np.zeros((wh * ww + 1, wh * ww + 1), dtype=np.int32)
    idx[1:, 1:] = rel.sum(-1)
    idx[0, 0:] = num_rel - 3
    idx[0:, 0] = num_rel - 2
    idx[0, 0] = num_rel - 1
    return idx, num_rel


REL_POS_INDEX, NUM_REL_DIST = make_rel_pos_index(PATCH_SHAPE)


# ------------------------------ fused trunk kernel ---------------------------

def _beit_trunk_kernel(patches_ref, patch_w_ref, prep_ref,
                       ln1_g_ref, ln1_b_ref, qkv_w_ref, qkv_b_ref, rel_bias_ref,
                       proj_w_ref, proj_b_ref, gamma1_ref,
                       ln2_g_ref, ln2_b_ref, fc1_w_ref, fc1_b_ref,
                       fc2_w_ref, fc2_b_ref, gamma2_ref,
                       x_ref, qkv_scr, ctx_scr, *, batch):
    """One grid step == one transformer block; x_ref stays VMEM-resident."""

    # --- step 0 only: patch embedding.  CLS-token rows are zero patch rows, and
    #     cls_token + abs pos embedding + patch bias are pre-folded into `prep`.
    @pl.when(pl.program_id(0) == 0)
    def _():
        x_ref[...] = (
            jnp.dot(patches_ref[...], patch_w_ref[...],
                    preferred_element_type=jnp.float32) + prep_ref[...])

    def layer_norm(z, g_ref, b_ref):
        mu = jnp.mean(z, axis=-1, keepdims=True)
        var = jnp.mean(jnp.square(z - mu), axis=-1, keepdims=True)
        return (z - mu) * lax.rsqrt(var + LN_EPS) * g_ref[0] + b_ref[0]

    x = x_ref[...]                                                  # [B*N, D]

    # ----------------------------- attention branch --------------------------
    h = layer_norm(x, ln1_g_ref, ln1_b_ref)
    qkv_scr[...] = (jnp.dot(h, qkv_w_ref[0],
                            preferred_element_type=jnp.float32) + qkv_b_ref[0])

    # Statically unrolled (batch, head) loop; all slices stay in VMEM and the
    # per-head outputs are packed into a lane-dense [B*N, D] context slab.
    for b in range(batch):
        rows = slice(b * SEQ, (b + 1) * SEQ)
        for hh in range(NUM_HEADS):
            c0 = hh * HEAD_DIM
            q = qkv_scr[rows, c0:c0 + HEAD_DIM] * SCALE
            k = qkv_scr[rows, EMBED_DIM + c0:EMBED_DIM + c0 + HEAD_DIM]
            v = qkv_scr[rows, 2 * EMBED_DIM + c0:2 * EMBED_DIM + c0 + HEAD_DIM]
            # q @ k^T via dot_general (contract last axes, no explicit transpose)
            s = lax.dot_general(q, k, (((1,), (1,)), ((), ())),
                                preferred_element_type=jnp.float32)
            s = s + rel_bias_ref[0, hh]
            m = jnp.max(s, axis=-1, keepdims=True)
            p = jnp.exp(s - m)
            p = p * pl.reciprocal(jnp.sum(p, axis=-1, keepdims=True), approx=True)
            ctx_scr[rows, c0:c0 + HEAD_DIM] = jnp.dot(
                p, v, preferred_element_type=jnp.float32)

    attn_out = (jnp.dot(ctx_scr[...], proj_w_ref[0],
                        preferred_element_type=jnp.float32) + proj_b_ref[0])
    x = x + gamma1_ref[0] * attn_out

    # ------------------------------- MLP branch ------------------------------
    h = layer_norm(x, ln2_g_ref, ln2_b_ref)
    ff = jnp.dot(h, fc1_w_ref[0], preferred_element_type=jnp.float32) + fc1_b_ref[0]
    # exact GELU (erf form) to match torch.nn.GELU default
    ff = 0.5 * ff * (1.0 + lax.erf(ff * (1.0 / np.sqrt(2.0))))
    ff = jnp.dot(ff, fc2_w_ref[0], preferred_element_type=jnp.float32) + fc2_b_ref[0]
    x_ref[...] = x + gamma2_ref[0] * ff


# ------------------------------- parameters ----------------------------------

def init_params(key):
    keys = iter(jax.random.split(key, 4 + DEPTH * 8))

    def tn(k, shape, std=0.02):
        return (std * jax.random.truncated_normal(k, -2.0, 2.0, shape)).astype(jnp.float32)

    params = {}
    # PatchEmbed conv: weight [D, C, ph, pw] -> matmul weight [C*ph*pw, D]
    conv_w = tn(next(keys), (EMBED_DIM, IN_CHANS, PATCH, PATCH))
    params["patch_w"] = conv_w.reshape(EMBED_DIM, -1).T
    params["patch_b"] = tn(next(keys), (EMBED_DIM,))
    params["cls_token"] = tn(next(keys), (1, 1, EMBED_DIM))
    params["pos_embed"] = tn(next(keys), (1, SEQ, EMBED_DIM))

    rel_index = jnp.asarray(REL_POS_INDEX.reshape(-1), jnp.int32)

    blocks = []
    for layer_id in range(1, DEPTH + 1):
        p = {}
        p["ln1_g"] = jnp.ones((1, EMBED_DIM), jnp.float32)
        p["ln1_b"] = jnp.zeros((1, EMBED_DIM), jnp.float32)
        p["ln2_g"] = jnp.ones((1, EMBED_DIM), jnp.float32)
        p["ln2_b"] = jnp.zeros((1, EMBED_DIM), jnp.float32)
        # qkv: Linear(D, 3D, bias=False); bias built as cat(q_bias, zeros, v_bias)
        p["qkv_w"] = tn(next(keys), (EMBED_DIM, 3 * EMBED_DIM))
        q_bias = tn(next(keys), (EMBED_DIM,))
        v_bias = tn(next(keys), (EMBED_DIM,))
        p["qkv_b"] = jnp.concatenate(
            [q_bias, jnp.zeros((EMBED_DIM,), jnp.float32), v_bias]).reshape(1, -1)
        # attn output proj (rescaled by fix_init_weight)
        p["proj_w"] = tn(next(keys), (EMBED_DIM, EMBED_DIM)) / math.sqrt(2.0 * layer_id)
        p["proj_b"] = jnp.zeros((1, EMBED_DIM), jnp.float32)
        # MLP
        p["fc1_w"] = tn(next(keys), (EMBED_DIM, MLP_HIDDEN))
        p["fc1_b"] = jnp.zeros((1, MLP_HIDDEN), jnp.float32)
        p["fc2_w"] = tn(next(keys), (MLP_HIDDEN, EMBED_DIM)) / math.sqrt(2.0 * layer_id)
        p["fc2_b"] = jnp.zeros((1, EMBED_DIM), jnp.float32)
        # per-block relative position bias: gather once at init (index is constant)
        rel_table = tn(next(keys), (NUM_REL_DIST, NUM_HEADS))
        p["rel_bias"] = jnp.take(rel_table, rel_index, axis=0).reshape(
            SEQ, SEQ, NUM_HEADS).transpose(2, 0, 1)                 # [H, N, N]
        # layer-scale
        p["gamma_1"] = INIT_VALUES * jnp.ones((1, EMBED_DIM), jnp.float32)
        p["gamma_2"] = INIT_VALUES * jnp.ones((1, EMBED_DIM), jnp.float32)
        blocks.append(p)

    # stack every per-block tensor along a leading layer axis for the fused kernel
    params["stacked"] = {k: jnp.stack([blk[k] for blk in blocks], axis=0)
                         for k in blocks[0]}
    return params


# --------------------------------- forward -----------------------------------

def beit_forward(params, x):
    """x: [B, 3, IMG, IMG] (NCHW). Returns [1, B, EMBED_DIM] (CLS, unsqueezed)."""
    B, C, H, W = x.shape
    Hp, Wp = H // PATCH, W // PATCH
    BN = B * SEQ

    # ---- JAX glue: layout plumbing only (no compute) ----
    # Per-patch pixel vectors in (c, ph, pw) order, with a zero row in front of
    # each image's patches so row b*SEQ lines up with the CLS token.
    patches = x.reshape(B, C, Hp, PATCH, Wp, PATCH)
    patches = patches.transpose(0, 2, 4, 1, 3, 5).reshape(B, Hp * Wp, PATCH_DIM)
    patches = jnp.concatenate(
        [jnp.zeros((B, 1, PATCH_DIM), jnp.float32), patches], axis=1)
    patches = patches.reshape(BN, PATCH_DIM)

    # Additive prep slab: row b*SEQ = cls + pos[0]; patch rows = pos + patch bias.
    pos = params["pos_embed"][0]                                    # [SEQ, D]
    cls_row = params["cls_token"][0] + pos[:1]                      # [1, D]
    patch_rows = pos[1:] + params["patch_b"][None, :]               # [NP, D]
    prep = jnp.tile(jnp.concatenate([cls_row, patch_rows], axis=0), (B, 1))

    st = params["stacked"]

    def const_spec(shape):
        return pl.BlockSpec(shape, lambda l: (0,) * len(shape))

    def layer_spec(shape):
        if len(shape) == 2:
            return pl.BlockSpec((1,) + shape, lambda l: (l, 0, 0))
        return pl.BlockSpec((1,) + shape, lambda l: (l, 0, 0, 0))

    in_specs = [
        const_spec((BN, PATCH_DIM)),                 # patches
        const_spec((PATCH_DIM, EMBED_DIM)),          # patch_w
        const_spec((BN, EMBED_DIM)),                 # prep (cls + pos + patch bias)
        layer_spec((1, EMBED_DIM)),                  # ln1_g
        layer_spec((1, EMBED_DIM)),                  # ln1_b
        layer_spec((EMBED_DIM, 3 * EMBED_DIM)),      # qkv_w
        layer_spec((1, 3 * EMBED_DIM)),              # qkv_b
        layer_spec((NUM_HEADS, SEQ, SEQ)),           # rel_bias
        layer_spec((EMBED_DIM, EMBED_DIM)),          # proj_w
        layer_spec((1, EMBED_DIM)),                  # proj_b
        layer_spec((1, EMBED_DIM)),                  # gamma_1
        layer_spec((1, EMBED_DIM)),                  # ln2_g
        layer_spec((1, EMBED_DIM)),                  # ln2_b
        layer_spec((EMBED_DIM, MLP_HIDDEN)),         # fc1_w
        layer_spec((1, MLP_HIDDEN)),                 # fc1_b
        layer_spec((MLP_HIDDEN, EMBED_DIM)),         # fc2_w
        layer_spec((1, EMBED_DIM)),                  # fc2_b
        layer_spec((1, EMBED_DIM)),                  # gamma_2
    ]

    out = pl.pallas_call(
        partial(_beit_trunk_kernel, batch=B),
        out_shape=jax.ShapeDtypeStruct((BN, EMBED_DIM), jnp.float32),
        grid=(DEPTH,),
        in_specs=in_specs,
        # same output block for every layer -> VMEM-resident accumulator
        out_specs=pl.BlockSpec((BN, EMBED_DIM), lambda l: (0, 0)),
        scratch_shapes=[
            pltpu.VMEM((BN, 3 * EMBED_DIM), jnp.float32),   # qkv
            pltpu.VMEM((BN, EMBED_DIM), jnp.float32),       # attention context
        ],
        compiler_params=pltpu.CompilerParams(
            dimension_semantics=("arbitrary",)),            # depth loop is sequential
    )(patches, params["patch_w"], prep,
      st["ln1_g"], st["ln1_b"], st["qkv_w"], st["qkv_b"], st["rel_bias"],
      st["proj_w"], st["proj_b"], st["gamma_1"],
      st["ln2_g"], st["ln2_b"], st["fc1_w"], st["fc1_b"],
      st["fc2_w"], st["fc2_b"], st["gamma_2"])

    xs = out.reshape(B, SEQ, EMBED_DIM)
    # use_mean_pooling=True -> self.norm is Identity; forward_features returns x[:, 0],
    # then forward() unsqueezes dim 0.
    return xs[:, 0][None]                                           # [1, B, D]


# ------------------------------------ main -----------------------------------

if __name__ == "__main__":
    key = jax.random.PRNGKey(0)
    kp, kx = jax.random.split(key)
    params = init_params(kp)
    x = jax.random.normal(kx, (BATCH, IN_CHANS, IMG, IMG), dtype=jnp.float32)

    out = jax.jit(beit_forward)(params, x)
    out = jax.block_until_ready(out)
    assert out.shape == (1, BATCH, EMBED_DIM), out.shape
    assert jnp.all(jnp.isfinite(out))
    print("KERNEL_OK")
</pallas_src>

<mosaic_0001>
module attributes {stable_mosaic.version = 11 : i64} {
  func.func @_beit_trunk_kernel(%arg0: i32, %arg1: memref<34x48xf32, #tpu.memory_space<vmem>>, %arg2: memref<48x32xf32, #tpu.memory_space<vmem>>, %arg3: memref<34x32xf32, #tpu.memory_space<vmem>>, %arg4: memref<1x1x32xf32, #tpu.memory_space<vmem>>, %arg5: memref<1x1x32xf32, #tpu.memory_space<vmem>>, %arg6: memref<1x32x96xf32, #tpu.memory_space<vmem>>, %arg7: memref<1x1x96xf32, #tpu.memory_space<vmem>>, %arg8: memref<1x4x17x17xf32, #tpu.memory_space<vmem>>, %arg9: memref<1x32x32xf32, #tpu.memory_space<vmem>>, %arg10: memref<1x1x32xf32, #tpu.memory_space<vmem>>, %arg11: memref<1x1x32xf32, #tpu.memory_space<vmem>>, %arg12: memref<1x1x32xf32, #tpu.memory_space<vmem>>, %arg13: memref<1x1x32xf32, #tpu.memory_space<vmem>>, %arg14: memref<1x32x128xf32, #tpu.memory_space<vmem>>, %arg15: memref<1x1x128xf32, #tpu.memory_space<vmem>>, %arg16: memref<1x128x32xf32, #tpu.memory_space<vmem>>, %arg17: memref<1x1x32xf32, #tpu.memory_space<vmem>>, %arg18: memref<1x1x32xf32, #tpu.memory_space<vmem>>, %arg19: memref<34x32xf32, #tpu.memory_space<vmem>>, %arg20: memref<34x96xf32, #tpu.memory_space<vmem>>, %arg21: memref<34x32xf32, #tpu.memory_space<vmem>>) attributes {dimension_semantics = [#tpu.dimension_semantics<arbitrary>], iteration_bounds = array<i64: 2>, scalar_prefetch = 0 : i64, scratch_operands = 2 : i64, tpu.core_type = #tpu.core_type<tc>, window_params = [{pipeline_mode = #tpu.pipeline_mode<synchronous>, transform_indices = @transform_0, window_bounds = array<i64: 34, 48>}, {pipeline_mode = #tpu.pipeline_mode<synchronous>, transform_indices = @transform_1, window_bounds = array<i64: 48, 32>}, {pipeline_mode = #tpu.pipeline_mode<synchronous>, transform_indices = @transform_2, window_bounds = array<i64: 34, 32>}, {transform_indices = @transform_3, window_bounds = array<i64: 1, 1, 32>}, {transform_indices = @transform_4, window_bounds = array<i64: 1, 1, 32>}, {transform_indices = @transform_5, window_bounds = array<i64: 1, 32, 96>}, {transform_indices = @transform_6, window_bounds = array<i64: 1, 1, 96>}, {transform_indices = @transform_7, window_bounds = array<i64: 1, 4, 17, 17>}, {transform_indices = @transform_8, window_bounds = array<i64: 1, 32, 32>}, {transform_indices = @transform_9, window_bounds = array<i64: 1, 1, 32>}, {transform_indices = @transform_10, window_bounds = array<i64: 1, 1, 32>}, {transform_indices = @transform_11, window_bounds = array<i64: 1, 1, 32>}, {transform_indices = @transform_12, window_bounds = array<i64: 1, 1, 32>}, {transform_indices = @transform_13, window_bounds = array<i64: 1, 32, 128>}, {transform_indices = @transform_14, window_bounds = array<i64: 1, 1, 128>}, {transform_indices = @transform_15, window_bounds = array<i64: 1, 128, 32>}, {transform_indices = @transform_16, window_bounds = array<i64: 1, 1, 32>}, {transform_indices = @transform_17, window_bounds = array<i64: 1, 1, 32>}, {pipeline_mode = #tpu.pipeline_mode<synchronous>, transform_indices = @transform_18, window_bounds = array<i64: 34, 32>}]} {
    %c0_i32 = arith.constant 0 : i32
    %0 = arith.cmpi eq, %arg0, %c0_i32 : i32
    %1 = arith.extui %0 : i1 to i32
    %c0_i32_0 = arith.constant 0 : i32
    %2 = arith.cmpi ne, %1, %c0_i32_0 : i32
    scf.if %2 {
      %c0_187 = arith.constant 0 : index
      %c0_188 = arith.constant 0 : index
      %273 = vector.load %arg1[%c0_187, %c0_188] : memref<34x48xf32, #tpu.memory_space<vmem>>, vector<34x48xf32>
      %c0_189 = arith.constant 0 : index
      %c0_190 = arith.constant 0 : index
      %274 = vector.load %arg2[%c0_189, %c0_190] : memref<48x32xf32, #tpu.memory_space<vmem>>, vector<48x32xf32>
      %cst_191 = arith.constant dense<0.000000e+00> : vector<34x32xf32>
      %275 = tpu.matmul %273, %274, %cst_191 {dimension_numbers = #tpu.dot_dimension_numbers<[1], [0], [0], [1], [0, 0, 1, 1], [], []>} : vector<34x48xf32>, vector<48x32xf32>, vector<34x32xf32> -> vector<34x32xf32>
      %c0_192 = arith.constant 0 : index
      %c0_193 = arith.constant 0 : index
      %276 = vector.load %arg3[%c0_192, %c0_193] : memref<34x32xf32, #tpu.memory_space<vmem>>, vector<34x32xf32>
      %277 = arith.addf %275, %276 : vector<34x32xf32>
      %c0_194 = arith.constant 0 : index
      %c0_195 = arith.constant 0 : index
      %278 = vector.load %arg19[%c0_194, %c0_195] : memref<34x32xf32, #tpu.memory_space<vmem>>, vector<34x32xf32>
      tpu.vector_store %arg19[%c0_194, %c0_195], %277 {strides = array<i32>} : memref<34x32xf32, #tpu.memory_space<vmem>>, vector<34x32xf32>,
    } else {
    }
    %c0 = arith.constant 0 : index
    %c0_1 = arith.constant 0 : index
    %3 = vector.load %arg19[%c0, %c0_1] : memref<34x32xf32, #tpu.memory_space<vmem>>, vector<34x32xf32>
    %cst = arith.constant dense<0.000000e+00> : vector<34xf32>
    %4 = vector.multi_reduction <add>, %3, %cst [1] : vector<34x32xf32> to vector<34xf32>
    %5 = vector.shape_cast %4 : vector<34xf32> to vector<34x1xf32>
    %cst_2 = arith.constant 3.200000e+01 : f32
    %6 = vector.broadcast %cst_2 : f32 to vector<34x1xf32>
    %7 = arith.divf %5, %6 : vector<34x1xf32>
    %8 = vector.broadcast %7 : vector<34x1xf32> to vector<34x32xf32>
    %9 = arith.subf %3, %8 : vector<34x32xf32>
    %10 = arith.mulf %9, %9 : vector<34x32xf32>
    %cst_3 = arith.constant dense<0.000000e+00> : vector<34xf32>
    %11 = vector.multi_reduction <add>, %10, %cst_3 [1] : vector<34x32xf32> to vector<34xf32>
    %12 = vector.shape_cast %11 : vector<34xf32> to vector<34x1xf32>
    %cst_4 = arith.constant 3.200000e+01 : f32
    %13 = vector.broadcast %cst_4 : f32 to vector<34x1xf32>
    %14 = arith.divf %12, %13 : vector<34x1xf32>
    %15 = vector.broadcast %7 : vector<34x1xf32> to vector<34x32xf32>
    %16 = arith.subf %3, %15 : vector<34x32xf32>
    %cst_5 = arith.constant 9.99999997E-7 : f32
    %17 = vector.broadcast %cst_5 : f32 to vector<34x1xf32>
    %18 = arith.addf %14, %17 : vector<34x1xf32>
    %19 = math.rsqrt %18 : vector<34x1xf32>
    %20 = vector.broadcast %19 : vector<34x1xf32> to vector<34x32xf32>
    %21 = arith.mulf %16, %20 : vector<34x32xf32>
    %c0_6 = arith.constant 0 : index
    %c0_7 = arith.constant 0 : index
    %c0_8 = arith.constant 0 : index
    %22 = vector.load %arg4[%c0_6, %c0_7, %c0_8] : memref<1x1x32xf32, #tpu.memory_space<vmem>>, vector<1x1x32xf32>
    %23 = vector.shape_cast %22 : vector<1x1x32xf32> to vector<1x32xf32>
    %24 = vector.broadcast %23 : vector<1x32xf32> to vector<34x32xf32>
    %25 = arith.mulf %21, %24 : vector<34x32xf32>
    %c0_9 = arith.constant 0 : index
    %c0_10 = arith.constant 0 : index
    %c0_11 = arith.constant 0 : index
    %26 = vector.load %arg5[%c0_9, %c0_10, %c0_11] : memref<1x1x32xf32, #tpu.memory_space<vmem>>, vector<1x1x32xf32>
    %27 = vector.shape_cast %26 : vector<1x1x32xf32> to vector<1x32xf32>
    %28 = vector.broadcast %27 : vector<1x32xf32> to vector<34x32xf32>
    %29 = arith.addf %25, %28 : vector<34x32xf32>
    %c0_12 = arith.constant 0 : index
    %c0_13 = arith.constant 0 : index
    %c0_14 = arith.constant 0 : index
    %30 = vector.load %arg6[%c0_12, %c0_13, %c0_14] : memref<1x32x96xf32, #tpu.memory_space<vmem>>, vector<1x32x96xf32>
    %31 = vector.shape_cast %30 : vector<1x32x96xf32> to vector<32x96xf32>
    %cst_15 = arith.constant dense<0.000000e+00> : vector<34x96xf32>
    %32 = tpu.matmul %29, %31, %cst_15 {dimension_numbers = #tpu.dot_dimension_numbers<[1], [0], [0], [1], [0, 0, 1, 1], [], []>} : vector<34x32xf32>, vector<32x96xf32>, vector<34x96xf32> -> vector<34x96xf32>
    %c0_16 = arith.constant 0 : index
    %c0_17 = arith.constant 0 : index
    %c0_18 = arith.constant 0 : index
    %33 = vector.load %arg7[%c0_16, %c0_17, %c0_18] : memref<1x1x96xf32, #tpu.memory_space<vmem>>, vector<1x1x96xf32>
    %34 = vector.shape_cast %33 : vector<1x1x96xf32> to vector<1x96xf32>
    %35 = vector.broadcast %34 : vector<1x96xf32> to vector<34x96xf32>
    %36 = arith.addf %32, %35 : vector<34x96xf32>
    %c0_19 = arith.constant 0 : index
    %c0_20 = arith.constant 0 : index
    %37 = vector.load %arg20[%c0_19, %c0_20] : memref<34x96xf32, #tpu.memory_space<vmem>>, vector<34x96xf32>
    tpu.vector_store %arg20[%c0_19, %c0_20], %36 {strides = array<i32>} : memref<34x96xf32, #tpu.memory_space<vmem>>, vector<34x96xf32>,
    %c0_21 = arith.constant 0 : index
    %c0_22 = arith.constant 0 : index
    %38 = vector.load %arg20[%c0_21, %c0_22] : memref<34x96xf32, #tpu.memory_space<vmem>>, vector<17x8xf32>
    %cst_23 = arith.constant 0.353553385 : f32
    %39 = vector.broadcast %cst_23 : f32 to vector<17x8xf32>
    %40 = arith.mulf %38, %39 : vector<17x8xf32>
    %c0_24 = arith.constant 0 : index
    %c32 = arith.constant 32 : index
    %41 = vector.load %arg20[%c0_24, %c32] : memref<34x96xf32, #tpu.memory_space<vmem>>, vector<17x8xf32>
    %c0_25 = arith.constant 0 : index
    %c64 = arith.constant 64 : index
    %42 = vector.load %arg20[%c0_25, %c64] : memref<34x96xf32, #tpu.memory_space<vmem>>, vector<17x8xf32>
    %cst_26 = arith.constant dense<0.000000e+00> : vector<17x17xf32>
    %43 = tpu.matmul %40, %41, %cst_26 {dimension_numbers = #tpu.dot_dimension_numbers<[1], [1], [0], [0], [0, 0, 1, 0], [], []>} : vector<17x8xf32>, vector<17x8xf32>, vector<17x17xf32> -> vector<17x17xf32>
    %c0_27 = arith.constant 0 : index
    %c0_28 = arith.constant 0 : index
    %c0_29 = arith.constant 0 : index
    %c0_30 = arith.constant 0 : index
    %44 = vector.load %arg8[%c0_27, %c0_28, %c0_29, %c0_30] : memref<1x4x17x17xf32, #tpu.memory_space<vmem>>, vector<1x1x17x17xf32>
    %45 = vector.shape_cast %44 : vector<1x1x17x17xf32> to vector<17x17xf32>
    %46 = arith.addf %43, %45 : vector<17x17xf32>
    %cst_31 = arith.constant dense<0xFF800000> : vector<17xf32>
    %47 = vector.multi_reduction <maximumf>, %46, %cst_31 [1] : vector<17x17xf32> to vector<17xf32>
    %48 = vector.shape_cast %47 : vector<17xf32> to vector<17x1xf32>
    %49 = vector.broadcast %48 : vector<17x1xf32> to vector<17x17xf32>
    %50 = arith.subf %46, %49 : vector<17x17xf32>
    %51 = math.exp %50 : vector<17x17xf32>
    %cst_32 = arith.constant dense<0.000000e+00> : vector<17xf32>
    %52 = vector.multi_reduction <add>, %51, %cst_32 [1] : vector<17x17xf32> to vector<17xf32>
    %53 = vector.shape_cast %52 : vector<17xf32> to vector<17x1xf32>
    %54 = tpu.reciprocal %53 {approx = true} : vector<17x1xf32> -> vector<17x1xf32>
    %55 = vector.broadcast %54 : vector<17x1xf32> to vector<17x17xf32>
    %56 = arith.mulf %51, %55 : vector<17x17xf32>
    %cst_33 = arith.constant dense<0.000000e+00> : vector<17x8xf32>
    %57 = tpu.matmul %56, %42, %cst_33 {dimension_numbers = #tpu.dot_dimension_numbers<[1], [0], [0], [1], [0, 0, 1, 1], [], []>} : vector<17x17xf32>, vector<17x8xf32>, vector<17x8xf32> -> vector<17x8xf32>
    %c0_34 = arith.constant 0 : index
    %c0_35 = arith.constant 0 : index
    %58 = vector.load %arg21[%c0_34, %c0_35] : memref<34x32xf32, #tpu.memory_space<vmem>>, vector<17x8xf32>
    tpu.vector_store %arg21[%c0_34, %c0_35], %57 {strides = array<i32>} : memref<34x32xf32, #tpu.memory_space<vmem>>, vector<17x8xf32>,
    %c0_36 = arith.constant 0 : index
    %c8 = arith.constant 8 : index
    %59 = vector.load %arg20[%c0_36, %c8] : memref<34x96xf32, #tpu.memory_space<vmem>>, vector<17x8xf32>
    %cst_37 = arith.constant 0.353553385 : f32
    %60 = vector.broadcast %cst_37 : f32 to vector<17x8xf32>
    %61 = arith.mulf %59, %60 : vector<17x8xf32>
    %c0_38 = arith.constant 0 : index
    %c40 = arith.constant 40 : index
    %62 = vector.load %arg20[%c0_38, %c40] : memref<34x96xf32, #tpu.memory_space<vmem>>, vector<17x8xf32>
    %c0_39 = arith.constant 0 : index
    %c72 = arith.constant 72 : index
    %63 = vector.load %arg20[%c0_39, %c72] : memref<34x96xf32, #tpu.memory_space<vmem>>, vector<17x8xf32>
    %cst_40 = arith.constant dense<0.000000e+00> : vector<17x17xf32>
    %64 = tpu.matmul %61, %62, %cst_40 {dimension_numbers = #tpu.dot_dimension_numbers<[1], [1], [0], [0], [0, 0, 1, 0], [], []>} : vector<17x8xf32>, vector<17x8xf32>, vector<17x17xf32> -> vector<17x17xf32>
    %c0_41 = arith.constant 0 : index
    %c1 = arith.constant 1 : index
    %c0_42 = arith.constant 0 : index
    %c0_43 = arith.constant 0 : index
    %65 = vector.load %arg8[%c0_41, %c1, %c0_42, %c0_43] : memref<1x4x17x17xf32, #tpu.memory_space<vmem>>, vector<1x1x17x17xf32>
    %66 = vector.shape_cast %65 : vector<1x1x17x17xf32> to vector<17x17xf32>
    %67 = arith.addf %64, %66 : vector<17x17xf32>
    %cst_44 = arith.constant dense<0xFF800000> : vector<17xf32>
    %68 = vector.multi_reduction <maximumf>, %67, %cst_44 [1] : vector<17x17xf32> to vector<17xf32>
    %69 = vector.shape_cast %68 : vector<17xf32> to vector<17x1xf32>
    %70 = vector.broadcast %69 : vector<17x1xf32> to vector<17x17xf32>
    %71 = arith.subf %67, %70 : vector<17x17xf32>
    %72 = math.exp %71 : vector<17x17xf32>
    %cst_45 = arith.constant dense<0.000000e+00> : vector<17xf32>
    %73 = vector.multi_reduction <add>, %72, %cst_45 [1] : vector<17x17xf32> to vector<17xf32>
    %74 = vector.shape_cast %73 : vector<17xf32> to vector<17x1xf32>
    %75 = tpu.reciprocal %74 {approx = true} : vector<17x1xf32> -> vector<17x1xf32>
    %76 = vector.broadcast %75 : vector<17x1xf32> to vector<17x17xf32>
    %77 = arith.mulf %72, %76 : vector<17x17xf32>
    %cst_46 = arith.constant dense<0.000000e+00> : vector<17x8xf32>
    %78 = tpu.matmul %77, %63, %cst_46 {dimension_numbers = #tpu.dot_dimension_numbers<[1], [0], [0], [1], [0, 0, 1, 1], [], []>} : vector<17x17xf32>, vector<17x8xf32>, vector<17x8xf32> -> vector<17x8xf32>
    %c0_47 = arith.constant 0 : index
    %c8_48 = arith.constant 8 : index
    %79 = vector.load %arg21[%c0_47, %c8_48] : memref<34x32xf32, #tpu.memory_space<vmem>>, vector<17x8xf32>
    tpu.vector_store %arg21[%c0_47, %c8_48], %78 {strides = array<i32>} : memref<34x32xf32, #tpu.memory_space<vmem>>, vector<17x8xf32>,
    %c0_49 = arith.constant 0 : index
    %c16 = arith.constant 16 : index
    %80 = vector.load %arg20[%c0_49, %c16] : memref<34x96xf32, #tpu.memory_space<vmem>>, vector<17x8xf32>
    %cst_50 = arith.constant 0.353553385 : f32
    %81 = vector.broadcast %cst_50 : f32 to vector<17x8xf32>
    %82 = arith.mulf %80, %81 : vector<17x8xf32>
    %c0_51 = arith.constant 0 : index
    %c48 = arith.constant 48 : index
    %83 = vector.load %arg20[%c0_51, %c48] : memref<34x96xf32, #tpu.memory_space<vmem>>, vector<17x8xf32>
    %c0_52 = arith.constant 0 : index
    %c80 = arith.constant 80 : index
    %84 = vector.load %arg20[%c0_52, %c80] : memref<34x96xf32, #tpu.memory_space<vmem>>, vector<17x8xf32>
    %cst_53 = arith.constant dense<0.000000e+00> : vector<17x17xf32>
    %85 = tpu.matmul %82, %83, %cst_53 {dimension_numbers = #tpu.dot_dimension_numbers<[1], [1], [0], [0], [0, 0, 1, 0], [], []>} : vector<17x8xf32>, vector<17x8xf32>, vector<17x17xf32> -> vector<17x17xf32>
    %c0_54 = arith.constant 0 : index
    %c2 = arith.constant 2 : index
    %c0_55 = arith.constant 0 : index
    %c0_56 = arith.constant 0 : index
    %86 = vector.load %arg8[%c0_54, %c2, %c0_55, %c0_56] : memref<1x4x17x17xf32, #tpu.memory_space<vmem>>, vector<1x1x17x17xf32>
    %87 = vector.shape_cast %86 : vector<1x1x17x17xf32> to vector<17x17xf32>
    %88 = arith.addf %85, %87 : vector<17x17xf32>
    %cst_57 = arith.constant dense<0xFF800000> : vector<17xf32>
    %89 = vector.multi_reduction <maximumf>, %88, %cst_57 [1] : vector<17x17xf32> to vector<17xf32>
    %90 = vector.shape_cast %89 : vector<17xf32> to vector<17x1xf32>
    %91 = vector.broadcast %90 : vector<17x1xf32> to vector<17x17xf32>
    %92 = arith.subf %88, %91 : vector<17x17xf32>
    %93 = math.exp %92 : vector<17x17xf32>
    %cst_58 = arith.constant dense<0.000000e+00> : vector<17xf32>
    %94 = vector.multi_reduction <add>, %93, %cst_58 [1] : vector<17x17xf32> to vector<17xf32>
    %95 = vector.shape_cast %94 : vector<17xf32> to vector<17x1xf32>
    %96 = tpu.reciprocal %95 {approx = true} : vector<17x1xf32> -> vector<17x1xf32>
    %97 = vector.broadcast %96 : vector<17x1xf32> to vector<17x17xf32>
    %98 = arith.mulf %93, %97 : vector<17x17xf32>
    %cst_59 = arith.constant dense<0.000000e+00> : vector<17x8xf32>
    %99 = tpu.matmul %98, %84, %cst_59 {dimension_numbers = #tpu.dot_dimension_numbers<[1], [0], [0], [1], [0, 0, 1, 1], [], []>} : vector<17x17xf32>, vector<17x8xf32>, vector<17x8xf32> -> vector<17x8xf32>
    %c0_60 = arith.constant 0 : index
    %c16_61 = arith.constant 16 : index
    %100 = vector.load %arg21[%c0_60, %c16_61] : memref<34x32xf32, #tpu.memory_space<vmem>>, vector<17x8xf32>
    tpu.vector_store %arg21[%c0_60, %c16_61], %99 {strides = array<i32>} : memref<34x32xf32, #tpu.memory_space<vmem>>, vector<17x8xf32>,
    %c0_62 = arith.constant 0 : index
    %c24 = arith.constant 24 : index
    %101 = vector.load %arg20[%c0_62, %c24] : memref<34x96xf32, #tpu.memory_space<vmem>>, vector<17x8xf32>
    %cst_63 = arith.constant 0.353553385 : f32
    %102 = vector.broadcast %cst_63 : f32 to vector<17x8xf32>
    %103 = arith.mulf %101, %102 : vector<17x8xf32>
    %c0_64 = arith.constant 0 : index
    %c56 = arith.constant 56 : index
    %104 = vector.load %arg20[%c0_64, %c56] : memref<34x96xf32, #tpu.memory_space<vmem>>, vector<17x8xf32>
    %c0_65 = arith.constant 0 : index
    %c88 = arith.constant 88 : index
    %105 = vector.load %arg20[%c0_65, %c88] : memref<34x96xf32, #tpu.memory_space<vmem>>, vector<17x8xf32>
    %cst_66 = arith.constant dense<0.000000e+00> : vector<17x17xf32>
    %106 = tpu.matmul %103, %104, %cst_66 {dimension_numbers = #tpu.dot_dimension_numbers<[1], [1], [0], [0], [0, 0, 1, 0], [], []>} : vector<17x8xf32>, vector<17x8xf32>, vector<17x17xf32> -> vector<17x17xf32>
    %c0_67 = arith.constant 0 : index
    %c3 = arith.constant 3 : index
    %c0_68 = arith.constant 0 : index
    %c0_69 = arith.constant 0 : index
    %107 = vector.load %arg8[%c0_67, %c3, %c0_68, %c0_69] : memref<1x4x17x17xf32, #tpu.memory_space<vmem>>, vector<1x1x17x17xf32>
    %108 = vector.shape_cast %107 : vector<1x1x17x17xf32> to vector<17x17xf32>
    %109 = arith.addf %106, %108 : vector<17x17xf32>
    %cst_70 = arith.constant dense<0xFF800000> : vector<17xf32>
    %110 = vector.multi_reduction <maximumf>, %109, %cst_70 [1] : vector<17x17xf32> to vector<17xf32>
    %111 = vector.shape_cast %110 : vector<17xf32> to vector<17x1xf32>
    %112 = vector.broadcast %111 : vector<17x1xf32> to vector<17x17xf32>
    %113 = arith.subf %109, %112 : vector<17x17xf32>
    %114 = math.exp %113 : vector<17x17xf32>
    %cst_71 = arith.constant dense<0.000000e+00> : vector<17xf32>
    %115 = vector.multi_reduction <add>, %114, %cst_71 [1] : vector<17x17xf32> to vector<17xf32>
    %116 = vector.shape_cast %115 : vector<17xf32> to vector<17x1xf32>
    %117 = tpu.reciprocal %116 {approx = true} : vector<17x1xf32> -> vector<17x1xf32>
    %118 = vector.broadcast %117 : vector<17x1xf32> to vector<17x17xf32>
    %119 = arith.mulf %114, %118 : vector<17x17xf32>
    %cst_72 = arith.constant dense<0.000000e+00> : vector<17x8xf32>
    %120 = tpu.matmul %119, %105, %cst_72 {dimension_numbers = #tpu.dot_dimension_numbers<[1], [0], [0], [1], [0, 0, 1, 1], [], []>} : vector<17x17xf32>, vector<17x8xf32>, vector<17x8xf32> -> vector<17x8xf32>
    %c0_73 = arith.constant 0 : index
    %c24_74 = arith.constant 24 : index
    %121 = vector.load %arg21[%c0_73, %c24_74] : memref<34x32xf32, #tpu.memory_space<vmem>>, vector<17x8xf32>
    tpu.vector_store %arg21[%c0_73, %c24_74], %120 {strides = array<i32>} : memref<34x32xf32, #tpu.memory_space<vmem>>, vector<17x8xf32>,
    %c17 = arith.constant 17 : index
    %c0_75 = arith.constant 0 : index
    %122 = vector.load %arg20[%c17, %c0_75] : memref<34x96xf32, #tpu.memory_space<vmem>>, vector<17x8xf32>
    %cst_76 = arith.constant 0.353553385 : f32
    %123 = vector.broadcast %cst_76 : f32 to vector<17x8xf32>
    %124 = arith.mulf %122, %123 : vector<17x8xf32>
    %c17_77 = arith.constant 17 : index
    %c32_78 = arith.constant 32 : index
    %125 = vector.load %arg20[%c17_77, %c32_78] : memref<34x96xf32, #tpu.memory_space<vmem>>, vector<17x8xf32>
    %c17_79 = arith.constant 17 : index
    %c64_80 = arith.constant 64 : index
    %126 = vector.load %arg20[%c17_79, %c64_80] : memref<34x96xf32, #tpu.memory_space<vmem>>, vector<17x8xf32>
    %cst_81 = arith.constant dense<0.000000e+00> : vector<17x17xf32>
    %127 = tpu.matmul %124, %125, %cst_81 {dimension_numbers = #tpu.dot_dimension_numbers<[1], [1], [0], [0], [0, 0, 1, 0], [], []>} : vector<17x8xf32>, vector<17x8xf32>, vector<17x17xf32> -> vector<17x17xf32>
    %c0_82 = arith.constant 0 : index
    %c0_83 = arith.constant 0 : index
    %c0_84 = arith.constant 0 : index
    %c0_85 = arith.constant 0 : index
    %128 = vector.load %arg8[%c0_82, %c0_83, %c0_84, %c0_85] : memref<1x4x17x17xf32, #tpu.memory_space<vmem>>, vector<1x1x17x17xf32>
    %129 = vector.shape_cast %128 : vector<1x1x17x17xf32> to vector<17x17xf32>
    %130 = arith.addf %127, %129 : vector<17x17xf32>
    %cst_86 = arith.constant dense<0xFF800000> : vector<17xf32>
    %131 = vector.multi_reduction <maximumf>, %130, %cst_86 [1] : vector<17x17xf32> to vector<17xf32>
    %132 = vector.shape_cast %131 : vector<17xf32> to vector<17x1xf32>
    %133 = vector.broadcast %132 : vector<17x1xf32> to vector<17x17xf32>
    %134 = arith.subf %130, %133 : vector<17x17xf32>
    %135 = math.exp %134 : vector<17x17xf32>
    %cst_87 = arith.constant dense<0.000000e+00> : vector<17xf32>
    %136 = vector.multi_reduction <add>, %135, %cst_87 [1] : vector<17x17xf32> to vector<17xf32>
    %137 = vector.shape_cast %136 : vector<17xf32> to vector<17x1xf32>
    %138 = tpu.reciprocal %137 {approx = true} : vector<17x1xf32> -> vector<17x1xf32>
    %139 = vector.broadcast %138 : vector<17x1xf32> to vector<17x17xf32>
    %140 = arith.mulf %135, %139 : vector<17x17xf32>
    %cst_88 = arith.constant dense<0.000000e+00> : vector<17x8xf32>
    %141 = tpu.matmul %140, %126, %cst_88 {dimension_numbers = #tpu.dot_dimension_numbers<[1], [0], [0], [1], [0, 0, 1, 1], [], []>} : vector<17x17xf32>, vector<17x8xf32>, vector<17x8xf32> -> vector<17x8xf32>
    %c17_89 = arith.constant 17 : index
    %c0_90 = arith.constant 0 : index
    %142 = vector.load %arg21[%c17_89, %c0_90] : memref<34x32xf32, #tpu.memory_space<vmem>>, vector<17x8xf32>
    tpu.vector_store %arg21[%c17_89, %c0_90], %141 {strides = array<i32>} : memref<34x32xf32, #tpu.memory_space<vmem>>, vector<17x8xf32>,
    %c17_91 = arith.constant 17 : index
    %c8_92 = arith.constant 8 : index
    %143 = vector.load %arg20[%c17_91, %c8_92] : memref<34x96xf32, #tpu.memory_space<vmem>>, vector<17x8xf32>
    %cst_93 = arith.constant 0.353553385 : f32
    %144 = vector.broadcast %cst_93 : f32 to vector<17x8xf32>
    %145 = arith.mulf %143, %144 : vector<17x8xf32>
    %c17_94 = arith.constant 17 : index
    %c40_95 = arith.constant 40 : index
    %146 = vector.load %arg20[%c17_94, %c40_95] : memref<34x96xf32, #tpu.memory_space<vmem>>, vector<17x8xf32>
    %c17_96 = arith.constant 17 : index
    %c72_97 = arith.constant 72 : index
    %147 = vector.load %arg20[%c17_96, %c72_97] : memref<34x96xf32, #tpu.memory_space<vmem>>, vector<17x8xf32>
    %cst_98 = arith.constant dense<0.000000e+00> : vector<17x17xf32>
    %148 = tpu.matmul %145, %146, %cst_98 {dimension_numbers = #tpu.dot_dimension_numbers<[1], [1], [0], [0], [0, 0, 1, 0], [], []>} : vector<17x8xf32>, vector<17x8xf32>, vector<17x17xf32> -> vector<17x17xf32>
    %c0_99 = arith.constant 0 : index
    %c1_100 = arith.constant 1 : index
    %c0_101 = arith.constant 0 : index
    %c0_102 = arith.constant 0 : index
    %149 = vector.load %arg8[%c0_99, %c1_100, %c0_101, %c0_102] : memref<1x4x17x17xf32, #tpu.memory_space<vmem>>, vector<1x1x17x17xf32>
    %150 = vector.shape_cast %149 : vector<1x1x17x17xf32> to vector<17x17xf32>
    %151 = arith.addf %148, %150 : vector<17x17xf32>
    %cst_103 = arith.constant dense<0xFF800000> : vector<17xf32>
    %152 = vector.multi_reduction <maximumf>, %151, %cst_103 [1] : vector<17x17xf32> to vector<17xf32>
    %153 = vector.shape_cast %152 : vector<17xf32> to vector<17x1xf32>
    %154 = vector.broadcast %153 : vector<17x1xf32> to vector<17x17xf32>
    %155 = arith.subf %151, %154 : vector<17x17xf32>
    %156 = math.exp %155 : vector<17x17xf32>
    %cst_104 = arith.constant dense<0.000000e+00> : vector<17xf32>
    %157 = vector.multi_reduction <add>, %156, %cst_104 [1] : vector<17x17xf32> to vector<17xf32>
    %158 = vector.shape_cast %157 : vector<17xf32> to vector<17x1xf32>
    %159 = tpu.reciprocal %158 {approx = true} : vector<17x1xf32> -> vector<17x1xf32>
    %160 = vector.broadcast %159 : vector<17x1xf32> to vector<17x17xf32>
    %161 = arith.mulf %156, %160 : vector<17x17xf32>
    %cst_105 = arith.constant dense<0.000000e+00> : vector<17x8xf32>
    %162 = tpu.matmul %161, %147, %cst_105 {dimension_numbers = #tpu.dot_dimension_numbers<[1], [0], [0], [1], [0, 0, 1, 1], [], []>} : vector<17x17xf32>, vector<17x8xf32>, vector<17x8xf32> -> vector<17x8xf32>
    %c17_106 = arith.constant 17 : index
    %c8_107 = arith.constant 8 : index
    %163 = vector.load %arg21[%c17_106, %c8_107] : memref<34x32xf32, #tpu.memory_space<vmem>>, vector<17x8xf32>
    tpu.vector_store %arg21[%c17_106, %c8_107], %162 {strides = array<i32>} : memref<34x32xf32, #tpu.memory_space<vmem>>, vector<17x8xf32>,
    %c17_108 = arith.constant 17 : index
    %c16_109 = arith.constant 16 : index
    %164 = vector.load %arg20[%c17_108, %c16_109] : memref<34x96xf32, #tpu.memory_space<vmem>>, vector<17x8xf32>
    %cst_110 = arith.constant 0.353553385 : f32
    %165 = vector.broadcast %cst_110 : f32 to vector<17x8xf32>
    %166 = arith.mulf %164, %165 : vector<17x8xf32>
    %c17_111 = arith.constant 17 : index
    %c48_112 = arith.constant 48 : index
    %167 = vector.load %arg20[%c17_111, %c48_112] : memref<34x96xf32, #tpu.memory_space<vmem>>, vector<17x8xf32>
    %c17_113 = arith.constant 17 : index
    %c80_114 = arith.constant 80 : index
    %168 = vector.load %arg20[%c17_113, %c80_114] : memref<34x96xf32, #tpu.memory_space<vmem>>, vector<17x8xf32>
    %cst_115 = arith.constant dense<0.000000e+00> : vector<17x17xf32>
    %169 = tpu.matmul %166, %167, %cst_115 {dimension_numbers = #tpu.dot_dimension_numbers<[1], [1], [0], [0], [0, 0, 1, 0], [], []>} : vector<17x8xf32>, vector<17x8xf32>, vector<17x17xf32> -> vector<17x17xf32>
    %c0_116 = arith.constant 0 : index
    %c2_117 = arith.constant 2 : index
    %c0_118 = arith.constant 0 : index
    %c0_119 = arith.constant 0 : index
    %170 = vector.load %arg8[%c0_116, %c2_117, %c0_118, %c0_119] : memref<1x4x17x17xf32, #tpu.memory_space<vmem>>, vector<1x1x17x17xf32>
    %171 = vector.shape_cast %170 : vector<1x1x17x17xf32> to vector<17x17xf32>
    %172 = arith.addf %169, %171 : vector<17x17xf32>
    %cst_120 = arith.constant dense<0xFF800000> : vector<17xf32>
    %173 = vector.multi_reduction <maximumf>, %172, %cst_120 [1] : vector<17x17xf32> to vector<17xf32>
    %174 = vector.shape_cast %173 : vector<17xf32> to vector<17x1xf32>
    %175 = vector.broadcast %174 : vector<17x1xf32> to vector<17x17xf32>
    %176 = arith.subf %172, %175 : vector<17x17xf32>
    %177 = math.exp %176 : vector<17x17xf32>
    %cst_121 = arith.constant dense<0.000000e+00> : vector<17xf32>
    %178 = vector.multi_reduction <add>, %177, %cst_121 [1] : vector<17x17xf32> to vector<17xf32>
    %179 = vector.shape_cast %178 : vector<17xf32> to vector<17x1xf32>
    %180 = tpu.reciprocal %179 {approx = true} : vector<17x1xf32> -> vector<17x1xf32>
    %181 = vector.broadcast %180 : vector<17x1xf32> to vector<17x17xf32>
    %182 = arith.mulf %177, %181 : vector<17x17xf32>
    %cst_122 = arith.constant dense<0.000000e+00> : vector<17x8xf32>
    %183 = tpu.matmul %182, %168, %cst_122 {dimension_numbers = #tpu.dot_dimension_numbers<[1], [0], [0], [1], [0, 0, 1, 1], [], []>} : vector<17x17xf32>, vector<17x8xf32>, vector<17x8xf32> -> vector<17x8xf32>
    %c17_123 = arith.constant 17 : index
    %c16_124 = arith.constant 16 : index
    %184 = vector.load %arg21[%c17_123, %c16_124] : memref<34x32xf32, #tpu.memory_space<vmem>>, vector<17x8xf32>
    tpu.vector_store %arg21[%c17_123, %c16_124], %183 {strides = array<i32>} : memref<34x32xf32, #tpu.memory_space<vmem>>, vector<17x8xf32>,
    %c17_125 = arith.constant 17 : index
    %c24_126 = arith.constant 24 : index
    %185 = vector.load %arg20[%c17_125, %c24_126] : memref<34x96xf32, #tpu.memory_space<vmem>>, vector<17x8xf32>
    %cst_127 = arith.constant 0.353553385 : f32
    %186 = vector.broadcast %cst_127 : f32 to vector<17x8xf32>
    %187 = arith.mulf %185, %186 : vector<17x8xf32>
    %c17_128 = arith.constant 17 : index
    %c56_129 = arith.constant 56 : index
    %188 = vector.load %arg20[%c17_128, %c56_129] : memref<34x96xf32, #tpu.memory_space<vmem>>, vector<17x8xf32>
    %c17_130 = arith.constant 17 : index
    %c88_131 = arith.constant 88 : index
    %189 = vector.load %arg20[%c17_130, %c88_131] : memref<34x96xf32, #tpu.memory_space<vmem>>, vector<17x8xf32>
    %cst_132 = arith.constant dense<0.000000e+00> : vector<17x17xf32>
    %190 = tpu.matmul %187, %188, %cst_132 {dimension_numbers = #tpu.dot_dimension_numbers<[1], [1], [0], [0], [0, 0, 1, 0], [], []>} : vector<17x8xf32>, vector<17x8xf32>, vector<17x17xf32> -> vector<17x17xf32>
    %c0_133 = arith.constant 0 : index
    %c3_134 = arith.constant 3 : index
    %c0_135 = arith.constant 0 : index
    %c0_136 = arith.constant 0 : index
    %191 = vector.load %arg8[%c0_133, %c3_134, %c0_135, %c0_136] : memref<1x4x17x17xf32, #tpu.memory_space<vmem>>, vector<1x1x17x17xf32>
    %192 = vector.shape_cast %191 : vector<1x1x17x17xf32> to vector<17x17xf32>
    %193 = arith.addf %190, %192 : vector<17x17xf32>
    %cst_137 = arith.constant dense<0xFF800000> : vector<17xf32>
    %194 = vector.multi_reduction <maximumf>, %193, %cst_137 [1] : vector<17x17xf32> to vector<17xf32>
    %195 = vector.shape_cast %194 : vector<17xf32> to vector<17x1xf32>
    %196 = vector.broadcast %195 : vector<17x1xf32> to vector<17x17xf32>
    %197 = arith.subf %193, %196 : vector<17x17xf32>
    %198 = math.exp %197 : vector<17x17xf32>
    %cst_138 = arith.constant dense<0.000000e+00> : vector<17xf32>
    %199 = vector.multi_reduction <add>, %198, %cst_138 [1] : vector<17x17xf32> to vector<17xf32>
    %200 = vector.shape_cast %199 : vector<17xf32> to vector<17x1xf32>
    %201 = tpu.reciprocal %200 {approx = true} : vector<17x1xf32> -> vector<17x1xf32>
    %202 = vector.broadcast %201 : vector<17x1xf32> to vector<17x17xf32>
    %203 = arith.mulf %198, %202 : vector<17x17xf32>
    %cst_139 = arith.constant dense<0.000000e+00> : vector<17x8xf32>
    %204 = tpu.matmul %203, %189, %cst_139 {dimension_numbers = #tpu.dot_dimension_numbers<[1], [0], [0], [1], [0, 0, 1, 1], [], []>} : vector<17x17xf32>, vector<17x8xf32>, vector<17x8xf32> -> vector<17x8xf32>
    %c17_140 = arith.constant 17 : index
    %c24_141 = arith.constant 24 : index
    %205 = vector.load %arg21[%c17_140, %c24_141] : memref<34x32xf32, #tpu.memory_space<vmem>>, vector<17x8xf32>
    tpu.vector_store %arg21[%c17_140, %c24_141], %204 {strides = array<i32>} : memref<34x32xf32, #tpu.memory_space<vmem>>, vector<17x8xf32>,
    %c0_142 = arith.constant 0 : index
    %c0_143 = arith.constant 0 : index
    %206 = vector.load %arg21[%c0_142, %c0_143] : memref<34x32xf32, #tpu.memory_space<vmem>>, vector<34x32xf32>
    %c0_144 = arith.constant 0 : index
    %c0_145 = arith.constant 0 : index
    %c0_146 = arith.constant 0 : index
    %207 = vector.load %arg9[%c0_144, %c0_145, %c0_146] : memref<1x32x32xf32, #tpu.memory_space<vmem>>, vector<1x32x32xf32>
    %208 = vector.shape_cast %207 : vector<1x32x32xf32> to vector<32x32xf32>
    %cst_147 = arith.constant dense<0.000000e+00> : vector<34x32xf32>
    %209 = tpu.matmul %206, %208, %cst_147 {dimension_numbers = #tpu.dot_dimension_numbers<[1], [0], [0], [1], [0, 0, 1, 1], [], []>} : vector<34x32xf32>, vector<32x32xf32>, vector<34x32xf32> -> vector<34x32xf32>
    %c0_148 = arith.constant 0 : index
    %c0_149 = arith.constant 0 : index
    %c0_150 = arith.constant 0 : index
    %210 = vector.load %arg10[%c0_148, %c0_149, %c0_150] : memref<1x1x32xf32, #tpu.memory_space<vmem>>, vector<1x1x32xf32>
    %211 = vector.shape_cast %210 : vector<1x1x32xf32> to vector<1x32xf32>
    %212 = vector.broadcast %211 : vector<1x32xf32> to vector<34x32xf32>
    %213 = arith.addf %209, %212 : vector<34x32xf32>
    %c0_151 = arith.constant 0 : index
    %c0_152 = arith.constant 0 : index
    %c0_153 = arith.constant 0 : index
    %214 = vector.load %arg11[%c0_151, %c0_152, %c0_153] : memref<1x1x32xf32, #tpu.memory_space<vmem>>, vector<1x1x32xf32>
    %215 = vector.shape_cast %214 : vector<1x1x32xf32> to vector<1x32xf32>
    %216 = vector.broadcast %215 : vector<1x32xf32> to vector<34x32xf32>
    %217 = arith.mulf %216, %213 : vector<34x32xf32>
    %218 = arith.addf %3, %217 : vector<34x32xf32>
    %cst_154 = arith.constant dense<0.000000e+00> : vector<34xf32>
    %219 = vector.multi_reduction <add>, %218, %cst_154 [1] : vector<34x32xf32> to vector<34xf32>
    %220 = vector.shape_cast %219 : vector<34xf32> to vector<34x1xf32>
    %cst_155 = arith.constant 3.200000e+01 : f32
    %221 = vector.broadcast %cst_155 : f32 to vector<34x1xf32>
    %222 = arith.divf %220, %221 : vector<34x1xf32>
    %223 = vector.broadcast %222 : vector<34x1xf32> to vector<34x32xf32>
    %224 = arith.subf %218, %223 : vector<34x32xf32>
    %225 = arith.mulf %224, %224 : vector<34x32xf32>
    %cst_156 = arith.constant dense<0.000000e+00> : vector<34xf32>
    %226 = vector.multi_reduction <add>, %225, %cst_156 [1] : vector<34x32xf32> to vector<34xf32>
    %227 = vector.shape_cast %226 : vector<34xf32> to vector<34x1xf32>
    %cst_157 = arith.constant 3.200000e+01 : f32
    %228 = vector.broadcast %cst_157 : f32 to vector<34x1xf32>
    %229 = arith.divf %227, %228 : vector<34x1xf32>
    %230 = vector.broadcast %222 : vector<34x1xf32> to vector<34x32xf32>
    %231 = arith.subf %218, %230 : vector<34x32xf32>
    %cst_158 = arith.constant 9.99999997E-7 : f32
    %232 = vector.broadcast %cst_158 : f32 to vector<34x1xf32>
    %233 = arith.addf %229, %232 : vector<34x1xf32>
    %234 = math.rsqrt %233 : vector<34x1xf32>
    %235 = vector.broadcast %234 : vector<34x1xf32> to vector<34x32xf32>
    %236 = arith.mulf %231, %235 : vector<34x32xf32>
    %c0_159 = arith.constant 0 : index
    %c0_160 = arith.constant 0 : index
    %c0_161 = arith.constant 0 : index
    %237 = vector.load %arg12[%c0_159, %c0_160, %c0_161] : memref<1x1x32xf32, #tpu.memory_space<vmem>>, vector<1x1x32xf32>
    %238 = vector.shape_cast %237 : vector<1x1x32xf32> to vector<1x32xf32>
    %239 = vector.broadcast %238 : vector<1x32xf32> to vector<34x32xf32>
    %240 = arith.mulf %236, %239 : vector<34x32xf32>
    %c0_162 = arith.constant 0 : index
    %c0_163 = arith.constant 0 : index
    %c0_164 = arith.constant 0 : index
    %241 = vector.load %arg13[%c0_162, %c0_163, %c0_164] : memref<1x1x32xf32, #tpu.memory_space<vmem>>, vector<1x1x32xf32>
    %242 = vector.shape_cast %241 : vector<1x1x32xf32> to vector<1x32xf32>
    %243 = vector.broadcast %242 : vector<1x32xf32> to vector<34x32xf32>
    %244 = arith.addf %240, %243 : vector<34x32xf32>
    %c0_165 = arith.constant 0 : index
    %c0_166 = arith.constant 0 : index
    %c0_167 = arith.constant 0 : index
    %245 = vector.load %arg14[%c0_165, %c0_166, %c0_167] : memref<1x32x128xf32, #tpu.memory_space<vmem>>, vector<1x32x128xf32>
    %246 = vector.shape_cast %245 : vector<1x32x128xf32> to vector<32x128xf32>
    %cst_168 = arith.constant dense<0.000000e+00> : vector<34x128xf32>
    %247 = tpu.matmul %244, %246, %cst_168 {dimension_numbers = #tpu.dot_dimension_numbers<[1], [0], [0], [1], [0, 0, 1, 1], [], []>} : vector<34x32xf32>, vector<32x128xf32>, vector<34x128xf32> -> vector<34x128xf32>
    %c0_169 = arith.constant 0 : index
    %c0_170 = arith.constant 0 : index
    %c0_171 = arith.constant 0 : index
    %248 = vector.load %arg15[%c0_169, %c0_170, %c0_171] : memref<1x1x128xf32, #tpu.memory_space<vmem>>, vector<1x1x128xf32>
    %249 = vector.shape_cast %248 : vector<1x1x128xf32> to vector<1x128xf32>
    %250 = vector.broadcast %249 : vector<1x128xf32> to vector<34x128xf32>
    %251 = arith.addf %247, %250 : vector<34x128xf32>
    %cst_172 = arith.constant 5.000000e-01 : f32
    %252 = vector.broadcast %cst_172 : f32 to vector<34x128xf32>
    %253 = arith.mulf %252, %251 : vector<34x128xf32>
    %cst_173 = arith.constant 0.707106769 : f32
    %254 = vector.broadcast %cst_173 : f32 to vector<34x128xf32>
    %255 = arith.mulf %251, %254 : vector<34x128xf32>
    %256 = math.erf %255 : vector<34x128xf32>
    %cst_174 = arith.constant 1.000000e+00 : f32
    %257 = vector.broadcast %cst_174 : f32 to vector<34x128xf32>
    %258 = arith.addf %257, %256 : vector<34x128xf32>
    %259 = arith.mulf %253, %258 : vector<34x128xf32>
    %c0_175 = arith.constant 0 : index
    %c0_176 = arith.constant 0 : index
    %c0_177 = arith.constant 0 : index
    %260 = vector.load %arg16[%c0_175, %c0_176, %c0_177] : memref<1x128x32xf32, #tpu.memory_space<vmem>>, vector<1x128x32xf32>
    %261 = vector.shape_cast %260 : vector<1x128x32xf32> to vector<128x32xf32>
    %cst_178 = arith.constant dense<0.000000e+00> : vector<34x32xf32>
    %262 = tpu.matmul %259, %261, %cst_178 {dimension_numbers = #tpu.dot_dimension_numbers<[1], [0], [0], [1], [0, 0, 1, 1], [], []>} : vector<34x128xf32>, vector<128x32xf32>, vector<34x32xf32> -> vector<34x32xf32>
    %c0_179 = arith.constant 0 : index
    %c0_180 = arith.constant 0 : index
    %c0_181 = arith.constant 0 : index
    %263 = vector.load %arg17[%c0_179, %c0_180, %c0_181] : memref<1x1x32xf32, #tpu.memory_space<vmem>>, vector<1x1x32xf32>
    %264 = vector.shape_cast %263 : vector<1x1x32xf32> to vector<1x32xf32>
    %265 = vector.broadcast %264 : vector<1x32xf32> to vector<34x32xf32>
    %266 = arith.addf %262, %265 : vector<34x32xf32>
    %c0_182 = arith.constant 0 : index
    %c0_183 = arith.constant 0 : index
    %c0_184 = arith.constant 0 : index
    %267 = vector.load %arg18[%c0_182, %c0_183, %c0_184] : memref<1x1x32xf32, #tpu.memory_space<vmem>>, vector<1x1x32xf32>
    %268 = vector.shape_cast %267 : vector<1x1x32xf32> to vector<1x32xf32>
    %269 = vector.broadcast %268 : vector<1x32xf32> to vector<34x32xf32>
    %270 = arith.mulf %269, %266 : vector<34x32xf32>
    %271 = arith.addf %218, %270 : vector<34x32xf32>
    %c0_185 = arith.constant 0 : index
    %c0_186 = arith.constant 0 : index
    %272 = vector.load %arg19[%c0_185, %c0_186] : memref<34x32xf32, #tpu.memory_space<vmem>>, vector<34x32xf32>
    tpu.vector_store %arg19[%c0_185, %c0_186], %271 {strides = array<i32>} : memref<34x32xf32, #tpu.memory_space<vmem>>, vector<34x32xf32>,
    return
  }
  func.func @transform_0(%arg0: i32) -> (i32, i32) {
    %c0_i32 = arith.constant 0 : i32
    %c0_i32_0 = arith.constant 0 : i32
    %c0_i32_1 = arith.constant 0 : i32
    return %c0_i32, %c0_i32_0 : i32, i32
  }
  func.func @transform_1(%arg0: i32) -> (i32, i32) {
    %c0_i32 = arith.constant 0 : i32
    %c0_i32_0 = arith.constant 0 : i32
    %c0_i32_1 = arith.constant 0 : i32
    return %c0_i32, %c0_i32_0 : i32, i32
  }
  func.func @transform_2(%arg0: i32) -> (i32, i32) {
    %c0_i32 = arith.constant 0 : i32
    %c0_i32_0 = arith.constant 0 : i32
    %c0_i32_1 = arith.constant 0 : i32
    return %c0_i32, %c0_i32_0 : i32, i32
  }
  func.func @transform_3(%arg0: i32) -> (i32, i32, i32) {
    %c0_i32 = arith.constant 0 : i32
    %c0_i32_0 = arith.constant 0 : i32
    %c0_i32_1 = arith.constant 0 : i32
    return %arg0, %c0_i32, %c0_i32_0 : i32, i32, i32
  }
  func.func @transform_4(%arg0: i32) -> (i32, i32, i32) {
    %c0_i32 = arith.constant 0 : i32
    %c0_i32_0 = arith.constant 0 : i32
    %c0_i32_1 = arith.constant 0 : i32
    return %arg0, %c0_i32, %c0_i32_0 : i32, i32, i32
  }
  func.func @transform_5(%arg0: i32) -> (i32, i32, i32) {
    %c0_i32 = arith.constant 0 : i32
    %c0_i32_0 = arith.constant 0 : i32
    %c0_i32_1 = arith.constant 0 : i32
    return %arg0, %c0_i32, %c0_i32_0 : i32, i32, i32
  }
  func.func @transform_6(%arg0: i32) -> (i32, i32, i32) {
    %c0_i32 = arith.constant 0 : i32
    %c0_i32_0 = arith.constant 0 : i32
    %c0_i32_1 = arith.constant 0 : i32
    return %arg0, %c0_i32, %c0_i32_0 : i32, i32, i32
  }
  func.func @transform_7(%arg0: i32) -> (i32, i32, i32, i32) {
    %c0_i32 = arith.constant 0 : i32
    %c0_i32_0 = arith.constant 0 : i32
    %c0_i32_1 = arith.constant 0 : i32
    %c0_i32_2 = arith.constant 0 : i32
    return %arg0, %c0_i32, %c0_i32_0, %c0_i32_1 : i32, i32, i32, i32
  }
  func.func @transform_8(%arg0: i32) -> (i32, i32, i32) {
    %c0_i32 = arith.constant 0 : i32
    %c0_i32_0 = arith.constant 0 : i32
    %c0_i32_1 = arith.constant 0 : i32
    return %arg0, %c0_i32, %c0_i32_0 : i32, i32, i32
  }
  func.func @transform_9(%arg0: i32) -> (i32, i32, i32) {
    %c0_i32 = arith.constant 0 : i32
    %c0_i32_0 = arith.constant 0 : i32
    %c0_i32_1 = arith.constant 0 : i32
    return %arg0, %c0_i32, %c0_i32_0 : i32, i32, i32
  }
  func.func @transform_10(%arg0: i32) -> (i32, i32, i32) {
    %c0_i32 = arith.constant 0 : i32
    %c0_i32_0 = arith.constant 0 : i32
    %c0_i32_1 = arith.constant 0 : i32
    return %arg0, %c0_i32, %c0_i32_0 : i32, i32, i32
  }
  func.func @transform_11(%arg0: i32) -> (i32, i32, i32) {
    %c0_i32 = arith.constant 0 : i32
    %c0_i32_0 = arith.constant 0 : i32
    %c0_i32_1 = arith.constant 0 : i32
    return %arg0, %c0_i32, %c0_i32_0 : i32, i32, i32
  }
  func.func @transform_12(%arg0: i32) -> (i32, i32, i32) {
    %c0_i32 = arith.constant 0 : i32
    %c0_i32_0 = arith.constant 0 : i32
    %c0_i32_1 = arith.constant 0 : i32
    return %arg0, %c0_i32, %c0_i32_0 : i32, i32, i32
  }
  func.func @transform_13(%arg0: i32) -> (i32, i32, i32) {
    %c0_i32 = arith.constant 0 : i32
    %c0_i32_0 = arith.constant 0 : i32
    %c0_i32_1 = arith.constant 0 : i32
    return %arg0, %c0_i32, %c0_i32_0 : i32, i32, i32
  }
  func.func @transform_14(%arg0: i32) -> (i32, i32, i32) {
    %c0_i32 = arith.constant 0 : i32
    %c0_i32_0 = arith.constant 0 : i32
    %c0_i32_1 = arith.constant 0 : i32
    return %arg0, %c0_i32, %c0_i32_0 : i32, i32, i32
  }
  func.func @transform_15(%arg0: i32) -> (i32, i32, i32) {
    %c0_i32 = arith.constant 0 : i32
    %c0_i32_0 = arith.constant 0 : i32
    %c0_i32_1 = arith.constant 0 : i32
    return %arg0, %c0_i32, %c0_i32_0 : i32, i32, i32
  }
  func.func @transform_16(%arg0: i32) -> (i32, i32, i32) {
    %c0_i32 = arith.constant 0 : i32
    %c0_i32_0 = arith.constant 0 : i32
    %c0_i32_1 = arith.constant 0 : i32
    return %arg0, %c0_i32, %c0_i32_0 : i32, i32, i32
  }
  func.func @transform_17(%arg0: i32) -> (i32, i32, i32) {
    %c0_i32 = arith.constant 0 : i32
    %c0_i32_0 = arith.constant 0 : i32
    %c0_i32_1 = arith.constant 0 : i32
    return %arg0, %c0_i32, %c0_i32_0 : i32, i32, i32
  }
  func.func @transform_18(%arg0: i32) -> (i32, i32) {
    %c0_i32 = arith.constant 0 : i32
    %c0_i32_0 = arith.constant 0 : i32
    %c0_i32_1 = arith.constant 0 : i32
    return %c0_i32, %c0_i32_0 : i32, i32
  }
}

</mosaic_0001>

<llo_original>
// kernel: tile.9
$region0: #{tile.9}
  %s0 = inlined_call_operand.vmem [shape: f32[2,17,32], index: 0, kind: input, shape index: {}]
  %s1 = inlined_call_operand.vmem [shape: f32[34,32], index: 1, kind: output, shape index: {}]
  %v2 = vld [vmem:[%s0] sm:$0xff]
  %vm3 = vcmask 261120
  %4 = vst.msk [vmem:[%s1] sm:$0xff] %vm3, %v2
  %s5 = scalar_lea.vmem %s0, 8
  %v6 = vld [vmem:[%s5] sm:$0xff]
  %vm7 = vcmask 261120
  %s8 = scalar_lea.vmem %s1, 8
  %9 = vst.msk [vmem:[%s8] sm:$0xff] %vm7, %v6
  %s10 = scalar_lea.vmem %s0, 16
  %s11 = smov 3
  %v12 = vld [vmem:[%s10] ss:$8 sm:%s11]
  %vm13 = vcmask 261120
  %s14 = scalar_lea.vmem %s1, 16
  %15 = vst.msk [vmem:[%s14] sm:$0x3] %vm13, %v12
  %s16 = scalar_lea.vmem %s0, 25
  %v17 = vld [vmem:[%s16] sm:$0xff]
  %vm18 = vcmask 261120
  %s19 = scalar_lea.vmem %s1, 18
  %20 = vst.msk [vmem:[%s19] sm:$0xff] %vm18, %v17
  %s21 = scalar_lea.vmem %s0, 33
  %v22 = vld [vmem:[%s21] sm:$0xff]
  %vm23 = vcmask 261120
  %s24 = scalar_lea.vmem %s1, 26
  %25 = vst.msk [vmem:[%s24] sm:$0xff] %vm23, %v22

// kernel: beit_forward.1
$region0: #{beit_forward.1}
  #allocation0 [shape = 'u32[]', space=smem, size = 0x4, offset = 0x4, fixed_abs, tag = 'smem constant byte address 0x4 - core index']
  #allocation1 [shape = 'u32[144,128]{1,0:T(1,128)}', space=vmem, size = 0x12000, scoped, tag = 'internal scratch']
  #allocation2 [shape = 'f32[34,96]{1,0:T(8,128)}', space=vmem, size = 0x5000, scoped, tag = 'scratch operand']
  #allocation3 [shape = 'f32[34,32]{1,0:T(8,128)}', space=vmem, size = 0x5000, scoped, tag = 'scratch operand']
  %s0 = inlined_call_operand.vmem [shape: f32[34,48], index: 0, kind: input, shape index: {}]
  %s1 = inlined_call_operand.vmem [shape: f32[48,32], index: 1, kind: input, shape index: {}]
  %s2 = inlined_call_operand.vmem [shape: f32[34,32], index: 2, kind: input, shape index: {}]
  %s3 = inlined_call_operand.vmem [shape: f32[2,1,32], index: 3, kind: input, shape index: {}]
  %s4 = inlined_call_operand.vmem [shape: f32[2,1,32], index: 4, kind: input, shape index: {}]
  %s5 = inlined_call_operand.vmem [shape: f32[2,32,96], index: 5, kind: input, shape index: {}]
  %s6 = inlined_call_operand.vmem [shape: f32[2,1,96], index: 6, kind: input, shape index: {}]
  %s7 = inlined_call_operand.vmem [shape: f32[2,4,17,17], index: 7, kind: input, shape index: {}]
  %s8 = inlined_call_operand.vmem [shape: f32[2,32,32], index: 8, kind: input, shape index: {}]
  %s9 = inlined_call_operand.vmem [shape: f32[2,1,32], index: 9, kind: input, shape index: {}]
  %s10 = inlined_call_operand.vmem [shape: f32[2,1,32], index: 10, kind: input, shape index: {}]
  %s11 = inlined_call_operand.vmem [shape: f32[2,1,32], index: 11, kind: input, shape index: {}]
  %s12 = inlined_call_operand.vmem [shape: f32[2,1,32], index: 12, kind: input, shape index: {}]
  %s13 = inlined_call_operand.vmem [shape: f32[2,32,128], index: 13, kind: input, shape index: {}]
  %s14 = inlined_call_operand.vmem [shape: f32[2,1,128], index: 14, kind: input, shape index: {}]
  %s15 = inlined_call_operand.vmem [shape: f32[2,128,32], index: 15, kind: input, shape index: {}]
  %s16 = inlined_call_operand.vmem [shape: f32[2,1,32], index: 16, kind: input, shape index: {}]
  %s17 = inlined_call_operand.vmem [shape: f32[2,1,32], index: 17, kind: input, shape index: {}]
  %s18 = inlined_call_operand.vmem [shape: f32[34,32], index: 18, kind: output, shape index: {}]
  %s19 = sld [smem:[#allocation0]]
  $region109: #{beit_forward.1} parent=0
    _
  %s21 = ssub.s32 1, %s19
  %s22 = scalar_select 0, %s21, %s19
  loop: start=0, step=1, limit=4
  $region2: #{beit_forward.1} parent=0 // loop_pre_header
    _
  $region3: #{beit_forward.1} parent=0 // loop_header
    %s24 = sphi 0, %s28
    %p25 = scmp.ge.s32.totalorder %s24, 4
    %s32 = sphi 0, %s32
    %s34 = sphi 0, %s32
    %s35 = sphi 0, %s34
    %s49 = sphi 0, %s35
    %s53 = sphi 0, %s53
    %s55 = sphi 0, %s53
    %s56 = sphi 0, %s55
    %s70 = sphi 0, %s56
    %s74 = sphi 0, %s74
    %s76 = sphi 0, %s74
    %s77 = sphi 0, %s76
    %s91 = sphi 0, %s77
    %s97 = sphi 0, %s99
    %s100 = sphi 0, %s97
    %s101 = sphi 0, %s100
    %s117 = sphi 0, %s101
    %s123 = sphi 0, %s125
    %s126 = sphi 0, %s123
    %s127 = sphi 0, %s126
    %s143 = sphi 0, %s127
    %s149 = sphi 0, %s151
    %s152 = sphi 0, %s149
    %s153 = sphi 0, %s152
    %s169 = sphi 0, %s153
    %s175 = sphi 0, %s177
    %s178 = sphi 0, %s175
    %s179 = sphi 0, %s178
    %s195 = sphi 0, %s179
    %s201 = sphi 0, %s203
    %s204 = sphi 0, %s201
    %s205 = sphi 0, %s204
    %s221 = sphi 0, %s205
    %s227 = sphi 0, %s229
    %s230 = sphi 0, %s227
    %s231 = sphi 0, %s230
    %s247 = sphi 0, %s231
    %s253 = sphi 0, %s255
    %s256 = sphi 0, %s253
    %s257 = sphi 0, %s256
    %s273 = sphi 0, %s257
    %s279 = sphi 0, %s281
    %s282 = sphi 0, %s279
    %s283 = sphi 0, %s282
    %s299 = sphi 0, %s283
    %s305 = sphi 0, %s307
    %s308 = sphi 0, %s305
    %s309 = sphi 0, %s308
    %s325 = sphi 0, %s309
    %s331 = sphi 0, %s333
    %s334 = sphi 0, %s331
    %s335 = sphi 0, %s334
    %s351 = sphi 0, %s335
    %s357 = sphi 0, %s359
    %s360 = sphi 0, %s357
    %s361 = sphi 0, %s360
    %s377 = sphi 0, %s361
    %s383 = sphi 0, %s385
    %s386 = sphi 0, %s383
    %s387 = sphi 0, %s386
    %s403 = sphi 0, %s387
    %s409 = sphi 0, %s411
    %s412 = sphi 0, %s409
    %s413 = sphi 0, %s412
    %s429 = sphi 0, %s413
    %s435 = sphi 0, %s437
    %s438 = sphi 0, %s435
    %s439 = sphi 0, %s438
    %s455 = sphi 0, %s439
    %s461 = sphi 0, %s463
    %s464 = sphi 0, %s461
    %s465 = sphi 0, %s464
    %s481 = sphi 0, %s465
    %s485 = sphi 0, %s485
    %s487 = sphi 0, %s485
    %s488 = sphi 0, %s487
    %s502 = sphi 0, %s488
  $region4: #{beit_forward.1} parent=0 // loop_header_branch
    %27 = sbr.rel (%p25) target = $region8
  $region5: #{beit_forward.1} parent=0 // loop_body
    %s29 = ssub.s32 %s24, 1
    %s30 = ssub.s32 %s24, 2
    %s31 = sadd.s32 %s24, 1
    %s33 = sadd.s32 %s32, 1
    %p36 = scmp.eq.s32.totalorder %s24, 1
    %p37 = scmp.ne.s32.totalorder %s32, %s34
    %p38 = scmp.eq.s32.totalorder %s24, 0
    %p39 = por %p37, %p38
    %p40 = scmp.ne.s32.totalorder %s32, %s34
    %p41 = scmp.eq.s32.totalorder %s29, 1
    %p42 = por %p40, %p41
    %p43 = scmp.ne.s32.totalorder %s34, %s35
    %p44 = scmp.eq.s32.totalorder %s29, 0
    %p45 = por %p43, %p44
    %p46 = scmp.ne.s32.totalorder %s34, %s35
    %p47 = scmp.eq.s32.totalorder %s30, 1
    %p48 = por %p46, %p47
    %p50 = scmp.ne.s32.totalorder %s35, %s49
    %p51 = scmp.eq.s32.totalorder %s30, 0
    %p52 = por %p50, %p51
    %s54 = sadd.s32 %s53, 1
    %p57 = scmp.eq.s32.totalorder %s24, 1
    %p58 = scmp.ne.s32.totalorder %s53, %s55
    %p59 = scmp.eq.s32.totalorder %s24, 0
    %p60 = por %p58, %p59
    %p61 = scmp.ne.s32.totalorder %s53, %s55
    %p62 = scmp.eq.s32.totalorder %s29, 1
    %p63 = por %p61, %p62
    %p64 = scmp.ne.s32.totalorder %s55, %s56
    %p65 = scmp.eq.s32.totalorder %s29, 0
    %p66 = por %p64, %p65
    %p67 = scmp.ne.s32.totalorder %s55, %s56
    %p68 = scmp.eq.s32.totalorder %s30, 1
    %p69 = por %p67, %p68
    %p71 = scmp.ne.s32.totalorder %s56, %s70
    %p72 = scmp.eq.s32.totalorder %s30, 0
    %p73 = por %p71, %p72
    %s75 = sadd.s32 %s74, 1
    %p78 = scmp.eq.s32.totalorder %s24, 1
    %p79 = scmp.ne.s32.totalorder %s74, %s76
    %p80 = scmp.eq.s32.totalorder %s24, 0
    %p81 = por %p79, %p80
    %p82 = scmp.ne.s32.totalorder %s74, %s76
    %p83 = scmp.eq.s32.totalorder %s29, 1
    %p84 = por %p82, %p83
    %p85 = scmp.ne.s32.totalorder %s76, %s77
    %p86 = scmp.eq.s32.totalorder %s29, 0
    %p87 = por %p85, %p86
    %p88 = scmp.ne.s32.totalorder %s76, %s77
    %p89 = scmp.eq.s32.totalorder %s30, 1
    %p90 = por %p88, %p89
    %p92 = scmp.ne.s32.totalorder %s77, %s91
    %p93 = scmp.eq.s32.totalorder %s30, 0
    %p94 = por %p92, %p93
    %s95 = ssub.s32 %s24, %s31
    %p96 = scmp.eq.s32.totalorder %s95, 0
    %s98 = sadd.s32 %s97, 1
    %s99 = scalar_select %p96, %s97, %s98
    %p102 = pneg %p96
    %p103 = scmp.eq.s32.totalorder %s24, 1
    %p104 = por %p102, %p103
    %p105 = scmp.ne.s32.totalorder %s97, %s100
    %p106 = scmp.eq.s32.totalorder %s24, 0
    %p107 = por %p105, %p106
    %p108 = scmp.ne.s32.totalorder %s97, %s100
    %p109 = scmp.eq.s32.totalorder %s29, 1
    %p110 = por %p108, %p109
    %p111 = scmp.ne.s32.totalorder %s100, %s101
    %p112 = scmp.eq.s32.totalorder %s29, 0
    %p113 = por %p111, %p112
    %p114 = scmp.ne.s32.totalorder %s100, %s101
    %p115 = scmp.eq.s32.totalorder %s30, 1
    %p116 = por %p114, %p115
    %p118 = scmp.ne.s32.totalorder %s101, %s117
    %p119 = scmp.eq.s32.totalorder %s30, 0
    %p120 = por %p118, %p119
    %s121 = ssub.s32 %s24, %s31
    %p122 = scmp.eq.s32.totalorder %s121, 0
    %s124 = sadd.s32 %s123, 1
    %s125 = scalar_select %p122, %s123, %s124
    %p128 = pneg %p122
    %p129 = scmp.eq.s32.totalorder %s24, 1
    %p130 = por %p128, %p129
    %p131 = scmp.ne.s32.totalorder %s123, %s126
    %p132 = scmp.eq.s32.totalorder %s24, 0
    %p133 = por %p131, %p132
    %p134 = scmp.ne.s32.totalorder %s123, %s126
    %p135 = scmp.eq.s32.totalorder %s29, 1
    %p136 = por %p134, %p135
    %p137 = scmp.ne.s32.totalorder %s126, %s127
    %p138 = scmp.eq.s32.totalorder %s29, 0
    %p139 = por %p137, %p138
    %p140 = scmp.ne.s32.totalorder %s126, %s127
    %p141 = scmp.eq.s32.totalorder %s30, 1
    %p142 = por %p140, %p141
    %p144 = scmp.ne.s32.totalorder %s127, %s143
    %p145 = scmp.eq.s32.totalorder %s30, 0
    %p146 = por %p144, %p145
    %s147 = ssub.s32 %s24, %s31
    %p148 = scmp.eq.s32.totalorder %s147, 0
    %s150 = sadd.s32 %s149, 1
    %s151 = scalar_select %p148, %s149, %s150
    %p154 = pneg %p148
    %p155 = scmp.eq.s32.totalorder %s24, 1
    %p156 = por %p154, %p155
    %p157 = scmp.ne.s32.totalorder %s149, %s152
    %p158 = scmp.eq.s32.totalorder %s24, 0
    %p159 = por %p157, %p158
    %p160 = scmp.ne.s32.totalorder %s149, %s152
    %p161 = scmp.eq.s32.totalorder %s29, 1
    %p162 = por %p160, %p161
    %p163 = scmp.ne.s32.totalorder %s152, %s153
    %p164 = scmp.eq.s32.totalorder %s29, 0
    %p165 = por %p163, %p164
    %p166 = scmp.ne.s32.totalorder %s152, %s153
    %p167 = scmp.eq.s32.totalorder %s30, 1
    %p168 = por %p166, %p167
    %p170 = scmp.ne.s32.totalorder %s153, %s169
    %p171 = scmp.eq.s32.totalorder %s30, 0
    %p172 = por %p170, %p171
    %s173 = ssub.s32 %s24, %s31
    %p174 = scmp.eq.s32.totalorder %s173, 0
    %s176 = sadd.s32 %s175, 1
    %s177 = scalar_select %p174, %s175, %s176
    %p180 = pneg %p174
    %p181 = scmp.eq.s32.totalorder %s24, 1
    %p182 = por %p180, %p181
    %p183 = scmp.ne.s32.totalorder %s175, %s178
    %p184 = scmp.eq.s32.totalorder %s24, 0
    %p185 = por %p183, %p184
    %p186 = scmp.ne.s32.totalorder %s175, %s178
    %p187 = scmp.eq.s32.totalorder %s29, 1
    %p188 = por %p186, %p187
    %p189 = scmp.ne.s32.totalorder %s178, %s179
    %p190 = scmp.eq.s32.totalorder %s29, 0
    %p191 = por %p189, %p190
    %p192 = scmp.ne.s32.totalorder %s178, %s179
    %p193 = scmp.eq.s32.totalorder %s30, 1
    %p194 = por %p192, %p193
    %p196 = scmp.ne.s32.totalorder %s179, %s195
    %p197 = scmp.eq.s32.totalorder %s30, 0
    %p198 = por %p196, %p197
    %s199 = ssub.s32 %s24, %s31
    %p200 = scmp.eq.s32.totalorder %s199, 0
    %s202 = sadd.s32 %s201, 1
    %s203 = scalar_select %p200, %s201, %s202
    %p206 = pneg %p200
    %p207 = scmp.eq.s32.totalorder %s24, 1
    %p208 = por %p206, %p207
    %p209 = scmp.ne.s32.totalorder %s201, %s204
    %p210 = scmp.eq.s32.totalorder %s24, 0
    %p211 = por %p209, %p210
    %p212 = scmp.ne.s32.totalorder %s201, %s204
    %p213 = scmp.eq.s32.totalorder %s29, 1
    %p214 = por %p212, %p213
    %p215 = scmp.ne.s32.totalorder %s204, %s205
    %p216 = scmp.eq.s32.totalorder %s29, 0
    %p217 = por %p215, %p216
    %p218 = scmp.ne.s32.totalorder %s204, %s205
    %p219 = scmp.eq.s32.totalorder %s30, 1
    %p220 = por %p218, %p219
    %p222 = scmp.ne.s32.totalorder %s205, %s221
    %p223 = scmp.eq.s32.totalorder %s30, 0
    %p224 = por %p222, %p223
    %s225 = ssub.s32 %s24, %s31
    %p226 = scmp.eq.s32.totalorder %s225, 0
    %s228 = sadd.s32 %s227, 1
    %s229 = scalar_select %p226, %s227, %s228
    %p232 = pneg %p226
    %p233 = scmp.eq.s32.totalorder %s24, 1
    %p234 = por %p232, %p233
    %p235 = scmp.ne.s32.totalorder %s227, %s230
    %p236 = scmp.eq.s32.totalorder %s24, 0
    %p237 = por %p235, %p236
    %p238 = scmp.ne.s32.totalorder %s227, %s230
    %p239 = scmp.eq.s32.totalorder %s29, 1
    %p240 = por %p238, %p239
    %p241 = scmp.ne.s32.totalorder %s230, %s231
    %p242 = scmp.eq.s32.totalorder %s29, 0
    %p243 = por %p241, %p242
    %p244 = scmp.ne.s32.totalorder %s230, %s231
    %p245 = scmp.eq.s32.totalorder %s30, 1
    %p246 = por %p244, %p245
    %p248 = scmp.ne.s32.totalorder %s231, %s247
    %p249 = scmp.eq.s32.totalorder %s30, 0
    %p250 = por %p248, %p249
    %s251 = ssub.s32 %s24, %s31
    %p252 = scmp.eq.s32.totalorder %s251, 0
    %s254 = sadd.s32 %s253, 1
    %s255 = scalar_select %p252, %s253, %s254
    %p258 = pneg %p252
    %p259 = scmp.eq.s32.totalorder %s24, 1
    %p260 = por %p258, %p259
    %p261 = scmp.ne.s32.totalorder %s253, %s256
    %p262 = scmp.eq.s32.totalorder %s24, 0
    %p263 = por %p261, %p262
    %p264 = scmp.ne.s32.totalorder %s253, %s256
    %p265 = scmp.eq.s32.totalorder %s29, 1
    %p266 = por %p264, %p265
    %p267 = scmp.ne.s32.totalorder %s256, %s257
    %p268 = scmp.eq.s32.totalorder %s29, 0
    %p269 = por %p267, %p268
    %p270 = scmp.ne.s32.totalorder %s256, %s257
    %p271 = scmp.eq.s32.totalorder %s30, 1
    %p272 = por %p270, %p271
    %p274 = scmp.ne.s32.totalorder %s257, %s273
    %p275 = scmp.eq.s32.totalorder %s30, 0
    %p276 = por %p274, %p275
    %s277 = ssub.s32 %s24, %s31
    %p278 = scmp.eq.s32.totalorder %s277, 0
    %s280 = sadd.s32 %s279, 1
    %s281 = scalar_select %p278, %s279, %s280
    %p284 = pneg %p278
    %p285 = scmp.eq.s32.totalorder %s24, 1
    %p286 = por %p284, %p285
    %p287 = scmp.ne.s32.totalorder %s279, %s282
    %p288 = scmp.eq.s32.totalorder %s24, 0
    %p289 = por %p287, %p288
    %p290 = scmp.ne.s32.totalorder %s279, %s282
    %p291 = scmp.eq.s32.totalorder %s29, 1
    %p292 = por %p290, %p291
    %p293 = scmp.ne.s32.totalorder %s282, %s283
    %p294 = scmp.eq.s32.totalorder %s29, 0
    %p295 = por %p293, %p294
    %p296 = scmp.ne.s32.totalorder %s282, %s283
    %p297 = scmp.eq.s32.totalorder %s30, 1
    %p298 = por %p296, %p297
    %p300 = scmp.ne.s32.totalorder %s283, %s299
    %p301 = scmp.eq.s32.totalorder %s30, 0
    %p302 = por %p300, %p301
    %s303 = ssub.s32 %s24, %s31
    %p304 = scmp.eq.s32.totalorder %s303, 0
    %s306 = sadd.s32 %s305, 1
    %s307 = scalar_select %p304, %s305, %s306
    %p310 = pneg %p304
    %p311 = scmp.eq.s32.totalorder %s24, 1
    %p312 = por %p310, %p311
    %p313 = scmp.ne.s32.totalorder %s305, %s308
    %p314 = scmp.eq.s32.totalorder %s24, 0
    %p315 = por %p313, %p314
    %p316 = scmp.ne.s32.totalorder %s305, %s308
    %p317 = scmp.eq.s32.totalorder %s29, 1
    %p318 = por %p316, %p317
    %p319 = scmp.ne.s32.totalorder %s308, %s309
    %p320 = scmp.eq.s32.totalorder %s29, 0
    %p321 = por %p319, %p320
    %p322 = scmp.ne.s32.totalorder %s308, %s309
    %p323 = scmp.eq.s32.totalorder %s30, 1
    %p324 = por %p322, %p323
    %p326 = scmp.ne.s32.totalorder %s309, %s325
    %p327 = scmp.eq.s32.totalorder %s30, 0
    %p328 = por %p326, %p327
    %s329 = ssub.s32 %s24, %s31
    %p330 = scmp.eq.s32.totalorder %s329, 0
    %s332 = sadd.s32 %s331, 1
    %s333 = scalar_select %p330, %s331, %s332
    %p336 = pneg %p330
    %p337 = scmp.eq.s32.totalorder %s24, 1
    %p338 = por %p336, %p337
    %p339 = scmp.ne.s32.totalorder %s331, %s334
    %p340 = scmp.eq.s32.totalorder %s24, 0
    %p341 = por %p339, %p340
    %p342 = scmp.ne.s32.totalorder %s331, %s334
    %p343 = scmp.eq.s32.totalorder %s29, 1
    %p344 = por %p342, %p343
    %p345 = scmp.ne.s32.totalorder %s334, %s335
    %p346 = scmp.eq.s32.totalorder %s29, 0
    %p347 = por %p345, %p346
    %p348 = scmp.ne.s32.totalorder %s334, %s335
    %p349 = scmp.eq.s32.totalorder %s30, 1
    %p350 = por %p348, %p349
    %p352 = scmp.ne.s32.totalorder %s335, %s351
    %p353 = scmp.eq.s32.totalorder %s30, 0
    %p354 = por %p352, %p353
    %s355 = ssub.s32 %s24, %s31
    %p356 = scmp.eq.s32.totalorder %s355, 0
    %s358 = sadd.s32 %s357, 1
    %s359 = scalar_select %p356, %s357, %s358
    %p362 = pneg %p356
    %p363 = scmp.eq.s32.totalorder %s24, 1
    %p364 = por %p362, %p363
    %p365 = scmp.ne.s32.totalorder %s357, %s360
    %p366 = scmp.eq.s32.totalorder %s24, 0
    %p367 = por %p365, %p366
    %p368 = scmp.ne.s32.totalorder %s357, %s360
    %p369 = scmp.eq.s32.totalorder %s29, 1
    %p370 = por %p368, %p369
    %p371 = scmp.ne.s32.totalorder %s360, %s361
    %p372 = scmp.eq.s32.totalorder %s29, 0
    %p373 = por %p371, %p372
    %p374 = scmp.ne.s32.totalorder %s360, %s361
    %p375 = scmp.eq.s32.totalorder %s30, 1
    %p376 = por %p374, %p375
    %p378 = scmp.ne.s32.totalorder %s361, %s377
    %p379 = scmp.eq.s32.totalorder %s30, 0
    %p380 = por %p378, %p379
    %s381 = ssub.s32 %s24, %s31
    %p382 = scmp.eq.s32.totalorder %s381, 0
    %s384 = sadd.s32 %s383, 1
    %s385 = scalar_select %p382, %s383, %s384
    %p388 = pneg %p382
    %p389 = scmp.eq.s32.totalorder %s24, 1
    %p390 = por %p388, %p389
    %p391 = scmp.ne.s32.totalorder %s383, %s386
    %p392 = scmp.eq.s32.totalorder %s24, 0
    %p393 = por %p391, %p392
    %p394 = scmp.ne.s32.totalorder %s383, %s386
    %p395 = scmp.eq.s32.totalorder %s29, 1
    %p396 = por %p394, %p395
    %p397 = scmp.ne.s32.totalorder %s386, %s387
    %p398 = scmp.eq.s32.totalorder %s29, 0
    %p399 = por %p397, %p398
    %p400 = scmp.ne.s32.totalorder %s386, %s387
    %p401 = scmp.eq.s32.totalorder %s30, 1
    %p402 = por %p400, %p401
    %p404 = scmp.ne.s32.totalorder %s387, %s403
    %p405 = scmp.eq.s32.totalorder %s30, 0
    %p406 = por %p404, %p405
    %s407 = ssub.s32 %s24, %s31
    %p408 = scmp.eq.s32.totalorder %s407, 0
    %s410 = sadd.s32 %s409, 1
    %s411 = scalar_select %p408, %s409, %s410
    %p414 = pneg %p408
    %p415 = scmp.eq.s32.totalorder %s24, 1
    %p416 = por %p414, %p415
    %p417 = scmp.ne.s32.totalorder %s409, %s412
    %p418 = scmp.eq.s32.totalorder %s24, 0
    %p419 = por %p417, %p418
    %p420 = scmp.ne.s32.totalorder %s409, %s412
    %p421 = scmp.eq.s32.totalorder %s29, 1
    %p422 = por %p420, %p421
    %p423 = scmp.ne.s32.totalorder %s412, %s413
    %p424 = scmp.eq.s32.totalorder %s29, 0
    %p425 = por %p423, %p424
    %p426 = scmp.ne.s32.totalorder %s412, %s413
    %p427 = scmp.eq.s32.totalorder %s30, 1
    %p428 = por %p426, %p427
    %p430 = scmp.ne.s32.totalorder %s413, %s429
    %p431 = scmp.eq.s32.totalorder %s30, 0
    %p432 = por %p430, %p431
    %s433 = ssub.s32 %s24, %s31
    %p434 = scmp.eq.s32.totalorder %s433, 0
    %s436 = sadd.s32 %s435, 1
    %s437 = scalar_select %p434, %s435, %s436
    %p440 = pneg %p434
    %p441 = scmp.eq.s32.totalorder %s24, 1
    %p442 = por %p440, %p441
    %p443 = scmp.ne.s32.totalorder %s435, %s438
    %p444 = scmp.eq.s32.totalorder %s24, 0
    %p445 = por %p443, %p444
    %p446 = scmp.ne.s32.totalorder %s435, %s438
    %p447 = scmp.eq.s32.totalorder %s29, 1
    %p448 = por %p446, %p447
    %p449 = scmp.ne.s32.totalorder %s438, %s439
    %p450 = scmp.eq.s32.totalorder %s29, 0
    %p451 = por %p449, %p450
    %p452 = scmp.ne.s32.totalorder %s438, %s439
    %p453 = scmp.eq.s32.totalorder %s30, 1
    %p454 = por %p452, %p453
    %p456 = scmp.ne.s32.totalorder %s439, %s455
    %p457 = scmp.eq.s32.totalorder %s30, 0
    %p458 = por %p456, %p457
    %s459 = ssub.s32 %s24, %s31
    %p460 = scmp.eq.s32.totalorder %s459, 0
    %s462 = sadd.s32 %s461, 1
    %s463 = scalar_select %p460, %s461, %s462
    %p466 = pneg %p460
    %p467 = scmp.eq.s32.totalorder %s24, 1
    %p468 = por %p466, %p467
    %p469 = scmp.ne.s32.totalorder %s461, %s464
    %p470 = scmp.eq.s32.totalorder %s24, 0
    %p471 = por %p469, %p470
    %p472 = scmp.ne.s32.totalorder %s461, %s464
    %p473 = scmp.eq.s32.totalorder %s29, 1
    %p474 = por %p472, %p473
    %p475 = scmp.ne.s32.totalorder %s464, %s465
    %p476 = scmp.eq.s32.totalorder %s29, 0
    %p477 = por %p475, %p476
    %p478 = scmp.ne.s32.totalorder %s464, %s465
    %p479 = scmp.eq.s32.totalorder %s30, 1
    %p480 = por %p478, %p479
    %p482 = scmp.ne.s32.totalorder %s465, %s481
    %p483 = scmp.eq.s32.totalorder %s30, 0
    %p484 = por %p482, %p483
    %s486 = sadd.s32 %s485, 1
    %p489 = scmp.eq.s32.totalorder %s24, 1
    %p490 = scmp.ne.s32.totalorder %s485, %s487
    %p491 = scmp.eq.s32.totalorder %s24, 0
    %p492 = por %p490, %p491
    %p493 = scmp.ne.s32.totalorder %s485, %s487
    %p494 = scmp.eq.s32.totalorder %s29, 1
    %p495 = por %p493, %p494
    %p496 = scmp.ne.s32.totalorder %s487, %s488
    %p497 = scmp.eq.s32.totalorder %s29, 0
    %p498 = por %p496, %p497
    %p499 = scmp.ne.s32.totalorder %s487, %s488
    %p500 = scmp.eq.s32.totalorder %s30, 1
    %p501 = por %p499, %p500
    %p503 = scmp.ne.s32.totalorder %s488, %s502
    %p504 = scmp.eq.s32.totalorder %s30, 0
    %p505 = por %p503, %p504
    %p506 = scmp.le.s32.totalorder 1, %s24
    %p507 = scmp.lt.s32.totalorder %s24, 3
    %p508 = pnand %p506, %p507
    %p509 = pneg %p508
    // Predicated region
    $region9: #{beit_forward.1} parent=5 // pred_check
      _
    $region10: #{beit_forward.1} parent=5 // pred_check_branch
      %511 = sbr.rel (%p508) target = $region12
    $region11: #{beit_forward.1} parent=5 // pred_region
      %s512 = ssub.s32 %s24, 1
      // Predicated region
      $region13: #{beit_forward.1} parent=11 // pred_check
        %p513 = pneg %p45
      $region14: #{beit_forward.1} parent=11 // pred_check_branch
        %515 = sbr.rel (%p513) target = $region16
      $region15: #{beit_forward.1} parent=11 // pred_region
        _
      $region16: #{beit_forward.1} parent=11 // pred_fallthru
        _
      // Predicated region
      $region17: #{beit_forward.1} parent=11 // pred_check
        %p516 = pneg %p66
      $region18: #{beit_forward.1} parent=11 // pred_check_branch
        %518 = sbr.rel (%p516) target = $region20
      $region19: #{beit_forward.1} parent=11 // pred_region
        _
      $region20: #{beit_forward.1} parent=11 // pred_fallthru
        _
      // Predicated region
      $region21: #{beit_forward.1} parent=11 // pred_check
        %p519 = pneg %p87
      $region22: #{beit_forward.1} parent=11 // pred_check_branch
        %521 = sbr.rel (%p519) target = $region24
      $region23: #{beit_forward.1} parent=11 // pred_region
        _
      $region24: #{beit_forward.1} parent=11 // pred_fallthru
        _
    $region12: #{beit_forward.1} parent=5 // pred_fallthru
      _
    %p522 = scmp.lt.s32.totalorder %s24, 2
    // Predicated region
    $region25: #{beit_forward.1} parent=5 // pred_check
      %p523 = pneg %p522
    $region26: #{beit_forward.1} parent=5 // pred_check_branch
      %525 = sbr.rel (%p523) target = $region28
    $region27: #{beit_forward.1} parent=5 // pred_region
      // Predicated region
      $region29: #{beit_forward.1} parent=27 // pred_check
        %p526 = pneg %p107
      $region30: #{beit_forward.1} parent=27 // pred_check_branch
        %528 = sbr.rel (%p526) target = $region32
      $region31: #{beit_forward.1} parent=27 // pred_region
        %p529 = scmp.lt.s32.totalorder %s24, 1
        %s530 = scalar_select %p529, %s24, 1
        %s531 = scalar_lea.vmem %s3, %s530
      $region32: #{beit_forward.1} parent=27 // pred_fallthru
        _
      // Predicated region
      $region33: #{beit_forward.1} parent=27 // pred_check
        %p532 = pneg %p133
      $region34: #{beit_forward.1} parent=27 // pred_check_branch
        %534 = sbr.rel (%p532) target = $region36
      $region35: #{beit_forward.1} parent=27 // pred_region
        %p535 = scmp.lt.s32.totalorder %s24, 1
        %s536 = scalar_select %p535, %s24, 1
        %s537 = scalar_lea.vmem %s4, %s536
      $region36: #{beit_forward.1} parent=27 // pred_fallthru
        _
      // Predicated region
      $region37: #{beit_forward.1} parent=27 // pred_check
        %p538 = pneg %p159
      $region38: #{beit_forward.1} parent=27 // pred_check_branch
        %540 = sbr.rel (%p538) target = $region40
      $region39: #{beit_forward.1} parent=27 // pred_region
        %p541 = scmp.lt.s32.totalorder %s24, 1
        %s542 = scalar_select %p541, %s24, 1
        %s543 = smul.addr %s542, 4
        %s544 = smul.addr %s543, 8
        %s545 = scalar_lea.vmem %s5, %s544
      $region40: #{beit_forward.1} parent=27 // pred_fallthru
        _
      // Predicated region
      $region41: #{beit_forward.1} parent=27 // pred_check
        %p546 = pneg %p185
      $region42: #{beit_forward.1} parent=27 // pred_check_branch
        %548 = sbr.rel (%p546) target = $region44
      $region43: #{beit_forward.1} parent=27 // pred_region
        %p549 = scmp.lt.s32.totalorder %s24, 1
        %s550 = scalar_select %p549, %s24, 1
        %s551 = scalar_lea.vmem %s6, %s550
      $region44: #{beit_forward.1} parent=27 // pred_fallthru
        _
      // Predicated region
      $region45: #{beit_forward.1} parent=27 // pred_check
        %p552 = pneg %p211
      $region46: #{beit_forward.1} parent=27 // pred_check_branch
        %554 = sbr.rel (%p552) target = $region48
      $region47: #{beit_forward.1} parent=27 // pred_region
        %p555 = scmp.lt.s32.totalorder %s24, 1
        %s556 = scalar_select %p555, %s24, 1
        %s557 = smul.addr %s556, 12
        %s558 = smul.addr %s557, 8
        %s559 = scalar_lea.vmem %s7, %s558
      $region48: #{beit_forward.1} parent=27 // pred_fallthru
        _
      // Predicated region
      $region49: #{beit_forward.1} parent=27 // pred_check
        %p560 = pneg %p237
      $region50: #{beit_forward.1} parent=27 // pred_check_branch
        %562 = sbr.rel (%p560) target = $region52
      $region51: #{beit_forward.1} parent=27 // pred_region
        %p563 = scmp.lt.s32.totalorder %s24, 1
        %s564 = scalar_select %p563, %s24, 1
        %s565 = smul.addr %s564, 4
        %s566 = smul.addr %s565, 8
        %s567 = scalar_lea.vmem %s8, %s566
      $region52: #{beit_forward.1} parent=27 // pred_fallthru
        _
      // Predicated region
      $region53: #{beit_forward.1} parent=27 // pred_check
        %p568 = pneg %p263
      $region54: #{beit_forward.1} parent=27 // pred_check_branch
        %570 = sbr.rel (%p568) target = $region56
      $region55: #{beit_forward.1} parent=27 // pred_region
        %p571 = scmp.lt.s32.totalorder %s24, 1
        %s572 = scalar_select %p571, %s24, 1
        %s573 = scalar_lea.vmem %s9, %s572
      $region56: #{beit_forward.1} parent=27 // pred_fallthru
        _
      // Predicated region
      $region57: #{beit_forward.1} parent=27 // pred_check
        %p574 = pneg %p289
      $region58: #{beit_forward.1} parent=27 // pred_check_branch
        %576 = sbr.rel (%p574) target = $region60
      $region59: #{beit_forward.1} parent=27 // pred_region
        %p577 = scmp.lt.s32.totalorder %s24, 1
        %s578 = scalar_select %p577, %s24, 1
        %s579 = scalar_lea.vmem %s10, %s578
      $region60: #{beit_forward.1} parent=27 // pred_fallthru
        _
      // Predicated region
      $region61: #{beit_forward.1} parent=27 // pred_check
        %p580 = pneg %p315
      $region62: #{beit_forward.1} parent=27 // pred_check_branch
        %582 = sbr.rel (%p580) target = $region64
      $region63: #{beit_forward.1} parent=27 // pred_region
        %p583 = scmp.lt.s32.totalorder %s24, 1
        %s584 = scalar_select %p583, %s24, 1
        %s585 = scalar_lea.vmem %s11, %s584
      $region64: #{beit_forward.1} parent=27 // pred_fallthru
        _
      // Predicated region
      $region65: #{beit_forward.1} parent=27 // pred_check
        %p586 = pneg %p341
      $region66: #{beit_forward.1} parent=27 // pred_check_branch
        %588 = sbr.rel (%p586) target = $region68
      $region67: #{beit_forward.1} parent=27 // pred_region
        %p589 = scmp.lt.s32.totalorder %s24, 1
        %s590 = scalar_select %p589, %s24, 1
        %s591 = scalar_lea.vmem %s12, %s590
      $region68: #{beit_forward.1} parent=27 // pred_fallthru
        _
      // Predicated region
      $region69: #{beit_forward.1} parent=27 // pred_check
        %p592 = pneg %p367
      $region70: #{beit_forward.1} parent=27 // pred_check_branch
        %594 = sbr.rel (%p592) target = $region72
      $region71: #{beit_forward.1} parent=27 // pred_region
        %p595 = scmp.lt.s32.totalorder %s24, 1
        %s596 = scalar_select %p595, %s24, 1
        %s597 = smul.addr %s596, 4
        %s598 = smul.addr %s597, 8
        %s599 = scalar_lea.vmem %s13, %s598
      $region72: #{beit_forward.1} parent=27 // pred_fallthru
        _
      // Predicated region
      $region73: #{beit_forward.1} parent=27 // pred_check
        %p600 = pneg %p393
      $region74: #{beit_forward.1} parent=27 // pred_check_branch
        %602 = sbr.rel (%p600) target = $region76
      $region75: #{beit_forward.1} parent=27 // pred_region
        %p603 = scmp.lt.s32.totalorder %s24, 1
        %s604 = scalar_select %p603, %s24, 1
        %s605 = scalar_lea.vmem %s14, %s604
      $region76: #{beit_forward.1} parent=27 // pred_fallthru
        _
      // Predicated region
      $region77: #{beit_forward.1} parent=27 // pred_check
        %p606 = pneg %p419
      $region78: #{beit_forward.1} parent=27 // pred_check_branch
        %608 = sbr.rel (%p606) target = $region80
      $region79: #{beit_forward.1} parent=27 // pred_region
        %p609 = scmp.lt.s32.totalorder %s24, 1
        %s610 = scalar_select %p609, %s24, 1
        %s611 = smul.addr %s610, 16
        %s612 = smul.addr %s611, 8
        %s613 = scalar_lea.vmem %s15, %s612
      $region80: #{beit_forward.1} parent=27 // pred_fallthru
        _
      // Predicated region
      $region81: #{beit_forward.1} parent=27 // pred_check
        %p614 = pneg %p445
      $region82: #{beit_forward.1} parent=27 // pred_check_branch
        %616 = sbr.rel (%p614) target = $region84
      $region83: #{beit_forward.1} parent=27 // pred_region
        %p617 = scmp.lt.s32.totalorder %s24, 1
        %s618 = scalar_select %p617, %s24, 1
        %s619 = scalar_lea.vmem %s16, %s618
      $region84: #{beit_forward.1} parent=27 // pred_fallthru
        _
      // Predicated region
      $region85: #{beit_forward.1} parent=27 // pred_check
        %p620 = pneg %p471
      $region86: #{beit_forward.1} parent=27 // pred_check_branch
        %622 = sbr.rel (%p620) target = $region88
      $region87: #{beit_forward.1} parent=27 // pred_region
        %p623 = scmp.lt.s32.totalorder %s24, 1
        %s624 = scalar_select %p623, %s24, 1
        %s625 = scalar_lea.vmem %s17, %s624
      $region88: #{beit_forward.1} parent=27 // pred_fallthru
        _
    $region28: #{beit_forward.1} parent=5 // pred_fallthru
      _
    %p626 = scmp.le.s32.totalorder 1, %s24
    %p627 = scmp.lt.s32.totalorder %s24, 3
    %p628 = pnand %p626, %p627
    %p629 = pneg %p628
    // Predicated region
    $region89: #{beit_forward.1} parent=5 // pred_check
      _
    $region90: #{beit_forward.1} parent=5 // pred_check_branch
      %631 = sbr.rel (%p628) target = $region92
    $region91: #{beit_forward.1} parent=5 // pred_region
      %s632 = ssub.s32 %s24, 1
      %p633 = pneg %p45
      %p634 = pneg %p42
      %p635 = pneg %p66
      %p636 = pneg %p63
      %p637 = pneg %p87
      %p638 = pneg %p84
      %p639 = scmp.lt.s32.totalorder %s29, 1
      %s640 = scalar_select %p639, %s29, 1
      %s641 = scalar_lea.vmem %s3, %s640
      %p642 = pneg %p113
      %p643 = pneg %p110
      %p644 = scmp.lt.s32.totalorder %s29, 1
      %s645 = scalar_select %p644, %s29, 1
      %s646 = scalar_lea.vmem %s4, %s645
      %p647 = pneg %p139
      %p648 = pneg %p136
      %p649 = scmp.lt.s32.totalorder %s29, 1
      %s650 = scalar_select %p649, %s29, 1
      %s651 = smul.addr %s650, 4
      %s652 = smul.addr %s651, 8
      %s653 = scalar_lea.vmem %s5, %s652
      %p654 = pneg %p165
      %p655 = pneg %p162
      %p656 = scmp.lt.s32.totalorder %s29, 1
      %s657 = scalar_select %p656, %s29, 1
      %s658 = scalar_lea.vmem %s6, %s657
      %p659 = pneg %p191
      %p660 = pneg %p188
      %p661 = scmp.lt.s32.totalorder %s29, 1
      %s662 = scalar_select %p661, %s29, 1
      %s663 = smul.addr %s662, 12
      %s664 = smul.addr %s663, 8
      %s665 = scalar_lea.vmem %s7, %s664
      %p666 = pneg %p217
      %p667 = pneg %p214
      %p668 = scmp.lt.s32.totalorder %s29, 1
      %s669 = scalar_select %p668, %s29, 1
      %s670 = smul.addr %s669, 4
      %s671 = smul.addr %s670, 8
      %s672 = scalar_lea.vmem %s8, %s671
      %p673 = pneg %p243
      %p674 = pneg %p240
      %p675 = scmp.lt.s32.totalorder %s29, 1
      %s676 = scalar_select %p675, %s29, 1
      %s677 = scalar_lea.vmem %s9, %s676
      %p678 = pneg %p269
      %p679 = pneg %p266
      %p680 = scmp.lt.s32.totalorder %s29, 1
      %s681 = scalar_select %p680, %s29, 1
      %s682 = scalar_lea.vmem %s10, %s681
      %p683 = pneg %p295
      %p684 = pneg %p292
      %p685 = scmp.lt.s32.totalorder %s29, 1
      %s686 = scalar_select %p685, %s29, 1
      %s687 = scalar_lea.vmem %s11, %s686
      %p688 = pneg %p321
      %p689 = pneg %p318
      %p690 = scmp.lt.s32.totalorder %s29, 1
      %s691 = scalar_select %p690, %s29, 1
      %s692 = scalar_lea.vmem %s12, %s691
      %p693 = pneg %p347
      %p694 = pneg %p344
      %p695 = scmp.lt.s32.totalorder %s29, 1
      %s696 = scalar_select %p695, %s29, 1
      %s697 = smul.addr %s696, 4
      %s698 = smul.addr %s697, 8
      %s699 = scalar_lea.vmem %s13, %s698
      %p700 = pneg %p373
      %p701 = pneg %p370
      %p702 = scmp.lt.s32.totalorder %s29, 1
      %s703 = scalar_select %p702, %s29, 1
      %s704 = scalar_lea.vmem %s14, %s703
      %p705 = pneg %p399
      %p706 = pneg %p396
      %p707 = scmp.lt.s32.totalorder %s29, 1
      %s708 = scalar_select %p707, %s29, 1
      %s709 = smul.addr %s708, 16
      %s710 = smul.addr %s709, 8
      %s711 = scalar_lea.vmem %s15, %s710
      %p712 = pneg %p425
      %p713 = pneg %p422
      %p714 = scmp.lt.s32.totalorder %s29, 1
      %s715 = scalar_select %p714, %s29, 1
      %s716 = scalar_lea.vmem %s16, %s715
      %p717 = pneg %p451
      %p718 = pneg %p448
      %p719 = scmp.lt.s32.totalorder %s29, 1
      %s720 = scalar_select %p719, %s29, 1
      %s721 = scalar_lea.vmem %s17, %s720
      %p722 = pneg %p477
      %p723 = pneg %p474
      %p724 = pneg %p498
      %p725 = pneg %p495
      %p726 = scmp.lt.s32.totalorder %s29, 1
      %s727 = scalar_select %p726, %s29, 1
      %s728 = scalar_lea.vmem %s3, %s727
      %p729 = scmp.lt.s32.totalorder %s29, 1
      %s730 = scalar_select %p729, %s29, 1
      %s731 = scalar_lea.vmem %s4, %s730
      %p732 = scmp.lt.s32.totalorder %s29, 1
      %s733 = scalar_select %p732, %s29, 1
      %s734 = smul.addr %s733, 4
      %s735 = smul.addr %s734, 8
      %s736 = scalar_lea.vmem %s5, %s735
      %p737 = scmp.lt.s32.totalorder %s29, 1
      %s738 = scalar_select %p737, %s29, 1
      %s739 = scalar_lea.vmem %s6, %s738
      %p740 = scmp.lt.s32.totalorder %s29, 1
      %s741 = scalar_select %p740, %s29, 1
      %s742 = smul.addr %s741, 12
      %s743 = smul.addr %s742, 8
      %s744 = scalar_lea.vmem %s7, %s743
      %p745 = scmp.lt.s32.totalorder %s29, 1
      %s746 = scalar_select %p745, %s29, 1
      %s747 = smul.addr %s746, 4
      %s748 = smul.addr %s747, 8
      %s749 = scalar_lea.vmem %s8, %s748
      %p750 = scmp.lt.s32.totalorder %s29, 1
      %s751 = scalar_select %p750, %s29, 1
      %s752 = scalar_lea.vmem %s9, %s751
      %p753 = scmp.lt.s32.totalorder %s29, 1
      %s754 = scalar_select %p753, %s29, 1
      %s755 = scalar_lea.vmem %s10, %s754
      %p756 = scmp.lt.s32.totalorder %s29, 1
      %s757 = scalar_select %p756, %s29, 1
      %s758 = scalar_lea.vmem %s11, %s757
      %p759 = scmp.lt.s32.totalorder %s29, 1
      %s760 = scalar_select %p759, %s29, 1
      %s761 = scalar_lea.vmem %s12, %s760
      %p762 = scmp.lt.s32.totalorder %s29, 1
      %s763 = scalar_select %p762, %s29, 1
      %s764 = smul.addr %s763, 4
      %s765 = smul.addr %s764, 8
      %s766 = scalar_lea.vmem %s13, %s765
      %p767 = scmp.lt.s32.totalorder %s29, 1
      %s768 = scalar_select %p767, %s29, 1
      %s769 = scalar_lea.vmem %s14, %s768
      %p770 = scmp.lt.s32.totalorder %s29, 1
      %s771 = scalar_select %p770, %s29, 1
      %s772 = smul.addr %s771, 16
      %s773 = smul.addr %s772, 8
      %s774 = scalar_lea.vmem %s15, %s773
      %p775 = scmp.lt.s32.totalorder %s29, 1
      %s776 = scalar_select %p775, %s29, 1
      %s777 = scalar_lea.vmem %s16, %s776
      %p778 = scmp.lt.s32.totalorder %s29, 1
      %s779 = scalar_select %p778, %s29, 1
      %s780 = scalar_lea.vmem %s17, %s779
      %p781 = scmp.eq.s32.totalorder %s29, 0
      // Predicated region
      $region93: #{beit_forward.1} parent=91 // pred_check
        %p782 = pneg %p781
      $region94: #{beit_forward.1} parent=91 // pred_check_branch
        %784 = sbr.rel (%p782) target = $region96
      $region95: #{beit_forward.1} parent=91 // pred_region
        %v785 = vld [vmem:[%s0] sm:$0xff]
        %v786 = vld [vmem:[%s0 + $0x8] sm:$0xff]
        %v787 = vld [vmem:[%s0 + $0x10] sm:$0xff]
        %v788 = vld [vmem:[%s0 + $0x18] sm:$0xff]
        %v789 = vld [vmem:[%s0 + $0x20] sm:$0x3]
        %v790 = vld [vmem:[%s1] sm:$0xff]
        %v791 = vld [vmem:[%s1 + $0x8] sm:$0xff]
        %v792 = vld [vmem:[%s1 + $0x10] sm:$0xff]
        %v793 = vld [vmem:[%s1 + $0x18] sm:$0xff]
        %v794 = vld [vmem:[%s1 + $0x20] sm:$0xff]
        %v795 = vld [vmem:[%s1 + $0x28] sm:$0xff]
        %v796 = vld [vmem:[%s2] sm:$0xff]
        %v797 = vld [vmem:[%s2 + $0x8] sm:$0xff]
        %v798 = vld [vmem:[%s2 + $0x10] sm:$0xff]
        %v799 = vld [vmem:[%s2 + $0x18] sm:$0xff]
        %v800 = vld [vmem:[%s2 + $0x20] sm:$0x3]
        %vm801 = vcmask 392192
        %v803 = vsel %vm801, %v785, 0
        %v806 = vsel %vm801, %v786, 0
        %v809 = vsel %vm801, %v787, 0
        %v812 = vsel %vm801, %v788, 0
        %v815 = vsel %vm801, %v789, 0
        %817 = vmatprep.subr.mxu0 0.0
        %818 = vmatpush1.msra.mxu0 0.0
        %819 = vmatprep.subr.mxu0 0.0
        %820 = vmatpush1.msra.mxu0 0.0
        %821 = vmatprep.subr.mxu0 0.0
        %822 = vmatpush1.msra.mxu0 0.0
        %823 = vmatprep.subr.mxu0 0.0
        %824 = vmatpush1.msra.mxu0 0.0
        %825 = vmatprep.subr.mxu0 0.0
        %826 = vmatpush1.msra.mxu0 0.0
        %827 = vmatprep.subr.mxu0 0.0
        %828 = vmatpush1.msra.mxu0 0.0
        %829 = vmatprep.subr.mxu0 0.0
        %830 = vmatpush1.msra.mxu0 0.0
        %831 = vmatprep.subr.mxu0 0.0
        %832 = vmatpush1.msra.mxu0 0.0
        %833 = vmatprep.subr.mxu0 0.0
        %834 = vmatpush1.msra.mxu0 0.0
        %835 = vmatprep.subr.mxu0 0.0
        %836 = vmatpush1.msra.mxu0 0.0
        %837 = vmatprep.subr.mxu0 0.0
        %838 = vmatpush1.msra.mxu0 %v795
        %839 = vmatprep.subr.mxu0 0.0
        %840 = vmatpush1.msra.mxu0 %v794
        %841 = vmatprep.subr.mxu0 0.0
        %842 = vmatpush1.msra.mxu0 %v793
        %843 = vmatprep.subr.mxu0 0.0
        %844 = vmatpush1.msra.mxu0 %v792
        %845 = vmatprep.subr.mxu0 0.0
        %846 = vmatpush1.msra.mxu0 %v791
        %847 = vmatprep.subr.mxu0 0.0
        %848 = vmatpush1.msra.mxu0 %v790
        %849 = vmatprep.subr.mxu0 0.0
        %850 = vmatpush2.msra.mxu0 0.0
        %851 = vmatprep.subr.mxu0 0.0
        %852 = vmatpush2.msra.mxu0 0.0
        %853 = vmatprep.subr.mxu0 0.0
        %854 = vmatpush2.msra.mxu0 0.0
        %855 = vmatprep.subr.mxu0 0.0
        %856 = vmatpush2.msra.mxu0 0.0
        %857 = vmatprep.subr.mxu0 0.0
        %858 = vmatpush2.msra.mxu0 0.0
        %859 = vmatprep.subr.mxu0 0.0
        %860 = vmatpush2.msra.mxu0 0.0
        %861 = vmatprep.subr.mxu0 0.0
        %862 = vmatpush2.msra.mxu0 0.0
        %863 = vmatprep.subr.mxu0 0.0
        %864 = vmatpush2.msra.mxu0 0.0
        %865 = vmatprep.subr.mxu0 0.0
        %866 = vmatpush2.msra.mxu0 0.0
        %867 = vmatprep.subr.mxu0 0.0
        %868 = vmatpush2.msra.mxu0 0.0
        %869 = vmatprep.subr.mxu0 0.0
        %870 = vmatpush2.msra.mxu0 0.0
        %871 = vmatprep.subr.mxu0 0.0
        %872 = vmatpush2.msra.mxu0 0.0
        %873 = vmatprep.subr.mxu0 0.0
        %874 = vmatpush2.msra.mxu0 0.0
        %875 = vmatprep.subr.mxu0 0.0
        %876 = vmatpush2.msra.mxu0 0.0
        %877 = vmatprep.subr.mxu0 0.0
        %878 = vmatpush2.msra.mxu0 0.0
        %879 = vmatprep.subr.mxu0 0.0
        %880 = vmatpush2.msra.mxu0 0.0
        %881 = vmatprep.mubr.f32.mxu0 0.0
        %882 = vmatmul.mubr.f32.gmra.mxu0 %v803
        %v883 = vpop.f32.mrf.mxu0
        %v884 = vadd.f32 %v796, %v883
        %v885 = vpop.f32.mrf.mxu0
        %886 = vmatprep.mubr.f32.mxu0 0.0
        %887 = vmatmul.mubr.f32.gmra.mxu0 %v806
        %v888 = vpop.f32.mrf.mxu0
        %v889 = vadd.f32 %v797, %v888
        %v890 = vpop.f32.mrf.mxu0
        %891 = vmatprep.mubr.f32.mxu0 0.0
        %892 = vmatmul.mubr.f32.gmra.mxu0 %v809
        %v893 = vpop.f32.mrf.mxu0
        %v894 = vadd.f32 %v798, %v893
        %v895 = vpop.f32.mrf.mxu0
        %896 = vmatprep.mubr.f32.mxu0 0.0
        %897 = vmatmul.mubr.f32.gmra.mxu0 %v812
        %v898 = vpop.f32.mrf.mxu0
        %v899 = vadd.f32 %v799, %v898
        %v900 = vpop.f32.mrf.mxu0
        %901 = vmatprep.mubr.f32.mxu0 0.0
        %902 = vmatmul.mubr.f32.gmra.mxu0 %v815
        %v903 = vpop.f32.mrf.mxu0
        %v904 = vadd.f32 %v800, %v903
        %v905 = vpop.f32.mrf.mxu0
        %906 = vdwg.mxu0
        %vm907 = vcmask 261120
        %908 = vst.msk [vmem:[%s18] sm:$0xff] %vm907, %v884
        %909 = vst.msk [vmem:[%s18 + $0x8] sm:$0xff] %vm907, %v889
        %910 = vst.msk [vmem:[%s18 + $0x10] sm:$0xff] %vm907, %v894
        %911 = vst.msk [vmem:[%s18 + $0x18] sm:$0xff] %vm907, %v899
        %vm912 = vcmask 254976
        %913 = vst.msk [vmem:[%s18 + $0x20] sm:$0x3] %vm912, %v904
      $region96: #{beit_forward.1} parent=91 // pred_fallthru
        _
      %v914 = vld [vmem:[%s18] sm:$0xff]
      %v915 = vld [vmem:[%s18 + $0x8] sm:$0xff]
      %v916 = vld [vmem:[%s18 + $0x10] sm:$0xff]
      %v917 = vld [vmem:[%s18 + $0x18] sm:$0xff]
      %v918 = vld [vmem:[%s18 + $0x20] sm:$0x3]
      %vm919 = vcmask 261120
      %v920 = vsel %vm919, %v914, 0.0
      %921 = vadd.xlane.f32.xlu0 %v920
      %v922 = vpop.xlane.xlu0 %921
      %v923 = vsel %vm919, %v915, 0.0
      %924 = vadd.xlane.f32.xlu0 %v923
      %v925 = vpop.xlane.xlu0 %924
      %v926 = vsel %vm919, %v916, 0.0
      %927 = vadd.xlane.f32.xlu0 %v926
      %v928 = vpop.xlane.xlu0 %927
      %v929 = vsel %vm919, %v917, 0.0
      %930 = vadd.xlane.f32.xlu0 %v929
      %v931 = vpop.xlane.xlu0 %930
      %vm932 = vcmask 254976
      %v933 = vsel %vm932, %v918, 0.0
      %934 = vadd.xlane.f32.xlu0 %v933
      %v935 = vpop.xlane.xlu0 %934
      %v936 = vrcp.pop 32.0
      %v937 = vmul.f32 %v922, %v936
      %v938 = vmul.f32 %v925, %v936
      %v939 = vmul.f32 %v928, %v936
      %v940 = vmul.f32 %v931, %v936
      %v941 = vmul.f32 %v935, %v936
      %v942 = vsub.f32 %v914, %v937
      %v943 = vsub.f32 %v915, %v938
      %v944 = vsub.f32 %v916, %v939
      %v945 = vsub.f32 %v917, %v940
      %v946 = vsub.f32 %v918, %v941
      %v947 = vmul.f32 %v942, %v942
      %v948 = vmul.f32 %v943, %v943
      %v949 = vmul.f32 %v944, %v944
      %v950 = vmul.f32 %v945, %v945
      %v951 = vmul.f32 %v946, %v946
      %v952 = vsel %vm919, %v947, 0.0
      %953 = vadd.xlane.f32.xlu0 %v952
      %v954 = vpop.xlane.xlu0 %953
      %v955 = vsel %vm919, %v948, 0.0
      %956 = vadd.xlane.f32.xlu0 %v955
      %v957 = vpop.xlane.xlu0 %956
      %v958 = vsel %vm919, %v949, 0.0
      %959 = vadd.xlane.f32.xlu0 %v958
      %v960 = vpop.xlane.xlu0 %959
      %v961 = vsel %vm919, %v950, 0.0
      %962 = vadd.xlane.f32.xlu0 %v961
      %v963 = vpop.xlane.xlu0 %962
      %v964 = vsel %vm932, %v951, 0.0
      %965 = vadd.xlane.f32.xlu0 %v964
      %v966 = vpop.xlane.xlu0 %965
      %v967 = vmul.f32 %v954, %v936
      %v968 = vmul.f32 %v957, %v936
      %v969 = vmul.f32 %v960, %v936
      %v970 = vmul.f32 %v963, %v936
      %v971 = vmul.f32 %v966, %v936
      %v972 = vadd.f32 %v967, 1e-06
      %v973 = vadd.f32 %v968, 1e-06
      %v974 = vadd.f32 %v969, 1e-06
      %v975 = vadd.f32 %v970, 1e-06
      %v976 = vadd.f32 %v971, 1e-06
      %v977 = vrsqrt.pop %v972
      %v978 = vrsqrt.pop %v973
      %v979 = vrsqrt.pop %v974
      %v980 = vrsqrt.pop %v975
      %v981 = vrsqrt.pop %v976
      %v982 = vmul.f32 %v942, %v977
      %v983 = vmul.f32 %v943, %v978
      %v984 = vmul.f32 %v944, %v979
      %v985 = vmul.f32 %v945, %v980
      %v986 = vmul.f32 %v946, %v981
      %v987 = vld [vmem:[%s728] sm:$0x1]
      %v989 = vlaneseq
      %v990 = vshrl.u32 %v989, 7
      %v991 = vsub.s32 0, %v990
      %v992 = vrot.slane %v987, %v991
      %v994 = vmul.f32 %v982, %v992
      %v995 = vmul.f32 %v983, %v992
      %v996 = vmul.f32 %v984, %v992
      %v997 = vmul.f32 %v985, %v992
      %v998 = vmul.f32 %v986, %v992
      %v999 = vld [vmem:[%s731] sm:$0x1]
      %v1001 = vlaneseq
      %v1002 = vshrl.u32 %v1001, 7
      %v1003 = vsub.s32 0, %v1002
      %v1004 = vrot.slane %v999, %v1003
      %v1006 = vadd.f32 %v994, %v1004
      %v1007 = vadd.f32 %v995, %v1004
      %v1008 = vadd.f32 %v996, %v1004
      %v1009 = vadd.f32 %v997, %v1004
      %v1010 = vadd.f32 %v998, %v1004
      %v1011 = vld [vmem:[%s736] sm:$0xff]
      %v1012 = vld [vmem:[%s736 + $0x8] sm:$0xff]
      %v1013 = vld [vmem:[%s736 + $0x10] sm:$0xff]
      %v1014 = vld [vmem:[%s736 + $0x18] sm:$0xff]
      %v1015 = vld [vmem:[%s739] sm:$0x1]
      %v1017 = vlaneseq
      %v1018 = vshrl.u32 %v1017, 7
      %v1019 = vsub.s32 0, %v1018
      %v1020 = vrot.slane %v1015, %v1019
      %v1023 = vsel %vm919, %v1006, 0
      %v1026 = vsel %vm919, %v1007, 0
      %v1029 = vsel %vm919, %v1008, 0
      %v1032 = vsel %vm919, %v1009, 0
      %v1035 = vsel %vm919, %v1010, 0
      %1037 = vmatprep.subr.mxu0 0.0
      %1038 = vmatpush1.msra.mxu0 0.0
      %1039 = vmatprep.subr.mxu0 0.0
      %1040 = vmatpush1.msra.mxu0 0.0
      %1041 = vmatprep.subr.mxu0 0.0
      %1042 = vmatpush1.msra.mxu0 0.0
      %1043 = vmatprep.subr.mxu0 0.0
      %1044 = vmatpush1.msra.mxu0 0.0
      %1045 = vmatprep.subr.mxu0 0.0
      %1046 = vmatpush1.msra.mxu0 0.0
      %1047 = vmatprep.subr.mxu0 0.0
      %1048 = vmatpush1.msra.mxu0 0.0
      %1049 = vmatprep.subr.mxu0 0.0
      %1050 = vmatpush1.msra.mxu0 0.0
      %1051 = vmatprep.subr.mxu0 0.0
      %1052 = vmatpush1.msra.mxu0 0.0
      %1053 = vmatprep.subr.mxu0 0.0
      %1054 = vmatpush1.msra.mxu0 0.0
      %1055 = vmatprep.subr.mxu0 0.0
      %1056 = vmatpush1.msra.mxu0 0.0
      %1057 = vmatprep.subr.mxu0 0.0
      %1058 = vmatpush1.msra.mxu0 0.0
      %1059 = vmatprep.subr.mxu0 0.0
      %1060 = vmatpush1.msra.mxu0 0.0
      %1061 = vmatprep.subr.mxu0 0.0
      %1062 = vmatpush1.msra.mxu0 %v1014
      %1063 = vmatprep.subr.mxu0 0.0
      %1064 = vmatpush1.msra.mxu0 %v1013
      %1065 = vmatprep.subr.mxu0 0.0
      %1066 = vmatpush1.msra.mxu0 %v1012
      %1067 = vmatprep.subr.mxu0 0.0
      %1068 = vmatpush1.msra.mxu0 %v1011
      %1069 = vmatprep.subr.mxu0 0.0
      %1070 = vmatpush2.msra.mxu0 0.0
      %1071 = vmatprep.subr.mxu0 0.0
      %1072 = vmatpush2.msra.mxu0 0.0
      %1073 = vmatprep.subr.mxu0 0.0
      %1074 = vmatpush2.msra.mxu0 0.0
      %1075 = vmatprep.subr.mxu0 0.0
      %1076 = vmatpush2.msra.mxu0 0.0
      %1077 = vmatprep.subr.mxu0 0.0
      %1078 = vmatpush2.msra.mxu0 0.0
      %1079 = vmatprep.subr.mxu0 0.0
      %1080 = vmatpush2.msra.mxu0 0.0
      %1081 = vmatprep.subr.mxu0 0.0
      %1082 = vmatpush2.msra.mxu0 0.0
      %1083 = vmatprep.subr.mxu0 0.0
      %1084 = vmatpush2.msra.mxu0 0.0
      %1085 = vmatprep.subr.mxu0 0.0
      %1086 = vmatpush2.msra.mxu0 0.0
      %1087 = vmatprep.subr.mxu0 0.0
      %1088 = vmatpush2.msra.mxu0 0.0
      %1089 = vmatprep.subr.mxu0 0.0
      %1090 = vmatpush2.msra.mxu0 0.0
      %1091 = vmatprep.subr.mxu0 0.0
      %1092 = vmatpush2.msra.mxu0 0.0
      %1093 = vmatprep.subr.mxu0 0.0
      %1094 = vmatpush2.msra.mxu0 0.0
      %1095 = vmatprep.subr.mxu0 0.0
      %1096 = vmatpush2.msra.mxu0 0.0
      %1097 = vmatprep.subr.mxu0 0.0
      %1098 = vmatpush2.msra.mxu0 0.0
      %1099 = vmatprep.subr.mxu0 0.0
      %1100 = vmatpush2.msra.mxu0 0.0
      %1101 = vmatprep.mubr.f32.mxu0 0.0
      %1102 = vmatmul.mubr.f32.gmra.mxu0 %v1023
      %v1103 = vpop.f32.mrf.mxu0
      %v1104 = vadd.f32 %v1020, %v1103
      %v1105 = vpop.f32.mrf.mxu0
      %1106 = vmatprep.mubr.f32.mxu0 0.0
      %1107 = vmatmul.mubr.f32.gmra.mxu0 %v1026
      %v1108 = vpop.f32.mrf.mxu0
      %v1109 = vadd.f32 %v1020, %v1108
      %v1110 = vpop.f32.mrf.mxu0
      %1111 = vmatprep.mubr.f32.mxu0 0.0
      %1112 = vmatmul.mubr.f32.gmra.mxu0 %v1029
      %v1113 = vpop.f32.mrf.mxu0
      %v1114 = vadd.f32 %v1020, %v1113
      %v1115 = vpop.f32.mrf.mxu0
      %1116 = vmatprep.mubr.f32.mxu0 0.0
      %1117 = vmatmul.mubr.f32.gmra.mxu0 %v1032
      %v1118 = vpop.f32.mrf.mxu0
      %v1119 = vadd.f32 %v1020, %v1118
      %v1120 = vpop.f32.mrf.mxu0
      %1121 = vmatprep.mubr.f32.mxu0 0.0
      %1122 = vmatmul.mubr.f32.gmra.mxu0 %v1035
      %v1123 = vpop.f32.mrf.mxu0
      %v1124 = vadd.f32 %v1020, %v1123
      %v1125 = vpop.f32.mrf.mxu0
      %1126 = vdwg.mxu0
      %vm1127 = vcmask 785408
      %1128 = vst.msk [vmem:[#allocation2] sm:$0xff] %vm1127, %v1104
      %1129 = vst.msk [vmem:[#allocation2 + $0x8] sm:$0xff] %vm1127, %v1109
      %1130 = vst.msk [vmem:[#allocation2 + $0x10] sm:$0xff] %vm1127, %v1114
      %1131 = vst.msk [vmem:[#allocation2 + $0x18] sm:$0xff] %vm1127, %v1119
      %vm1132 = vcmask 779264
      %1133 = vst.msk [vmem:[#allocation2 + $0x20] sm:$0x3] %vm1132, %v1124
      %v1134 = vld [vmem:[#allocation2] sm:$0xff]
      %v1135 = vld [vmem:[#allocation2 + $0x8] sm:$0xff]
      %v1136 = vld [vmem:[#allocation2 + $0x10] sm:$0x1]
      %v1137 = vmul.f32 %v1134, 0.35355338
      %v1138 = vmul.f32 %v1135, 0.35355338
      %v1139 = vmul.f32 %v1136, 0.35355338
      %v1140 = vld [vmem:[%s744] sm:$0xff]
      %v1141 = vld [vmem:[%s744 + $0x8] sm:$0xff]
      %v1142 = vld [vmem:[%s744 + $0x10] sm:$0x1]
      %1146 = vrot.lane.b32.xlu0 %v1134, 96
      %v1147 = vpop.permute.xlu0 %1146
      %1148 = vrot.lane.b32.xlu0 %v1135, 96
      %v1149 = vpop.permute.xlu0 %1148
      %1150 = vrot.lane.b32.xlu0 %v1136, 96
      %v1151 = vpop.permute.xlu0 %1150
      %vm1152 = vcmask 64512
      %v1154 = vsel %vm1152, %v1137, 0
      %v1157 = vsel %vm1152, %v1138, 0
      %v1160 = vsel %vm1152, %v1139, 0
      %v1162 = vsel %vm1152, %v1147, 0
      %v1164 = vsel %vm1152, %v1149, 0
      %v1166 = vsel %vm1152, %v1151, 0
      %1168 = vmatprep.subr.mxu0 0.0
      %1169 = vmatpush1.xpose.msra.mxu0 0.0
      %1170 = vmatprep.subr.mxu0 0.0
      %1171 = vmatpush1.xpose.msra.mxu0 0.0
      %1172 = vmatprep.subr.mxu0 0.0
      %1173 = vmatpush1.xpose.msra.mxu0 0.0
      %1174 = vmatprep.subr.mxu0 0.0
      %1175 = vmatpush1.xpose.msra.mxu0 0.0
      %1176 = vmatprep.subr.mxu0 0.0
      %1177 = vmatpush1.xpose.msra.mxu0 0.0
      %1178 = vmatprep.subr.mxu0 0.0
      %1179 = vmatpush1.xpose.msra.mxu0 0.0
      %1180 = vmatprep.subr.mxu0 0.0
      %1181 = vmatpush1.xpose.msra.mxu0 0.0
      %1182 = vmatprep.subr.mxu0 0.0
      %1183 = vmatpush1.xpose.msra.mxu0 0.0
      %1184 = vmatprep.subr.mxu0 0.0
      %1185 = vmatpush1.xpose.msra.mxu0 0.0
      %1186 = vmatprep.subr.mxu0 0.0
      %1187 = vmatpush1.xpose.msra.mxu0 0.0
      %1188 = vmatprep.subr.mxu0 0.0
      %1189 = vmatpush1.xpose.msra.mxu0 0.0
      %1190 = vmatprep.subr.mxu0 0.0
      %1191 = vmatpush1.xpose.msra.mxu0 0.0
      %1192 = vmatprep.subr.mxu0 0.0
      %1193 = vmatpush1.xpose.msra.mxu0 0.0
      %1194 = vmatprep.subr.mxu0 0.0
      %1195 = vmatpush1.xpose.msra.mxu0 %v1166
      %1196 = vmatprep.subr.mxu0 0.0
      %1197 = vmatpush1.xpose.msra.mxu0 %v1164
      %1198 = vmatprep.subr.mxu0 0.0
      %1199 = vmatpush1.xpose.msra.mxu0 %v1162
      %1200 = vmatprep.subr.mxu0 0.0
      %1201 = vmatpush2.xpose.msra.mxu0 0.0
      %1202 = vmatprep.subr.mxu0 0.0
      %1203 = vmatpush2.xpose.msra.mxu0 0.0
      %1204 = vmatprep.subr.mxu0 0.0
      %1205 = vmatpush2.xpose.msra.mxu0 0.0
      %1206 = vmatprep.subr.mxu0 0.0
      %1207 = vmatpush2.xpose.msra.mxu0 0.0
      %1208 = vmatprep.subr.mxu0 0.0
      %1209 = vmatpush2.xpose.msra.mxu0 0.0
      %1210 = vmatprep.subr.mxu0 0.0
      %1211 = vmatpush2.xpose.msra.mxu0 0.0
      %1212 = vmatprep.subr.mxu0 0.0
      %1213 = vmatpush2.xpose.msra.mxu0 0.0
      %1214 = vmatprep.subr.mxu0 0.0
      %1215 = vmatpush2.xpose.msra.mxu0 0.0
      %1216 = vmatprep.subr.mxu0 0.0
      %1217 = vmatpush2.xpose.msra.mxu0 0.0
      %1218 = vmatprep.subr.mxu0 0.0
      %1219 = vmatpush2.xpose.msra.mxu0 0.0
      %1220 = vmatprep.subr.mxu0 0.0
      %1221 = vmatpush2.xpose.msra.mxu0 0.0
      %1222 = vmatprep.subr.mxu0 0.0
      %1223 = vmatpush2.xpose.msra.mxu0 0.0
      %1224 = vmatprep.subr.mxu0 0.0
      %1225 = vmatpush2.xpose.msra.mxu0 0.0
      %1226 = vmatprep.subr.mxu0 0.0
      %1227 = vmatpush2.xpose.msra.mxu0 0.0
      %1228 = vmatprep.subr.mxu0 0.0
      %1229 = vmatpush2.xpose.msra.mxu0 0.0
      %1230 = vmatprep.subr.mxu0 0.0
      %1231 = vmatpush2.xpose.msra.mxu0 0.0
      %1232 = vmatprep.mubr.f32.mxu0 0.0
      %1233 = vmatmul.mubr.f32.gmra.mxu0 %v1154
      %v1234 = vpop.f32.mrf.mxu0
      %v1235 = vadd.f32 %v1140, %v1234
      %v1236 = vpop.f32.mrf.mxu0
      %1237 = vmatprep.mubr.f32.mxu0 0.0
      %1238 = vmatmul.mubr.f32.gmra.mxu0 %v1157
      %v1239 = vpop.f32.mrf.mxu0
      %v1240 = vadd.f32 %v1141, %v1239
      %v1241 = vpop.f32.mrf.mxu0
      %1242 = vmatprep.mubr.f32.mxu0 0.0
      %1243 = vmatmul.mubr.f32.gmra.mxu0 %v1160
      %v1244 = vpop.f32.mrf.mxu0
      %v1245 = vadd.f32 %v1142, %v1244
      %v1246 = vpop.f32.mrf.mxu0
      %1247 = vdwg.mxu0
      %vm1248 = vcmask 138240
      %v1249 = vsel %vm1248, %v1235, -inf
      %1250 = vmax.xlane.f32.xlu0 %v1249
      %v1251 = vpop.xlane.xlu0 %1250
      %v1252 = vsel %vm1248, %v1240, -inf
      %1253 = vmax.xlane.f32.xlu0 %v1252
      %v1254 = vpop.xlane.xlu0 %1253
      %vm1255 = vcmask 131072
      %v1256 = vsel %vm1255, %v1245, -inf
      %1257 = vmax.xlane.f32.xlu0 %v1256
      %v1258 = vpop.xlane.xlu0 %1257
      %v1259 = vsub.f32 %v1235, %v1251
      %v1260 = vsub.f32 %v1240, %v1254
      %v1261 = vsub.f32 %v1245, %v1258
      %v1262 = vmul.f32 %v1259, 1.442695
      %v1263 = vpow.pop %v1262
      %v1264 = vmul.f32 %v1260, 1.442695
      %v1265 = vpow.pop %v1264
      %v1266 = vmul.f32 %v1261, 1.442695
      %v1267 = vpow.pop %v1266
      %v1268 = vsel %vm1248, %v1263, 0.0
      %1269 = vadd.xlane.f32.xlu0 %v1268
      %v1270 = vpop.xlane.xlu0 %1269
      %v1271 = vsel %vm1248, %v1265, 0.0
      %1272 = vadd.xlane.f32.xlu0 %v1271
      %v1273 = vpop.xlane.xlu0 %1272
      %v1274 = vsel %vm1255, %v1267, 0.0
      %1275 = vadd.xlane.f32.xlu0 %v1274
      %v1276 = vpop.xlane.xlu0 %1275
      %v1277 = vrcp.pop %v1270
      %v1278 = vrcp.pop %v1273
      %v1279 = vrcp.pop %v1276
      %v1280 = vmul.f32 %v1263, %v1277
      %v1281 = vmul.f32 %v1265, %v1278
      %v1282 = vmul.f32 %v1267, %v1279
      %1283 = vrot.lane.b32.xlu0 %v1134, 64
      %v1284 = vpop.permute.xlu0 %1283
      %1285 = vrot.lane.b32.xlu0 %v1135, 64
      %v1286 = vpop.permute.xlu0 %1285
      %1287 = vrot.lane.b32.xlu0 %v1136, 64
      %v1288 = vpop.permute.xlu0 %1287
      %v1292 = vsel %vm1248, %v1280, 0
      %v1295 = vsel %vm1248, %v1281, 0
      %v1298 = vsel %vm1248, %v1282, 0
      %vm1300 = vcmask 1040384
      %v1301 = vsel %vm1300, %v1288, 0
      %1303 = vmatprep.subr.mxu0 0.0
      %1304 = vmatpush1.msra.mxu0 0.0
      %1305 = vmatprep.subr.mxu0 0.0
      %1306 = vmatpush1.msra.mxu0 0.0
      %1307 = vmatprep.subr.mxu0 0.0
      %1308 = vmatpush1.msra.mxu0 0.0
      %1309 = vmatprep.subr.mxu0 0.0
      %1310 = vmatpush1.msra.mxu0 0.0
      %1311 = vmatprep.subr.mxu0 0.0
      %1312 = vmatpush1.msra.mxu0 0.0
      %1313 = vmatprep.subr.mxu0 0.0
      %1314 = vmatpush1.msra.mxu0 0.0
      %1315 = vmatprep.subr.mxu0 0.0
      %1316 = vmatpush1.msra.mxu0 0.0
      %1317 = vmatprep.subr.mxu0 0.0
      %1318 = vmatpush1.msra.mxu0 0.0
      %1319 = vmatprep.subr.mxu0 0.0
      %1320 = vmatpush1.msra.mxu0 0.0
      %1321 = vmatprep.subr.mxu0 0.0
      %1322 = vmatpush1.msra.mxu0 0.0
      %1323 = vmatprep.subr.mxu0 0.0
      %1324 = vmatpush1.msra.mxu0 0.0
      %1325 = vmatprep.subr.mxu0 0.0
      %1326 = vmatpush1.msra.mxu0 0.0
      %1327 = vmatprep.subr.mxu0 0.0
      %1328 = vmatpush1.msra.mxu0 0.0
      %1329 = vmatprep.subr.mxu0 0.0
      %1330 = vmatpush1.msra.mxu0 %v1301
      %1331 = vmatprep.subr.mxu0 0.0
      %1332 = vmatpush1.msra.mxu0 %v1286
      %1333 = vmatprep.subr.mxu0 0.0
      %1334 = vmatpush1.msra.mxu0 %v1284
      %1335 = vmatprep.subr.mxu0 0.0
      %1336 = vmatpush2.msra.mxu0 0.0
      %1337 = vmatprep.subr.mxu0 0.0
      %1338 = vmatpush2.msra.mxu0 0.0
      %1339 = vmatprep.subr.mxu0 0.0
      %1340 = vmatpush2.msra.mxu0 0.0
      %1341 = vmatprep.subr.mxu0 0.0
      %1342 = vmatpush2.msra.mxu0 0.0
      %1343 = vmatprep.subr.mxu0 0.0
      %1344 = vmatpush2.msra.mxu0 0.0
      %1345 = vmatprep.subr.mxu0 0.0
      %1346 = vmatpush2.msra.mxu0 0.0
      %1347 = vmatprep.subr.mxu0 0.0
      %1348 = vmatpush2.msra.mxu0 0.0
      %1349 = vmatprep.subr.mxu0 0.0
      %1350 = vmatpush2.msra.mxu0 0.0
      %1351 = vmatprep.subr.mxu0 0.0
      %1352 = vmatpush2.msra.mxu0 0.0
      %1353 = vmatprep.subr.mxu0 0.0
      %1354 = vmatpush2.msra.mxu0 0.0
      %1355 = vmatprep.subr.mxu0 0.0
      %1356 = vmatpush2.msra.mxu0 0.0
      %1357 = vmatprep.subr.mxu0 0.0
      %1358 = vmatpush2.msra.mxu0 0.0
      %1359 = vmatprep.subr.mxu0 0.0
      %1360 = vmatpush2.msra.mxu0 0.0
      %1361 = vmatprep.subr.mxu0 0.0
      %1362 = vmatpush2.msra.mxu0 0.0
      %1363 = vmatprep.subr.mxu0 0.0
      %1364 = vmatpush2.msra.mxu0 0.0
      %1365 = vmatprep.subr.mxu0 0.0
      %1366 = vmatpush2.msra.mxu0 0.0
      %1367 = vmatprep.mubr.f32.mxu0 0.0
      %1368 = vmatmul.mubr.f32.gmra.mxu0 %v1292
      %v1369 = vpop.f32.mrf.mxu0
      %v1370 = vadd.f32 0.0, %v1369
      %v1371 = vpop.f32.mrf.mxu0
      %1372 = vmatprep.mubr.f32.mxu0 0.0
      %1373 = vmatmul.mubr.f32.gmra.mxu0 %v1295
      %v1374 = vpop.f32.mrf.mxu0
      %v1375 = vadd.f32 0.0, %v1374
      %v1376 = vpop.f32.mrf.mxu0
      %1377 = vmatprep.mubr.f32.mxu0 0.0
      %1378 = vmatmul.mubr.f32.gmra.mxu0 %v1298
      %v1379 = vpop.f32.mrf.mxu0
      %v1380 = vadd.f32 0.0, %v1379
      %v1381 = vpop.f32.mrf.mxu0
      %1382 = vdwg.mxu0
      %1383 = vst.msk [vmem:[#allocation3] sm:$0xff] %vm1152, %v1370
      %1384 = vst.msk [vmem:[#allocation3 + $0x8] sm:$0xff] %vm1152, %v1375
      %vm1385 = vcmask 57344
      %1386 = vst.msk [vmem:[#allocation3 + $0x10] sm:$0x1] %vm1385, %v1380
      %v1387 = vld [vmem:[#allocation2] sm:$0xff]
      %v1388 = vld [vmem:[#allocation2 + $0x8] sm:$0xff]
      %v1389 = vld [vmem:[#allocation2 + $0x10] sm:$0x1]
      %v1390 = vmul.f32 %v1387, 0.35355338
      %v1391 = vmul.f32 %v1388, 0.35355338
      %v1392 = vmul.f32 %v1389, 0.35355338
      %s1393 = scalar_lea.vmem %s744, 24
      %v1394 = vld [vmem:[%s1393] sm:$0xff]
      %v1395 = vld [vmem:[%s1393 + $0x8] sm:$0xff]
      %v1396 = vld [vmem:[%s1393 + $0x10] sm:$0x1]
      %1400 = vrot.lane.b32.xlu0 %v1390, 120
      %v1401 = vpop.permute.xlu0 %1400
      %1402 = vrot.lane.b32.xlu0 %v1391, 120
      %v1403 = vpop.permute.xlu0 %1402
      %1404 = vrot.lane.b32.xlu0 %v1392, 120
      %v1405 = vpop.permute.xlu0 %1404
      %1409 = vrot.lane.b32.xlu0 %v1387, 88
      %v1410 = vpop.permute.xlu0 %1409
      %1411 = vrot.lane.b32.xlu0 %v1388, 88
      %v1412 = vpop.permute.xlu0 %1411
      %1413 = vrot.lane.b32.xlu0 %v1389, 88
      %v1414 = vpop.permute.xlu0 %1413
      %v1415 = vsel %vm1152, %v1401, 0
      %v1417 = vsel %vm1152, %v1403, 0
      %v1419 = vsel %vm1152, %v1405, 0
      %v1421 = vsel %vm1152, %v1410, 0
      %v1423 = vsel %vm1152, %v1412, 0
      %v1425 = vsel %vm1152, %v1414, 0
      %1427 = vmatprep.subr.mxu0 0.0
      %1428 = vmatpush1.xpose.msra.mxu0 0.0
      %1429 = vmatprep.subr.mxu0 0.0
      %1430 = vmatpush1.xpose.msra.mxu0 0.0
      %1431 = vmatprep.subr.mxu0 0.0
      %1432 = vmatpush1.xpose.msra.mxu0 0.0
      %1433 = vmatprep.subr.mxu0 0.0
      %1434 = vmatpush1.xpose.msra.mxu0 0.0
      %1435 = vmatprep.subr.mxu0 0.0
      %1436 = vmatpush1.xpose.msra.mxu0 0.0
      %1437 = vmatprep.subr.mxu0 0.0
      %1438 = vmatpush1.xpose.msra.mxu0 0.0
      %1439 = vmatprep.subr.mxu0 0.0
      %1440 = vmatpush1.xpose.msra.mxu0 0.0
      %1441 = vmatprep.subr.mxu0 0.0
      %1442 = vmatpush1.xpose.msra.mxu0 0.0
      %1443 = vmatprep.subr.mxu0 0.0
      %1444 = vmatpush1.xpose.msra.mxu0 0.0
      %1445 = vmatprep.subr.mxu0 0.0
      %1446 = vmatpush1.xpose.msra.mxu0 0.0
      %1447 = vmatprep.subr.mxu0 0.0
      %1448 = vmatpush1.xpose.msra.mxu0 0.0
      %1449 = vmatprep.subr.mxu0 0.0
      %1450 = vmatpush1.xpose.msra.mxu0 0.0
      %1451 = vmatprep.subr.mxu0 0.0
      %1452 = vmatpush1.xpose.msra.mxu0 0.0
      %1453 = vmatprep.subr.mxu0 0.0
      %1454 = vmatpush1.xpose.msra.mxu0 %v1425
      %1455 = vmatprep.subr.mxu0 0.0
      %1456 = vmatpush1.xpose.msra.mxu0 %v1423
      %1457 = vmatprep.subr.mxu0 0.0
      %1458 = vmatpush1.xpose.msra.mxu0 %v1421
      %1459 = vmatprep.subr.mxu0 0.0
      %1460 = vmatpush2.xpose.msra.mxu0 0.0
      %1461 = vmatprep.subr.mxu0 0.0
      %1462 = vmatpush2.xpose.msra.mxu0 0.0
      %1463 = vmatprep.subr.mxu0 0.0
      %1464 = vmatpush2.xpose.msra.mxu0 0.0
      %1465 = vmatprep.subr.mxu0 0.0
      %1466 = vmatpush2.xpose.msra.mxu0 0.0
      %1467 = vmatprep.subr.mxu0 0.0
      %1468 = vmatpush2.xpose.msra.mxu0 0.0
      %1469 = vmatprep.subr.mxu0 0.0
      %1470 = vmatpush2.xpose.msra.mxu0 0.0
      %1471 = vmatprep.subr.mxu0 0.0
      %1472 = vmatpush2.xpose.msra.mxu0 0.0
      %1473 = vmatprep.subr.mxu0 0.0
      %1474 = vmatpush2.xpose.msra.mxu0 0.0
      %1475 = vmatprep.subr.mxu0 0.0
      %1476 = vmatpush2.xpose.msra.mxu0 0.0
      %1477 = vmatprep.subr.mxu0 0.0
      %1478 = vmatpush2.xpose.msra.mxu0 0.0
      %1479 = vmatprep.subr.mxu0 0.0
      %1480 = vmatpush2.xpose.msra.mxu0 0.0
      %1481 = vmatprep.subr.mxu0 0.0
      %1482 = vmatpush2.xpose.msra.mxu0 0.0
      %1483 = vmatprep.subr.mxu0 0.0
      %1484 = vmatpush2.xpose.msra.mxu0 0.0
      %1485 = vmatprep.subr.mxu0 0.0
      %1486 = vmatpush2.xpose.msra.mxu0 0.0
      %1487 = vmatprep.subr.mxu0 0.0
      %1488 = vmatpush2.xpose.msra.mxu0 0.0
      %1489 = vmatprep.subr.mxu0 0.0
      %1490 = vmatpush2.xpose.msra.mxu0 0.0
      %1491 = vmatprep.mubr.f32.mxu0 0.0
      %1492 = vmatmul.mubr.f32.gmra.mxu0 %v1415
      %v1493 = vpop.f32.mrf.mxu0
      %v1494 = vadd.f32 %v1394, %v1493
      %v1495 = vpop.f32.mrf.mxu0
      %1496 = vmatprep.mubr.f32.mxu0 0.0
      %1497 = vmatmul.mubr.f32.gmra.mxu0 %v1417
      %v1498 = vpop.f32.mrf.mxu0
      %v1499 = vadd.f32 %v1395, %v1498
      %v1500 = vpop.f32.mrf.mxu0
      %1501 = vmatprep.mubr.f32.mxu0 0.0
      %1502 = vmatmul.mubr.f32.gmra.mxu0 %v1419
      %v1503 = vpop.f32.mrf.mxu0
      %v1504 = vadd.f32 %v1396, %v1503
      %v1505 = vpop.f32.mrf.mxu0
      %1506 = vdwg.mxu0
      %v1507 = vsel %vm1248, %v1494, -inf
      %1508 = vmax.xlane.f32.xlu0 %v1507
      %v1509 = vpop.xlane.xlu0 %1508
      %v1510 = vsel %vm1248, %v1499, -inf
      %1511 = vmax.xlane.f32.xlu0 %v1510
      %v1512 = vpop.xlane.xlu0 %1511
      %v1513 = vsel %vm1255, %v1504, -inf
      %1514 = vmax.xlane.f32.xlu0 %v1513
      %v1515 = vpop.xlane.xlu0 %1514
      %v1516 = vsub.f32 %v1494, %v1509
      %v1517 = vsub.f32 %v1499, %v1512
      %v1518 = vsub.f32 %v1504, %v1515
      %v1519 = vmul.f32 %v1516, 1.442695
      %v1520 = vpow.pop %v1519
      %v1521 = vmul.f32 %v1517, 1.442695
      %v1522 = vpow.pop %v1521
      %v1523 = vmul.f32 %v1518, 1.442695
      %v1524 = vpow.pop %v1523
      %v1525 = vsel %vm1248, %v1520, 0.0
      %1526 = vadd.xlane.f32.xlu0 %v1525
      %v1527 = vpop.xlane.xlu0 %1526
      %v1528 = vsel %vm1248, %v1522, 0.0
      %1529 = vadd.xlane.f32.xlu0 %v1528
      %v1530 = vpop.xlane.xlu0 %1529
      %v1531 = vsel %vm1255, %v1524, 0.0
      %1532 = vadd.xlane.f32.xlu0 %v1531
      %v1533 = vpop.xlane.xlu0 %1532
      %v1534 = vrcp.pop %v1527
      %v1535 = vrcp.pop %v1530
      %v1536 = vrcp.pop %v1533
      %v1537 = vmul.f32 %v1520, %v1534
      %v1538 = vmul.f32 %v1522, %v1535
      %v1539 = vmul.f32 %v1524, %v1536
      %1540 = vrot.lane.b32.xlu0 %v1387, 56
      %v1541 = vpop.permute.xlu0 %1540
      %1542 = vrot.lane.b32.xlu0 %v1388, 56
      %v1543 = vpop.permute.xlu0 %1542
      %1544 = vrot.lane.b32.xlu0 %v1389, 56
      %v1545 = vpop.permute.xlu0 %1544
      %v1549 = vsel %vm1248, %v1537, 0
      %v1552 = vsel %vm1248, %v1538, 0
      %v1555 = vsel %vm1248, %v1539, 0
      %v1557 = vsel %vm1300, %v1545, 0
      %1559 = vmatprep.subr.mxu0 0.0
      %1560 = vmatpush1.msra.mxu0 0.0
      %1561 = vmatprep.subr.mxu0 0.0
      %1562 = vmatpush1.msra.mxu0 0.0
      %1563 = vmatprep.subr.mxu0 0.0
      %1564 = vmatpush1.msra.mxu0 0.0
      %1565 = vmatprep.subr.mxu0 0.0
      %1566 = vmatpush1.msra.mxu0 0.0
      %1567 = vmatprep.subr.mxu0 0.0
      %1568 = vmatpush1.msra.mxu0 0.0
      %1569 = vmatprep.subr.mxu0 0.0
      %1570 = vmatpush1.msra.mxu0 0.0
      %1571 = vmatprep.subr.mxu0 0.0
      %1572 = vmatpush1.msra.mxu0 0.0
      %1573 = vmatprep.subr.mxu0 0.0
      %1574 = vmatpush1.msra.mxu0 0.0
      %1575 = vmatprep.subr.mxu0 0.0
      %1576 = vmatpush1.msra.mxu0 0.0
      %1577 = vmatprep.subr.mxu0 0.0
      %1578 = vmatpush1.msra.mxu0 0.0
      %1579 = vmatprep.subr.mxu0 0.0
      %1580 = vmatpush1.msra.mxu0 0.0
      %1581 = vmatprep.subr.mxu0 0.0
      %1582 = vmatpush1.msra.mxu0 0.0
      %1583 = vmatprep.subr.mxu0 0.0
      %1584 = vmatpush1.msra.mxu0 0.0
      %1585 = vmatprep.subr.mxu0 0.0
      %1586 = vmatpush1.msra.mxu0 %v1557
      %1587 = vmatprep.subr.mxu0 0.0
      %1588 = vmatpush1.msra.mxu0 %v1543
      %1589 = vmatprep.subr.mxu0 0.0
      %1590 = vmatpush1.msra.mxu0 %v1541
      %1591 = vmatprep.subr.mxu0 0.0
      %1592 = vmatpush2.msra.mxu0 0.0
      %1593 = vmatprep.subr.mxu0 0.0
      %1594 = vmatpush2.msra.mxu0 0.0
      %1595 = vmatprep.subr.mxu0 0.0
      %1596 = vmatpush2.msra.mxu0 0.0
      %1597 = vmatprep.subr.mxu0 0.0
      %1598 = vmatpush2.msra.mxu0 0.0
      %1599 = vmatprep.subr.mxu0 0.0
      %1600 = vmatpush2.msra.mxu0 0.0
      %1601 = vmatprep.subr.mxu0 0.0
      %1602 = vmatpush2.msra.mxu0 0.0
      %1603 = vmatprep.subr.mxu0 0.0
      %1604 = vmatpush2.msra.mxu0 0.0
      %1605 = vmatprep.subr.mxu0 0.0
      %1606 = vmatpush2.msra.mxu0 0.0
      %1607 = vmatprep.subr.mxu0 0.0
      %1608 = vmatpush2.msra.mxu0 0.0
      %1609 = vmatprep.subr.mxu0 0.0
      %1610 = vmatpush2.msra.mxu0 0.0
      %1611 = vmatprep.subr.mxu0 0.0
      %1612 = vmatpush2.msra.mxu0 0.0
      %1613 = vmatprep.subr.mxu0 0.0
      %1614 = vmatpush2.msra.mxu0 0.0
      %1615 = vmatprep.subr.mxu0 0.0
      %1616 = vmatpush2.msra.mxu0 0.0
      %1617 = vmatprep.subr.mxu0 0.0
      %1618 = vmatpush2.msra.mxu0 0.0
      %1619 = vmatprep.subr.mxu0 0.0
      %1620 = vmatpush2.msra.mxu0 0.0
      %1621 = vmatprep.subr.mxu0 0.0
      %1622 = vmatpush2.msra.mxu0 0.0
      %1623 = vmatprep.mubr.f32.mxu0 0.0
      %1624 = vmatmul.mubr.f32.gmra.mxu0 %v1549
      %v1625 = vpop.f32.mrf.mxu0
      %v1626 = vadd.f32 0.0, %v1625
      %v1627 = vpop.f32.mrf.mxu0
      %1628 = vmatprep.mubr.f32.mxu0 0.0
      %1629 = vmatmul.mubr.f32.gmra.mxu0 %v1552
      %v1630 = vpop.f32.mrf.mxu0
      %v1631 = vadd.f32 0.0, %v1630
      %v1632 = vpop.f32.mrf.mxu0
      %1633 = vmatprep.mubr.f32.mxu0 0.0
      %1634 = vmatmul.mubr.f32.gmra.mxu0 %v1555
      %v1635 = vpop.f32.mrf.mxu0
      %v1636 = vadd.f32 0.0, %v1635
      %v1637 = vpop.f32.mrf.mxu0
      %1638 = vdwg.mxu0
      %1642 = vrot.lane.b32.xlu0 %v1626, 8
      %v1643 = vpop.permute.xlu0 %1642
      %1644 = vrot.lane.b32.xlu0 %v1631, 8
      %v1645 = vpop.permute.xlu0 %1644
      %1646 = vrot.lane.b32.xlu0 %v1636, 8
      %v1647 = vpop.permute.xlu0 %1646
      %vm1651 = vcmask 130112
      %1652 = vst.msk [vmem:[#allocation3] sm:$0xff] %vm1651, %v1643
      %1653 = vst.msk [vmem:[#allocation3 + $0x8] sm:$0xff] %vm1651, %v1645
      %vm1654 = vcmask 122944
      %1655 = vst.msk [vmem:[#allocation3 + $0x10] sm:$0x1] %vm1654, %v1647
      %v1656 = vld [vmem:[#allocation2] sm:$0xff]
      %v1657 = vld [vmem:[#allocation2 + $0x8] sm:$0xff]
      %v1658 = vld [vmem:[#allocation2 + $0x10] sm:$0x1]
      %v1659 = vmul.f32 %v1656, 0.35355338
      %v1660 = vmul.f32 %v1657, 0.35355338
      %v1661 = vmul.f32 %v1658, 0.35355338
      %s1662 = scalar_lea.vmem %s744, 48
      %v1663 = vld [vmem:[%s1662] sm:$0xff]
      %v1664 = vld [vmem:[%s1662 + $0x8] sm:$0xff]
      %v1665 = vld [vmem:[%s1662 + $0x10] sm:$0x1]
      %1669 = vrot.lane.b32.xlu0 %v1659, 112
      %v1670 = vpop.permute.xlu0 %1669
      %1671 = vrot.lane.b32.xlu0 %v1660, 112
      %v1672 = vpop.permute.xlu0 %1671
      %1673 = vrot.lane.b32.xlu0 %v1661, 112
      %v1674 = vpop.permute.xlu0 %1673
      %1678 = vrot.lane.b32.xlu0 %v1656, 80
      %v1679 = vpop.permute.xlu0 %1678
      %1680 = vrot.lane.b32.xlu0 %v1657, 80
      %v1681 = vpop.permute.xlu0 %1680
      %1682 = vrot.lane.b32.xlu0 %v1658, 80
      %v1683 = vpop.permute.xlu0 %1682
      %v1684 = vsel %vm1152, %v1670, 0
      %v1686 = vsel %vm1152, %v1672, 0
      %v1688 = vsel %vm1152, %v1674, 0
      %v1690 = vsel %vm1152, %v1679, 0
      %v1692 = vsel %vm1152, %v1681, 0
      %v1694 = vsel %vm1152, %v1683, 0
      %1696 = vmatprep.subr.mxu0 0.0
      %1697 = vmatpush1.xpose.msra.mxu0 0.0
      %1698 = vmatprep.subr.mxu0 0.0
      %1699 = vmatpush1.xpose.msra.mxu0 0.0
      %1700 = vmatprep.subr.mxu0 0.0
      %1701 = vmatpush1.xpose.msra.mxu0 0.0
      %1702 = vmatprep.subr.mxu0 0.0
      %1703 = vmatpush1.xpose.msra.mxu0 0.0
      %1704 = vmatprep.subr.mxu0 0.0
      %1705 = vmatpush1.xpose.msra.mxu0 0.0
      %1706 = vmatprep.subr.mxu0 0.0
      %1707 = vmatpush1.xpose.msra.mxu0 0.0
      %1708 = vmatprep.subr.mxu0 0.0
      %1709 = vmatpush1.xpose.msra.mxu0 0.0
      %1710 = vmatprep.subr.mxu0 0.0
      %1711 = vmatpush1.xpose.msra.mxu0 0.0
      %1712 = vmatprep.subr.mxu0 0.0
      %1713 = vmatpush1.xpose.msra.mxu0 0.0
      %1714 = vmatprep.subr.mxu0 0.0
      %1715 = vmatpush1.xpose.msra.mxu0 0.0
      %1716 = vmatprep.subr.mxu0 0.0
      %1717 = vmatpush1.xpose.msra.mxu0 0.0
      %1718 = vmatprep.subr.mxu0 0.0
      %1719 = vmatpush1.xpose.msra.mxu0 0.0
      %1720 = vmatprep.subr.mxu0 0.0
      %1721 = vmatpush1.xpose.msra.mxu0 0.0
      %1722 = vmatprep.subr.mxu0 0.0
      %1723 = vmatpush1.xpose.msra.mxu0 %v1694
      %1724 = vmatprep.subr.mxu0 0.0
      %1725 = vmatpush1.xpose.msra.mxu0 %v1692
      %1726 = vmatprep.subr.mxu0 0.0
      %1727 = vmatpush1.xpose.msra.mxu0 %v1690
      %1728 = vmatprep.subr.mxu0 0.0
      %1729 = vmatpush2.xpose.msra.mxu0 0.0
      %1730 = vmatprep.subr.mxu0 0.0
      %1731 = vmatpush2.xpose.msra.mxu0 0.0
      %1732 = vmatprep.subr.mxu0 0.0
      %1733 = vmatpush2.xpose.msra.mxu0 0.0
      %1734 = vmatprep.subr.mxu0 0.0
      %1735 = vmatpush2.xpose.msra.mxu0 0.0
      %1736 = vmatprep.subr.mxu0 0.0
      %1737 = vmatpush2.xpose.msra.mxu0 0.0
      %1738 = vmatprep.subr.mxu0 0.0
      %1739 = vmatpush2.xpose.msra.mxu0 0.0
      %1740 = vmatprep.subr.mxu0 0.0
      %1741 = vmatpush2.xpose.msra.mxu0 0.0
      %1742 = vmatprep.subr.mxu0 0.0
      %1743 = vmatpush2.xpose.msra.mxu0 0.0
      %1744 = vmatprep.subr.mxu0 0.0
      %1745 = vmatpush2.xpose.msra.mxu0 0.0
      %1746 = vmatprep.subr.mxu0 0.0
      %1747 = vmatpush2.xpose.msra.mxu0 0.0
      %1748 = vmatprep.subr.mxu0 0.0
      %1749 = vmatpush2.xpose.msra.mxu0 0.0
      %1750 = vmatprep.subr.mxu0 0.0
      %1751 = vmatpush2.xpose.msra.mxu0 0.0
      %1752 = vmatprep.subr.mxu0 0.0
      %1753 = vmatpush2.xpose.msra.mxu0 0.0
      %1754 = vmatprep.subr.mxu0 0.0
      %1755 = vmatpush2.xpose.msra.mxu0 0.0
      %1756 = vmatprep.subr.mxu0 0.0
      %1757 = vmatpush2.xpose.msra.mxu0 0.0
      %1758 = vmatprep.subr.mxu0 0.0
      %1759 = vmatpush2.xpose.msra.mxu0 0.0
      %1760 = vmatprep.mubr.f32.mxu0 0.0
      %1761 = vmatmul.mubr.f32.gmra.mxu0 %v1684
      %v1762 = vpop.f32.mrf.mxu0
      %v1763 = vadd.f32 %v1663, %v1762
      %v1764 = vpop.f32.mrf.mxu0
      %1765 = vmatprep.mubr.f32.mxu0 0.0
      %1766 = vmatmul.mubr.f32.gmra.mxu0 %v1686
      %v1767 = vpop.f32.mrf.mxu0
      %v1768 = vadd.f32 %v1664, %v1767
      %v1769 = vpop.f32.mrf.mxu0
      %1770 = vmatprep.mubr.f32.mxu0 0.0
      %1771 = vmatmul.mubr.f32.gmra.mxu0 %v1688
      %v1772 = vpop.f32.mrf.mxu0
      %v1773 = vadd.f32 %v1665, %v1772
      %v1774 = vpop.f32.mrf.mxu0
      %1775 = vdwg.mxu0
      %v1776 = vsel %vm1248, %v1763, -inf
      %1777 = vmax.xlane.f32.xlu0 %v1776
      %v1778 = vpop.xlane.xlu0 %1777
      %v1779 = vsel %vm1248, %v1768, -inf
      %1780 = vmax.xlane.f32.xlu0 %v1779
      %v1781 = vpop.xlane.xlu0 %1780
      %v1782 = vsel %vm1255, %v1773, -inf
      %1783 = vmax.xlane.f32.xlu0 %v1782
      %v1784 = vpop.xlane.xlu0 %1783
      %v1785 = vsub.f32 %v1763, %v1778
      %v1786 = vsub.f32 %v1768, %v1781
      %v1787 = vsub.f32 %v1773, %v1784
      %v1788 = vmul.f32 %v1785, 1.442695
      %v1789 = vpow.pop %v1788
      %v1790 = vmul.f32 %v1786, 1.442695
      %v1791 = vpow.pop %v1790
      %v1792 = vmul.f32 %v1787, 1.442695
      %v1793 = vpow.pop %v1792
      %v1794 = vsel %vm1248, %v1789, 0.0
      %1795 = vadd.xlane.f32.xlu0 %v1794
      %v1796 = vpop.xlane.xlu0 %1795
      %v1797 = vsel %vm1248, %v1791, 0.0
      %1798 = vadd.xlane.f32.xlu0 %v1797
      %v1799 = vpop.xlane.xlu0 %1798
      %v1800 = vsel %vm1255, %v1793, 0.0
      %1801 = vadd.xlane.f32.xlu0 %v1800
      %v1802 = vpop.xlane.xlu0 %1801
      %v1803 = vrcp.pop %v1796
      %v1804 = vrcp.pop %v1799
      %v1805 = vrcp.pop %v1802
      %v1806 = vmul.f32 %v1789, %v1803
      %v1807 = vmul.f32 %v1791, %v1804
      %v1808 = vmul.f32 %v1793, %v1805
      %1809 = vrot.lane.b32.xlu0 %v1656, 48
      %v1810 = vpop.permute.xlu0 %1809
      %1811 = vrot.lane.b32.xlu0 %v1657, 48
      %v1812 = vpop.permute.xlu0 %1811
      %1813 = vrot.lane.b32.xlu0 %v1658, 48
      %v1814 = vpop.permute.xlu0 %1813
      %v1818 = vsel %vm1248, %v1806, 0
      %v1821 = vsel %vm1248, %v1807, 0
      %v1824 = vsel %vm1248, %v1808, 0
      %v1826 = vsel %vm1300, %v1814, 0
      %1828 = vmatprep.subr.mxu0 0.0
      %1829 = vmatpush1.msra.mxu0 0.0
      %1830 = vmatprep.subr.mxu0 0.0
      %1831 = vmatpush1.msra.mxu0 0.0
      %1832 = vmatprep.subr.mxu0 0.0
      %1833 = vmatpush1.msra.mxu0 0.0
      %1834 = vmatprep.subr.mxu0 0.0
      %1835 = vmatpush1.msra.mxu0 0.0
      %1836 = vmatprep.subr.mxu0 0.0
      %1837 = vmatpush1.msra.mxu0 0.0
      %1838 = vmatprep.subr.mxu0 0.0
      %1839 = vmatpush1.msra.mxu0 0.0
      %1840 = vmatprep.subr.mxu0 0.0
      %1841 = vmatpush1.msra.mxu0 0.0
      %1842 = vmatprep.subr.mxu0 0.0
      %1843 = vmatpush1.msra.mxu0 0.0
      %1844 = vmatprep.subr.mxu0 0.0
      %1845 = vmatpush1.msra.mxu0 0.0
      %1846 = vmatprep.subr.mxu0 0.0
      %1847 = vmatpush1.msra.mxu0 0.0
      %1848 = vmatprep.subr.mxu0 0.0
      %1849 = vmatpush1.msra.mxu0 0.0
      %1850 = vmatprep.subr.mxu0 0.0
      %1851 = vmatpush1.msra.mxu0 0.0
      %1852 = vmatprep.subr.mxu0 0.0
      %1853 = vmatpush1.msra.mxu0 0.0
      %1854 = vmatprep.subr.mxu0 0.0
      %1855 = vmatpush1.msra.mxu0 %v1826
      %1856 = vmatprep.subr.mxu0 0.0
      %1857 = vmatpush1.msra.mxu0 %v1812
      %1858 = vmatprep.subr.mxu0 0.0
      %1859 = vmatpush1.msra.mxu0 %v1810
      %1860 = vmatprep.subr.mxu0 0.0
      %1861 = vmatpush2.msra.mxu0 0.0
      %1862 = vmatprep.subr.mxu0 0.0
      %1863 = vmatpush2.msra.mxu0 0.0
      %1864 = vmatprep.subr.mxu0 0.0
      %1865 = vmatpush2.msra.mxu0 0.0
      %1866 = vmatprep.subr.mxu0 0.0
      %1867 = vmatpush2.msra.mxu0 0.0
      %1868 = vmatprep.subr.mxu0 0.0
      %1869 = vmatpush2.msra.mxu0 0.0
      %1870 = vmatprep.subr.mxu0 0.0
      %1871 = vmatpush2.msra.mxu0 0.0
      %1872 = vmatprep.subr.mxu0 0.0
      %1873 = vmatpush2.msra.mxu0 0.0
      %1874 = vmatprep.subr.mxu0 0.0
      %1875 = vmatpush2.msra.mxu0 0.0
      %1876 = vmatprep.subr.mxu0 0.0
      %1877 = vmatpush2.msra.mxu0 0.0
      %1878 = vmatprep.subr.mxu0 0.0
      %1879 = vmatpush2.msra.mxu0 0.0
      %1880 = vmatprep.subr.mxu0 0.0
      %1881 = vmatpush2.msra.mxu0 0.0
      %1882 = vmatprep.subr.mxu0 0.0
      %1883 = vmatpush2.msra.mxu0 0.0
      %1884 = vmatprep.subr.mxu0 0.0
      %1885 = vmatpush2.msra.mxu0 0.0
      %1886 = vmatprep.subr.mxu0 0.0
      %1887 = vmatpush2.msra.mxu0 0.0
      %1888 = vmatprep.subr.mxu0 0.0
      %1889 = vmatpush2.msra.mxu0 0.0
      %1890 = vmatprep.subr.mxu0 0.0
      %1891 = vmatpush2.msra.mxu0 0.0
      %1892 = vmatprep.mubr.f32.mxu0 0.0
      %1893 = vmatmul.mubr.f32.gmra.mxu0 %v1818
      %v1894 = vpop.f32.mrf.mxu0
      %v1895 = vadd.f32 0.0, %v1894
      %v1896 = vpop.f32.mrf.mxu0
      %1897 = vmatprep.mubr.f32.mxu0 0.0
      %1898 = vmatmul.mubr.f32.gmra.mxu0 %v1821
      %v1899 = vpop.f32.mrf.mxu0
      %v1900 = vadd.f32 0.0, %v1899
      %v1901 = vpop.f32.mrf.mxu0
      %1902 = vmatprep.mubr.f32.mxu0 0.0
      %1903 = vmatmul.mubr.f32.gmra.mxu0 %v1824
      %v1904 = vpop.f32.mrf.mxu0
      %v1905 = vadd.f32 0.0, %v1904
      %v1906 = vpop.f32.mrf.mxu0
      %1907 = vdwg.mxu0
      %1911 = vrot.lane.b32.xlu0 %v1895, 16
      %v1912 = vpop.permute.xlu0 %1911
      %1913 = vrot.lane.b32.xlu0 %v1900, 16
      %v1914 = vpop.permute.xlu0 %1913
      %1915 = vrot.lane.b32.xlu0 %v1905, 16
      %v1916 = vpop.permute.xlu0 %1915
      %vm1920 = vcmask 195712
      %1921 = vst.msk [vmem:[#allocation3] sm:$0xff] %vm1920, %v1912
      %1922 = vst.msk [vmem:[#allocation3 + $0x8] sm:$0xff] %vm1920, %v1914
      %vm1923 = vcmask 188544
      %1924 = vst.msk [vmem:[#allocation3 + $0x10] sm:$0x1] %vm1923, %v1916
      %v1925 = vld [vmem:[#allocation2] sm:$0xff]
      %v1926 = vld [vmem:[#allocation2 + $0x8] sm:$0xff]
      %v1927 = vld [vmem:[#allocation2 + $0x10] sm:$0x1]
      %v1928 = vmul.f32 %v1925, 0.35355338
      %v1929 = vmul.f32 %v1926, 0.35355338
      %v1930 = vmul.f32 %v1927, 0.35355338
      %s1931 = scalar_lea.vmem %s744, 72
      %v1932 = vld [vmem:[%s1931] sm:$0xff]
      %v1933 = vld [vmem:[%s1931 + $0x8] sm:$0xff]
      %v1934 = vld [vmem:[%s1931 + $0x10] sm:$0x1]
      %1938 = vrot.lane.b32.xlu0 %v1928, 104
      %v1939 = vpop.permute.xlu0 %1938
      %1940 = vrot.lane.b32.xlu0 %v1929, 104
      %v1941 = vpop.permute.xlu0 %1940
      %1942 = vrot.lane.b32.xlu0 %v1930, 104
      %v1943 = vpop.permute.xlu0 %1942
      %1947 = vrot.lane.b32.xlu0 %v1925, 72
      %v1948 = vpop.permute.xlu0 %1947
      %1949 = vrot.lane.b32.xlu0 %v1926, 72
      %v1950 = vpop.permute.xlu0 %1949
      %1951 = vrot.lane.b32.xlu0 %v1927, 72
      %v1952 = vpop.permute.xlu0 %1951
      %v1953 = vsel %vm1152, %v1939, 0
      %v1955 = vsel %vm1152, %v1941, 0
      %v1957 = vsel %vm1152, %v1943, 0
      %v1959 = vsel %vm1152, %v1948, 0
      %v1961 = vsel %vm1152, %v1950, 0
      %v1963 = vsel %vm1152, %v1952, 0
      %1965 = vmatprep.subr.mxu0 0.0
      %1966 = vmatpush1.xpose.msra.mxu0 0.0
      %1967 = vmatprep.subr.mxu0 0.0
      %1968 = vmatpush1.xpose.msra.mxu0 0.0
      %1969 = vmatprep.subr.mxu0 0.0
      %1970 = vmatpush1.xpose.msra.mxu0 0.0
      %1971 = vmatprep.subr.mxu0 0.0
      %1972 = vmatpush1.xpose.msra.mxu0 0.0
      %1973 = vmatprep.subr.mxu0 0.0
      %1974 = vmatpush1.xpose.msra.mxu0 0.0
      %1975 = vmatprep.subr.mxu0 0.0
      %1976 = vmatpush1.xpose.msra.mxu0 0.0
      %1977 = vmatprep.subr.mxu0 0.0
      %1978 = vmatpush1.xpose.msra.mxu0 0.0
      %1979 = vmatprep.subr.mxu0 0.0
      %1980 = vmatpush1.xpose.msra.mxu0 0.0
      %1981 = vmatprep.subr.mxu0 0.0
      %1982 = vmatpush1.xpose.msra.mxu0 0.0
      %1983 = vmatprep.subr.mxu0 0.0
      %1984 = vmatpush1.xpose.msra.mxu0 0.0
      %1985 = vmatprep.subr.mxu0 0.0
      %1986 = vmatpush1.xpose.msra.mxu0 0.0
      %1987 = vmatprep.subr.mxu0 0.0
      %1988 = vmatpush1.xpose.msra.mxu0 0.0
      %1989 = vmatprep.subr.mxu0 0.0
      %1990 = vmatpush1.xpose.msra.mxu0 0.0
      %1991 = vmatprep.subr.mxu0 0.0
      %1992 = vmatpush1.xpose.msra.mxu0 %v1963
      %1993 = vmatprep.subr.mxu0 0.0
      %1994 = vmatpush1.xpose.msra.mxu0 %v1961
      %1995 = vmatprep.subr.mxu0 0.0
      %1996 = vmatpush1.xpose.msra.mxu0 %v1959
      %1997 = vmatprep.subr.mxu0 0.0
      %1998 = vmatpush2.xpose.msra.mxu0 0.0
      %1999 = vmatprep.subr.mxu0 0.0
      %2000 = vmatpush2.xpose.msra.mxu0 0.0
      %2001 = vmatprep.subr.mxu0 0.0
      %2002 = vmatpush2.xpose.msra.mxu0 0.0
      %2003 = vmatprep.subr.mxu0 0.0
      %2004 = vmatpush2.xpose.msra.mxu0 0.0
      %2005 = vmatprep.subr.mxu0 0.0
      %2006 = vmatpush2.xpose.msra.mxu0 0.0
      %2007 = vmatprep.subr.mxu0 0.0
      %2008 = vmatpush2.xpose.msra.mxu0 0.0
      %2009 = vmatprep.subr.mxu0 0.0
      %2010 = vmatpush2.xpose.msra.mxu0 0.0
      %2011 = vmatprep.subr.mxu0 0.0
      %2012 = vmatpush2.xpose.msra.mxu0 0.0
      %2013 = vmatprep.subr.mxu0 0.0
      %2014 = vmatpush2.xpose.msra.mxu0 0.0
      %2015 = vmatprep.subr.mxu0 0.0
      %2016 = vmatpush2.xpose.msra.mxu0 0.0
      %2017 = vmatprep.subr.mxu0 0.0
      %2018 = vmatpush2.xpose.msra.mxu0 0.0
      %2019 = vmatprep.subr.mxu0 0.0
      %2020 = vmatpush2.xpose.msra.mxu0 0.0
      %2021 = vmatprep.subr.mxu0 0.0
      %2022 = vmatpush2.xpose.msra.mxu0 0.0
      %2023 = vmatprep.subr.mxu0 0.0
      %2024 = vmatpush2.xpose.msra.mxu0 0.0
      %2025 = vmatprep.subr.mxu0 0.0
      %2026 = vmatpush2.xpose.msra.mxu0 0.0
      %2027 = vmatprep.subr.mxu0 0.0
      %2028 = vmatpush2.xpose.msra.mxu0 0.0
      %2029 = vmatprep.mubr.f32.mxu0 0.0
      %2030 = vmatmul.mubr.f32.gmra.mxu0 %v1953
      %v2031 = vpop.f32.mrf.mxu0
      %v2032 = vadd.f32 %v1932, %v2031
      %v2033 = vpop.f32.mrf.mxu0
      %2034 = vmatprep.mubr.f32.mxu0 0.0
      %2035 = vmatmul.mubr.f32.gmra.mxu0 %v1955
      %v2036 = vpop.f32.mrf.mxu0
      %v2037 = vadd.f32 %v1933, %v2036
      %v2038 = vpop.f32.mrf.mxu0
      %2039 = vmatprep.mubr.f32.mxu0 0.0
      %2040 = vmatmul.mubr.f32.gmra.mxu0 %v1957
      %v2041 = vpop.f32.mrf.mxu0
      %v2042 = vadd.f32 %v1934, %v2041
      %v2043 = vpop.f32.mrf.mxu0
      %2044 = vdwg.mxu0
      %v2045 = vsel %vm1248, %v2032, -inf
      %2046 = vmax.xlane.f32.xlu0 %v2045
      %v2047 = vpop.xlane.xlu0 %2046
      %v2048 = vsel %vm1248, %v2037, -inf
      %2049 = vmax.xlane.f32.xlu0 %v2048
      %v2050 = vpop.xlane.xlu0 %2049
      %v2051 = vsel %vm1255, %v2042, -inf
      %2052 = vmax.xlane.f32.xlu0 %v2051
      %v2053 = vpop.xlane.xlu0 %2052
      %v2054 = vsub.f32 %v2032, %v2047
      %v2055 = vsub.f32 %v2037, %v2050
      %v2056 = vsub.f32 %v2042, %v2053
      %v2057 = vmul.f32 %v2054, 1.442695
      %v2058 = vpow.pop %v2057
      %v2059 = vmul.f32 %v2055, 1.442695
      %v2060 = vpow.pop %v2059
      %v2061 = vmul.f32 %v2056, 1.442695
      %v2062 = vpow.pop %v2061
      %v2063 = vsel %vm1248, %v2058, 0.0
      %2064 = vadd.xlane.f32.xlu0 %v2063
      %v2065 = vpop.xlane.xlu0 %2064
      %v2066 = vsel %vm1248, %v2060, 0.0
      %2067 = vadd.xlane.f32.xlu0 %v2066
      %v2068 = vpop.xlane.xlu0 %2067
      %v2069 = vsel %vm1255, %v2062, 0.0
      %2070 = vadd.xlane.f32.xlu0 %v2069
      %v2071 = vpop.xlane.xlu0 %2070
      %v2072 = vrcp.pop %v2065
      %v2073 = vrcp.pop %v2068
      %v2074 = vrcp.pop %v2071
      %v2075 = vmul.f32 %v2058, %v2072
      %v2076 = vmul.f32 %v2060, %v2073
      %v2077 = vmul.f32 %v2062, %v2074
      %2078 = vrot.lane.b32.xlu0 %v1925, 40
      %v2079 = vpop.permute.xlu0 %2078
      %2080 = vrot.lane.b32.xlu0 %v1926, 40
      %v2081 = vpop.permute.xlu0 %2080
      %2082 = vrot.lane.b32.xlu0 %v1927, 40
      %v2083 = vpop.permute.xlu0 %2082
      %v2087 = vsel %vm1248, %v2075, 0
      %v2090 = vsel %vm1248, %v2076, 0
      %v2093 = vsel %vm1248, %v2077, 0
      %v2095 = vsel %vm1300, %v2083, 0
      %2097 = vmatprep.subr.mxu0 0.0
      %2098 = vmatpush1.msra.mxu0 0.0
      %2099 = vmatprep.subr.mxu0 0.0
      %2100 = vmatpush1.msra.mxu0 0.0
      %2101 = vmatprep.subr.mxu0 0.0
      %2102 = vmatpush1.msra.mxu0 0.0
      %2103 = vmatprep.subr.mxu0 0.0
      %2104 = vmatpush1.msra.mxu0 0.0
      %2105 = vmatprep.subr.mxu0 0.0
      %2106 = vmatpush1.msra.mxu0 0.0
      %2107 = vmatprep.subr.mxu0 0.0
      %2108 = vmatpush1.msra.mxu0 0.0
      %2109 = vmatprep.subr.mxu0 0.0
      %2110 = vmatpush1.msra.mxu0 0.0
      %2111 = vmatprep.subr.mxu0 0.0
      %2112 = vmatpush1.msra.mxu0 0.0
      %2113 = vmatprep.subr.mxu0 0.0
      %2114 = vmatpush1.msra.mxu0 0.0
      %2115 = vmatprep.subr.mxu0 0.0
      %2116 = vmatpush1.msra.mxu0 0.0
      %2117 = vmatprep.subr.mxu0 0.0
      %2118 = vmatpush1.msra.mxu0 0.0
      %2119 = vmatprep.subr.mxu0 0.0
      %2120 = vmatpush1.msra.mxu0 0.0
      %2121 = vmatprep.subr.mxu0 0.0
      %2122 = vmatpush1.msra.mxu0 0.0
      %2123 = vmatprep.subr.mxu0 0.0
      %2124 = vmatpush1.msra.mxu0 %v2095
      %2125 = vmatprep.subr.mxu0 0.0
      %2126 = vmatpush1.msra.mxu0 %v2081
      %2127 = vmatprep.subr.mxu0 0.0
      %2128 = vmatpush1.msra.mxu0 %v2079
      %2129 = vmatprep.subr.mxu0 0.0
      %2130 = vmatpush2.msra.mxu0 0.0
      %2131 = vmatprep.subr.mxu0 0.0
      %2132 = vmatpush2.msra.mxu0 0.0
      %2133 = vmatprep.subr.mxu0 0.0
      %2134 = vmatpush2.msra.mxu0 0.0
      %2135 = vmatprep.subr.mxu0 0.0
      %2136 = vmatpush2.msra.mxu0 0.0
      %2137 = vmatprep.subr.mxu0 0.0
      %2138 = vmatpush2.msra.mxu0 0.0
      %2139 = vmatprep.subr.mxu0 0.0
      %2140 = vmatpush2.msra.mxu0 0.0
      %2141 = vmatprep.subr.mxu0 0.0
      %2142 = vmatpush2.msra.mxu0 0.0
      %2143 = vmatprep.subr.mxu0 0.0
      %2144 = vmatpush2.msra.mxu0 0.0
      %2145 = vmatprep.subr.mxu0 0.0
      %2146 = vmatpush2.msra.mxu0 0.0
      %2147 = vmatprep.subr.mxu0 0.0
      %2148 = vmatpush2.msra.mxu0 0.0
      %2149 = vmatprep.subr.mxu0 0.0
      %2150 = vmatpush2.msra.mxu0 0.0
      %2151 = vmatprep.subr.mxu0 0.0
      %2152 = vmatpush2.msra.mxu0 0.0
      %2153 = vmatprep.subr.mxu0 0.0
      %2154 = vmatpush2.msra.mxu0 0.0
      %2155 = vmatprep.subr.mxu0 0.0
      %2156 = vmatpush2.msra.mxu0 0.0
      %2157 = vmatprep.subr.mxu0 0.0
      %2158 = vmatpush2.msra.mxu0 0.0
      %2159 = vmatprep.subr.mxu0 0.0
      %2160 = vmatpush2.msra.mxu0 0.0
      %2161 = vmatprep.mubr.f32.mxu0 0.0
      %2162 = vmatmul.mubr.f32.gmra.mxu0 %v2087
      %v2163 = vpop.f32.mrf.mxu0
      %v2164 = vadd.f32 0.0, %v2163
      %v2165 = vpop.f32.mrf.mxu0
      %2166 = vmatprep.mubr.f32.mxu0 0.0
      %2167 = vmatmul.mubr.f32.gmra.mxu0 %v2090
      %v2168 = vpop.f32.mrf.mxu0
      %v2169 = vadd.f32 0.0, %v2168
      %v2170 = vpop.f32.mrf.mxu0
      %2171 = vmatprep.mubr.f32.mxu0 0.0
      %2172 = vmatmul.mubr.f32.gmra.mxu0 %v2093
      %v2173 = vpop.f32.mrf.mxu0
      %v2174 = vadd.f32 0.0, %v2173
      %v2175 = vpop.f32.mrf.mxu0
      %2176 = vdwg.mxu0
      %2180 = vrot.lane.b32.xlu0 %v2164, 24
      %v2181 = vpop.permute.xlu0 %2180
      %2182 = vrot.lane.b32.xlu0 %v2169, 24
      %v2183 = vpop.permute.xlu0 %2182
      %2184 = vrot.lane.b32.xlu0 %v2174, 24
      %v2185 = vpop.permute.xlu0 %2184
      %vm2189 = vcmask 261312
      %2190 = vst.msk [vmem:[#allocation3] sm:$0xff] %vm2189, %v2181
      %2191 = vst.msk [vmem:[#allocation3 + $0x8] sm:$0xff] %vm2189, %v2183
      %vm2192 = vcmask 254144
      %2193 = vst.msk [vmem:[#allocation3 + $0x10] sm:$0x1] %vm2192, %v2185
      %v2194 = vld [vmem:[#allocation2 + $0x11] sm:$0xff]
      %v2195 = vld [vmem:[#allocation2 + $0x19] sm:$0xff]
      %v2196 = vld [vmem:[#allocation2 + $0x21] sm:$0x1]
      %v2197 = vmul.f32 %v2194, 0.35355338
      %v2198 = vmul.f32 %v2195, 0.35355338
      %v2199 = vmul.f32 %v2196, 0.35355338
      %v2200 = vld [vmem:[%s744] sm:$0xff]
      %v2201 = vld [vmem:[%s744 + $0x8] sm:$0xff]
      %v2202 = vld [vmem:[%s744 + $0x10] sm:$0x1]
      %2206 = vrot.lane.b32.xlu0 %v2194, 96
      %v2207 = vpop.permute.xlu0 %2206
      %2208 = vrot.lane.b32.xlu0 %v2195, 96
      %v2209 = vpop.permute.xlu0 %2208
      %2210 = vrot.lane.b32.xlu0 %v2196, 96
      %v2211 = vpop.permute.xlu0 %2210
      %v2213 = vsel %vm1152, %v2197, 0
      %v2216 = vsel %vm1152, %v2198, 0
      %v2219 = vsel %vm1152, %v2199, 0
      %v2221 = vsel %vm1152, %v2207, 0
      %v2223 = vsel %vm1152, %v2209, 0
      %v2225 = vsel %vm1152, %v2211, 0
      %2227 = vmatprep.subr.mxu0 0.0
      %2228 = vmatpush1.xpose.msra.mxu0 0.0
      %2229 = vmatprep.subr.mxu0 0.0
      %2230 = vmatpush1.xpose.msra.mxu0 0.0
      %2231 = vmatprep.subr.mxu0 0.0
      %2232 = vmatpush1.xpose.msra.mxu0 0.0
      %2233 = vmatprep.subr.mxu0 0.0
      %2234 = vmatpush1.xpose.msra.mxu0 0.0
      %2235 = vmatprep.subr.mxu0 0.0
      %2236 = vmatpush1.xpose.msra.mxu0 0.0
      %2237 = vmatprep.subr.mxu0 0.0
      %2238 = vmatpush1.xpose.msra.mxu0 0.0
      %2239 = vmatprep.subr.mxu0 0.0
      %2240 = vmatpush1.xpose.msra.mxu0 0.0
      %2241 = vmatprep.subr.mxu0 0.0
      %2242 = vmatpush1.xpose.msra.mxu0 0.0
      %2243 = vmatprep.subr.mxu0 0.0
      %2244 = vmatpush1.xpose.msra.mxu0 0.0
      %2245 = vmatprep.subr.mxu0 0.0
      %2246 = vmatpush1.xpose.msra.mxu0 0.0
      %2247 = vmatprep.subr.mxu0 0.0
      %2248 = vmatpush1.xpose.msra.mxu0 0.0
      %2249 = vmatprep.subr.mxu0 0.0
      %2250 = vmatpush1.xpose.msra.mxu0 0.0
      %2251 = vmatprep.subr.mxu0 0.0
      %2252 = vmatpush1.xpose.msra.mxu0 0.0
      %2253 = vmatprep.subr.mxu0 0.0
      %2254 = vmatpush1.xpose.msra.mxu0 %v2225
      %2255 = vmatprep.subr.mxu0 0.0
      %2256 = vmatpush1.xpose.msra.mxu0 %v2223
      %2257 = vmatprep.subr.mxu0 0.0
      %2258 = vmatpush1.xpose.msra.mxu0 %v2221
      %2259 = vmatprep.subr.mxu0 0.0
      %2260 = vmatpush2.xpose.msra.mxu0 0.0
      %2261 = vmatprep.subr.mxu0 0.0
      %2262 = vmatpush2.xpose.msra.mxu0 0.0
      %2263 = vmatprep.subr.mxu0 0.0
      %2264 = vmatpush2.xpose.msra.mxu0 0.0
      %2265 = vmatprep.subr.mxu0 0.0
      %2266 = vmatpush2.xpose.msra.mxu0 0.0
      %2267 = vmatprep.subr.mxu0 0.0
      %2268 = vmatpush2.xpose.msra.mxu0 0.0
      %2269 = vmatprep.subr.mxu0 0.0
      %2270 = vmatpush2.xpose.msra.mxu0 0.0
      %2271 = vmatprep.subr.mxu0 0.0
      %2272 = vmatpush2.xpose.msra.mxu0 0.0
      %2273 = vmatprep.subr.mxu0 0.0
      %2274 = vmatpush2.xpose.msra.mxu0 0.0
      %2275 = vmatprep.subr.mxu0 0.0
      %2276 = vmatpush2.xpose.msra.mxu0 0.0
      %2277 = vmatprep.subr.mxu0 0.0
      %2278 = vmatpush2.xpose.msra.mxu0 0.0
      %2279 = vmatprep.subr.mxu0 0.0
      %2280 = vmatpush2.xpose.msra.mxu0 0.0
      %2281 = vmatprep.subr.mxu0 0.0
      %2282 = vmatpush2.xpose.msra.mxu0 0.0
      %2283 = vmatprep.subr.mxu0 0.0
      %2284 = vmatpush2.xpose.msra.mxu0 0.0
      %2285 = vmatprep.subr.mxu0 0.0
      %2286 = vmatpush2.xpose.msra.mxu0 0.0
      %2287 = vmatprep.subr.mxu0 0.0
      %2288 = vmatpush2.xpose.msra.mxu0 0.0
      %2289 = vmatprep.subr.mxu0 0.0
      %2290 = vmatpush2.xpose.msra.mxu0 0.0
      %2291 = vmatprep.mubr.f32.mxu0 0.0
      %2292 = vmatmul.mubr.f32.gmra.mxu0 %v2213
      %v2293 = vpop.f32.mrf.mxu0
      %v2294 = vadd.f32 %v2200, %v2293
      %v2295 = vpop.f32.mrf.mxu0
      %2296 = vmatprep.mubr.f32.mxu0 0.0
      %2297 = vmatmul.mubr.f32.gmra.mxu0 %v2216
      %v2298 = vpop.f32.mrf.mxu0
      %v2299 = vadd.f32 %v2201, %v2298
      %v2300 = vpop.f32.mrf.mxu0
      %2301 = vmatprep.mubr.f32.mxu0 0.0
      %2302 = vmatmul.mubr.f32.gmra.mxu0 %v2219
      %v2303 = vpop.f32.mrf.mxu0
      %v2304 = vadd.f32 %v2202, %v2303
      %v2305 = vpop.f32.mrf.mxu0
      %2306 = vdwg.mxu0
      %v2307 = vsel %vm1248, %v2294, -inf
      %2308 = vmax.xlane.f32.xlu0 %v2307
      %v2309 = vpop.xlane.xlu0 %2308
      %v2310 = vsel %vm1248, %v2299, -inf
      %2311 = vmax.xlane.f32.xlu0 %v2310
      %v2312 = vpop.xlane.xlu0 %2311
      %v2313 = vsel %vm1255, %v2304, -inf
      %2314 = vmax.xlane.f32.xlu0 %v2313
      %v2315 = vpop.xlane.xlu0 %2314
      %v2316 = vsub.f32 %v2294, %v2309
      %v2317 = vsub.f32 %v2299, %v2312
      %v2318 = vsub.f32 %v2304, %v2315
      %v2319 = vmul.f32 %v2316, 1.442695
      %v2320 = vpow.pop %v2319
      %v2321 = vmul.f32 %v2317, 1.442695
      %v2322 = vpow.pop %v2321
      %v2323 = vmul.f32 %v2318, 1.442695
      %v2324 = vpow.pop %v2323
      %v2325 = vsel %vm1248, %v2320, 0.0
      %2326 = vadd.xlane.f32.xlu0 %v2325
      %v2327 = vpop.xlane.xlu0 %2326
      %v2328 = vsel %vm1248, %v2322, 0.0
      %2329 = vadd.xlane.f32.xlu0 %v2328
      %v2330 = vpop.xlane.xlu0 %2329
      %v2331 = vsel %vm1255, %v2324, 0.0
      %2332 = vadd.xlane.f32.xlu0 %v2331
      %v2333 = vpop.xlane.xlu0 %2332
      %v2334 = vrcp.pop %v2327
      %v2335 = vrcp.pop %v2330
      %v2336 = vrcp.pop %v2333
      %v2337 = vmul.f32 %v2320, %v2334
      %v2338 = vmul.f32 %v2322, %v2335
      %v2339 = vmul.f32 %v2324, %v2336
      %2340 = vrot.lane.b32.xlu0 %v2194, 64
      %v2341 = vpop.permute.xlu0 %2340
      %2342 = vrot.lane.b32.xlu0 %v2195, 64
      %v2343 = vpop.permute.xlu0 %2342
      %2344 = vrot.lane.b32.xlu0 %v2196, 64
      %v2345 = vpop.permute.xlu0 %2344
      %v2349 = vsel %vm1248, %v2337, 0
      %v2352 = vsel %vm1248, %v2338, 0
      %v2355 = vsel %vm1248, %v2339, 0
      %v2357 = vsel %vm1300, %v2345, 0
      %2359 = vmatprep.subr.mxu0 0.0
      %2360 = vmatpush1.msra.mxu0 0.0
      %2361 = vmatprep.subr.mxu0 0.0
      %2362 = vmatpush1.msra.mxu0 0.0
      %2363 = vmatprep.subr.mxu0 0.0
      %2364 = vmatpush1.msra.mxu0 0.0
      %2365 = vmatprep.subr.mxu0 0.0
      %2366 = vmatpush1.msra.mxu0 0.0
      %2367 = vmatprep.subr.mxu0 0.0
      %2368 = vmatpush1.msra.mxu0 0.0
      %2369 = vmatprep.subr.mxu0 0.0
      %2370 = vmatpush1.msra.mxu0 0.0
      %2371 = vmatprep.subr.mxu0 0.0
      %2372 = vmatpush1.msra.mxu0 0.0
      %2373 = vmatprep.subr.mxu0 0.0
      %2374 = vmatpush1.msra.mxu0 0.0
      %2375 = vmatprep.subr.mxu0 0.0
      %2376 = vmatpush1.msra.mxu0 0.0
      %2377 = vmatprep.subr.mxu0 0.0
      %2378 = vmatpush1.msra.mxu0 0.0
      %2379 = vmatprep.subr.mxu0 0.0
      %2380 = vmatpush1.msra.mxu0 0.0
      %2381 = vmatprep.subr.mxu0 0.0
      %2382 = vmatpush1.msra.mxu0 0.0
      %2383 = vmatprep.subr.mxu0 0.0
      %2384 = vmatpush1.msra.mxu0 0.0
      %2385 = vmatprep.subr.mxu0 0.0
      %2386 = vmatpush1.msra.mxu0 %v2357
      %2387 = vmatprep.subr.mxu0 0.0
      %2388 = vmatpush1.msra.mxu0 %v2343
      %2389 = vmatprep.subr.mxu0 0.0
      %2390 = vmatpush1.msra.mxu0 %v2341
      %2391 = vmatprep.subr.mxu0 0.0
      %2392 = vmatpush2.msra.mxu0 0.0
      %2393 = vmatprep.subr.mxu0 0.0
      %2394 = vmatpush2.msra.mxu0 0.0
      %2395 = vmatprep.subr.mxu0 0.0
      %2396 = vmatpush2.msra.mxu0 0.0
      %2397 = vmatprep.subr.mxu0 0.0
      %2398 = vmatpush2.msra.mxu0 0.0
      %2399 = vmatprep.subr.mxu0 0.0
      %2400 = vmatpush2.msra.mxu0 0.0
      %2401 = vmatprep.subr.mxu0 0.0
      %2402 = vmatpush2.msra.mxu0 0.0
      %2403 = vmatprep.subr.mxu0 0.0
      %2404 = vmatpush2.msra.mxu0 0.0
      %2405 = vmatprep.subr.mxu0 0.0
      %2406 = vmatpush2.msra.mxu0 0.0
      %2407 = vmatprep.subr.mxu0 0.0
      %2408 = vmatpush2.msra.mxu0 0.0
      %2409 = vmatprep.subr.mxu0 0.0
      %2410 = vmatpush2.msra.mxu0 0.0
      %2411 = vmatprep.subr.mxu0 0.0
      %2412 = vmatpush2.msra.mxu0 0.0
      %2413 = vmatprep.subr.mxu0 0.0
      %2414 = vmatpush2.msra.mxu0 0.0
      %2415 = vmatprep.subr.mxu0 0.0
      %2416 = vmatpush2.msra.mxu0 0.0
      %2417 = vmatprep.subr.mxu0 0.0
      %2418 = vmatpush2.msra.mxu0 0.0
      %2419 = vmatprep.subr.mxu0 0.0
      %2420 = vmatpush2.msra.mxu0 0.0
      %2421 = vmatprep.subr.mxu0 0.0
      %2422 = vmatpush2.msra.mxu0 0.0
      %2423 = vmatprep.mubr.f32.mxu0 0.0
      %2424 = vmatmul.mubr.f32.gmra.mxu0 %v2349
      %v2425 = vpop.f32.mrf.mxu0
      %v2426 = vadd.f32 0.0, %v2425
      %v2427 = vpop.f32.mrf.mxu0
      %2428 = vmatprep.mubr.f32.mxu0 0.0
      %2429 = vmatmul.mubr.f32.gmra.mxu0 %v2352
      %v2430 = vpop.f32.mrf.mxu0
      %v2431 = vadd.f32 0.0, %v2430
      %v2432 = vpop.f32.mrf.mxu0
      %2433 = vmatprep.mubr.f32.mxu0 0.0
      %2434 = vmatmul.mubr.f32.gmra.mxu0 %v2355
      %v2435 = vpop.f32.mrf.mxu0
      %v2436 = vadd.f32 0.0, %v2435
      %v2437 = vpop.f32.mrf.mxu0
      %2438 = vdwg.mxu0
      %2439 = vst.msk [vmem:[#allocation3 + $0x11] sm:$0xff] %vm1152, %v2426
      %2440 = vst.msk [vmem:[#allocation3 + $0x19] sm:$0xff] %vm1152, %v2431
      %2441 = vst.msk [vmem:[#allocation3 + $0x21] sm:$0x1] %vm1385, %v2436
      %v2442 = vld [vmem:[#allocation2 + $0x11] sm:$0xff]
      %v2443 = vld [vmem:[#allocation2 + $0x19] sm:$0xff]
      %v2444 = vld [vmem:[#allocation2 + $0x21] sm:$0x1]
      %v2445 = vmul.f32 %v2442, 0.35355338
      %v2446 = vmul.f32 %v2443, 0.35355338
      %v2447 = vmul.f32 %v2444, 0.35355338
      %v2448 = vld [vmem:[%s1393] sm:$0xff]
      %v2449 = vld [vmem:[%s1393 + $0x8] sm:$0xff]
      %v2450 = vld [vmem:[%s1393 + $0x10] sm:$0x1]
      %2454 = vrot.lane.b32.xlu0 %v2445, 120
      %v2455 = vpop.permute.xlu0 %2454
      %2456 = vrot.lane.b32.xlu0 %v2446, 120
      %v2457 = vpop.permute.xlu0 %2456
      %2458 = vrot.lane.b32.xlu0 %v2447, 120
      %v2459 = vpop.permute.xlu0 %2458
      %2463 = vrot.lane.b32.xlu0 %v2442, 88
      %v2464 = vpop.permute.xlu0 %2463
      %2465 = vrot.lane.b32.xlu0 %v2443, 88
      %v2466 = vpop.permute.xlu0 %2465
      %2467 = vrot.lane.b32.xlu0 %v2444, 88
      %v2468 = vpop.permute.xlu0 %2467
      %v2469 = vsel %vm1152, %v2455, 0
      %v2471 = vsel %vm1152, %v2457, 0
      %v2473 = vsel %vm1152, %v2459, 0
      %v2475 = vsel %vm1152, %v2464, 0
      %v2477 = vsel %vm1152, %v2466, 0
      %v2479 = vsel %vm1152, %v2468, 0
      %2481 = vmatprep.subr.mxu0 0.0
      %2482 = vmatpush1.xpose.msra.mxu0 0.0
      %2483 = vmatprep.subr.mxu0 0.0
      %2484 = vmatpush1.xpose.msra.mxu0 0.0
      %2485 = vmatprep.subr.mxu0 0.0
      %2486 = vmatpush1.xpose.msra.mxu0 0.0
      %2487 = vmatprep.subr.mxu0 0.0
      %2488 = vmatpush1.xpose.msra.mxu0 0.0
      %2489 = vmatprep.subr.mxu0 0.0
      %2490 = vmatpush1.xpose.msra.mxu0 0.0
      %2491 = vmatprep.subr.mxu0 0.0
      %2492 = vmatpush1.xpose.msra.mxu0 0.0
      %2493 = vmatprep.subr.mxu0 0.0
      %2494 = vmatpush1.xpose.msra.mxu0 0.0
      %2495 = vmatprep.subr.mxu0 0.0
      %2496 = vmatpush1.xpose.msra.mxu0 0.0
      %2497 = vmatprep.subr.mxu0 0.0
      %2498 = vmatpush1.xpose.msra.mxu0 0.0
      %2499 = vmatprep.subr.mxu0 0.0
      %2500 = vmatpush1.xpose.msra.mxu0 0.0
      %2501 = vmatprep.subr.mxu0 0.0
      %2502 = vmatpush1.xpose.msra.mxu0 0.0
      %2503 = vmatprep.subr.mxu0 0.0
      %2504 = vmatpush1.xpose.msra.mxu0 0.0
      %2505 = vmatprep.subr.mxu0 0.0
      %2506 = vmatpush1.xpose.msra.mxu0 0.0
      %2507 = vmatprep.subr.mxu0 0.0
      %2508 = vmatpush1.xpose.msra.mxu0 %v2479
      %2509 = vmatprep.subr.mxu0 0.0
      %2510 = vmatpush1.xpose.msra.mxu0 %v2477
      %2511 = vmatprep.subr.mxu0 0.0
      %2512 = vmatpush1.xpose.msra.mxu0 %v2475
      %2513 = vmatprep.subr.mxu0 0.0
      %2514 = vmatpush2.xpose.msra.mxu0 0.0
      %2515 = vmatprep.subr.mxu0 0.0
      %2516 = vmatpush2.xpose.msra.mxu0 0.0
      %2517 = vmatprep.subr.mxu0 0.0
      %2518 = vmatpush2.xpose.msra.mxu0 0.0
      %2519 = vmatprep.subr.mxu0 0.0
      %2520 = vmatpush2.xpose.msra.mxu0 0.0
      %2521 = vmatprep.subr.mxu0 0.0
      %2522 = vmatpush2.xpose.msra.mxu0 0.0
      %2523 = vmatprep.subr.mxu0 0.0
      %2524 = vmatpush2.xpose.msra.mxu0 0.0
      %2525 = vmatprep.subr.mxu0 0.0
      %2526 = vmatpush2.xpose.msra.mxu0 0.0
      %2527 = vmatprep.subr.mxu0 0.0
      %2528 = vmatpush2.xpose.msra.mxu0 0.0
      %2529 = vmatprep.subr.mxu0 0.0
      %2530 = vmatpush2.xpose.msra.mxu0 0.0
      %2531 = vmatprep.subr.mxu0 0.0
      %2532 = vmatpush2.xpose.msra.mxu0 0.0
      %2533 = vmatprep.subr.mxu0 0.0
      %2534 = vmatpush2.xpose.msra.mxu0 0.0
      %2535 = vmatprep.subr.mxu0 0.0
      %2536 = vmatpush2.xpose.msra.mxu0 0.0
      %2537 = vmatprep.subr.mxu0 0.0
      %2538 = vmatpush2.xpose.msra.mxu0 0.0
      %2539 = vmatprep.subr.mxu0 0.0
      %2540 = vmatpush2.xpose.msra.mxu0 0.0
      %2541 = vmatprep.subr.mxu0 0.0
      %2542 = vmatpush2.xpose.msra.mxu0 0.0
      %2543 = vmatprep.subr.mxu0 0.0
      %2544 = vmatpush2.xpose.msra.mxu0 0.0
      %2545 = vmatprep.mubr.f32.mxu0 0.0
      %2546 = vmatmul.mubr.f32.gmra.mxu0 %v2469
      %v2547 = vpop.f32.mrf.mxu0
      %v2548 = vadd.f32 %v2448, %v2547
      %v2549 = vpop.f32.mrf.mxu0
      %2550 = vmatprep.mubr.f32.mxu0 0.0
      %2551 = vmatmul.mubr.f32.gmra.mxu0 %v2471
      %v2552 = vpop.f32.mrf.mxu0
      %v2553 = vadd.f32 %v2449, %v2552
      %v2554 = vpop.f32.mrf.mxu0
      %2555 = vmatprep.mubr.f32.mxu0 0.0
      %2556 = vmatmul.mubr.f32.gmra.mxu0 %v2473
      %v2557 = vpop.f32.mrf.mxu0
      %v2558 = vadd.f32 %v2450, %v2557
      %v2559 = vpop.f32.mrf.mxu0
      %2560 = vdwg.mxu0
      %v2561 = vsel %vm1248, %v2548, -inf
      %2562 = vmax.xlane.f32.xlu0 %v2561
      %v2563 = vpop.xlane.xlu0 %2562
      %v2564 = vsel %vm1248, %v2553, -inf
      %2565 = vmax.xlane.f32.xlu0 %v2564
      %v2566 = vpop.xlane.xlu0 %2565
      %v2567 = vsel %vm1255, %v2558, -inf
      %2568 = vmax.xlane.f32.xlu0 %v2567
      %v2569 = vpop.xlane.xlu0 %2568
      %v2570 = vsub.f32 %v2548, %v2563
      %v2571 = vsub.f32 %v2553, %v2566
      %v2572 = vsub.f32 %v2558, %v2569
      %v2573 = vmul.f32 %v2570, 1.442695
      %v2574 = vpow.pop %v2573
      %v2575 = vmul.f32 %v2571, 1.442695
      %v2576 = vpow.pop %v2575
      %v2577 = vmul.f32 %v2572, 1.442695
      %v2578 = vpow.pop %v2577
      %v2579 = vsel %vm1248, %v2574, 0.0
      %2580 = vadd.xlane.f32.xlu0 %v2579
      %v2581 = vpop.xlane.xlu0 %2580
      %v2582 = vsel %vm1248, %v2576, 0.0
      %2583 = vadd.xlane.f32.xlu0 %v2582
      %v2584 = vpop.xlane.xlu0 %2583
      %v2585 = vsel %vm1255, %v2578, 0.0
      %2586 = vadd.xlane.f32.xlu0 %v2585
      %v2587 = vpop.xlane.xlu0 %2586
      %v2588 = vrcp.pop %v2581
      %v2589 = vrcp.pop %v2584
      %v2590 = vrcp.pop %v2587
      %v2591 = vmul.f32 %v2574, %v2588
      %v2592 = vmul.f32 %v2576, %v2589
      %v2593 = vmul.f32 %v2578, %v2590
      %2594 = vrot.lane.b32.xlu0 %v2442, 56
      %v2595 = vpop.permute.xlu0 %2594
      %2596 = vrot.lane.b32.xlu0 %v2443, 56
      %v2597 = vpop.permute.xlu0 %2596
      %2598 = vrot.lane.b32.xlu0 %v2444, 56
      %v2599 = vpop.permute.xlu0 %2598
      %v2603 = vsel %vm1248, %v2591, 0
      %v2606 = vsel %vm1248, %v2592, 0
      %v2609 = vsel %vm1248, %v2593, 0
      %v2611 = vsel %vm1300, %v2599, 0
      %2613 = vmatprep.subr.mxu0 0.0
      %2614 = vmatpush1.msra.mxu0 0.0
      %2615 = vmatprep.subr.mxu0 0.0
      %2616 = vmatpush1.msra.mxu0 0.0
      %2617 = vmatprep.subr.mxu0 0.0
      %2618 = vmatpush1.msra.mxu0 0.0
      %2619 = vmatprep.subr.mxu0 0.0
      %2620 = vmatpush1.msra.mxu0 0.0
      %2621 = vmatprep.subr.mxu0 0.0
      %2622 = vmatpush1.msra.mxu0 0.0
      %2623 = vmatprep.subr.mxu0 0.0
      %2624 = vmatpush1.msra.mxu0 0.0
      %2625 = vmatprep.subr.mxu0 0.0
      %2626 = vmatpush1.msra.mxu0 0.0
      %2627 = vmatprep.subr.mxu0 0.0
      %2628 = vmatpush1.msra.mxu0 0.0
      %2629 = vmatprep.subr.mxu0 0.0
      %2630 = vmatpush1.msra.mxu0 0.0
      %2631 = vmatprep.subr.mxu0 0.0
      %2632 = vmatpush1.msra.mxu0 0.0
      %2633 = vmatprep.subr.mxu0 0.0
      %2634 = vmatpush1.msra.mxu0 0.0
      %2635 = vmatprep.subr.mxu0 0.0
      %2636 = vmatpush1.msra.mxu0 0.0
      %2637 = vmatprep.subr.mxu0 0.0
      %2638 = vmatpush1.msra.mxu0 0.0
      %2639 = vmatprep.subr.mxu0 0.0
      %2640 = vmatpush1.msra.mxu0 %v2611
      %2641 = vmatprep.subr.mxu0 0.0
      %2642 = vmatpush1.msra.mxu0 %v2597
      %2643 = vmatprep.subr.mxu0 0.0
      %2644 = vmatpush1.msra.mxu0 %v2595
      %2645 = vmatprep.subr.mxu0 0.0
      %2646 = vmatpush2.msra.mxu0 0.0
      %2647 = vmatprep.subr.mxu0 0.0
      %2648 = vmatpush2.msra.mxu0 0.0
      %2649 = vmatprep.subr.mxu0 0.0
      %2650 = vmatpush2.msra.mxu0 0.0
      %2651 = vmatprep.subr.mxu0 0.0
      %2652 = vmatpush2.msra.mxu0 0.0
      %2653 = vmatprep.subr.mxu0 0.0
      %2654 = vmatpush2.msra.mxu0 0.0
      %2655 = vmatprep.subr.mxu0 0.0
      %2656 = vmatpush2.msra.mxu0 0.0
      %2657 = vmatprep.subr.mxu0 0.0
      %2658 = vmatpush2.msra.mxu0 0.0
      %2659 = vmatprep.subr.mxu0 0.0
      %2660 = vmatpush2.msra.mxu0 0.0
      %2661 = vmatprep.subr.mxu0 0.0
      %2662 = vmatpush2.msra.mxu0 0.0
      %2663 = vmatprep.subr.mxu0 0.0
      %2664 = vmatpush2.msra.mxu0 0.0
      %2665 = vmatprep.subr.mxu0 0.0
      %2666 = vmatpush2.msra.mxu0 0.0
      %2667 = vmatprep.subr.mxu0 0.0
      %2668 = vmatpush2.msra.mxu0 0.0
      %2669 = vmatprep.subr.mxu0 0.0
      %2670 = vmatpush2.msra.mxu0 0.0
      %2671 = vmatprep.subr.mxu0 0.0
      %2672 = vmatpush2.msra.mxu0 0.0
      %2673 = vmatprep.subr.mxu0 0.0
      %2674 = vmatpush2.msra.mxu0 0.0
      %2675 = vmatprep.subr.mxu0 0.0
      %2676 = vmatpush2.msra.mxu0 0.0
      %2677 = vmatprep.mubr.f32.mxu0 0.0
      %2678 = vmatmul.mubr.f32.gmra.mxu0 %v2603
      %v2679 = vpop.f32.mrf.mxu0
      %v2680 = vadd.f32 0.0, %v2679
      %v2681 = vpop.f32.mrf.mxu0
      %2682 = vmatprep.mubr.f32.mxu0 0.0
      %2683 = vmatmul.mubr.f32.gmra.mxu0 %v2606
      %v2684 = vpop.f32.mrf.mxu0
      %v2685 = vadd.f32 0.0, %v2684
      %v2686 = vpop.f32.mrf.mxu0
      %2687 = vmatprep.mubr.f32.mxu0 0.0
      %2688 = vmatmul.mubr.f32.gmra.mxu0 %v2609
      %v2689 = vpop.f32.mrf.mxu0
      %v2690 = vadd.f32 0.0, %v2689
      %v2691 = vpop.f32.mrf.mxu0
      %2692 = vdwg.mxu0
      %2696 = vrot.lane.b32.xlu0 %v2680, 8
      %v2697 = vpop.permute.xlu0 %2696
      %2698 = vrot.lane.b32.xlu0 %v2685, 8
      %v2699 = vpop.permute.xlu0 %2698
      %2700 = vrot.lane.b32.xlu0 %v2690, 8
      %v2701 = vpop.permute.xlu0 %2700
      %2705 = vst.msk [vmem:[#allocation3 + $0x11] sm:$0xff] %vm1651, %v2697
      %2706 = vst.msk [vmem:[#allocation3 + $0x19] sm:$0xff] %vm1651, %v2699
      %2707 = vst.msk [vmem:[#allocation3 + $0x21] sm:$0x1] %vm1654, %v2701
      %v2708 = vld [vmem:[#allocation2 + $0x11] sm:$0xff]
      %v2709 = vld [vmem:[#allocation2 + $0x19] sm:$0xff]
      %v2710 = vld [vmem:[#allocation2 + $0x21] sm:$0x1]
      %v2711 = vmul.f32 %v2708, 0.35355338
      %v2712 = vmul.f32 %v2709, 0.35355338
      %v2713 = vmul.f32 %v2710, 0.35355338
      %v2714 = vld [vmem:[%s1662] sm:$0xff]
      %v2715 = vld [vmem:[%s1662 + $0x8] sm:$0xff]
      %v2716 = vld [vmem:[%s1662 + $0x10] sm:$0x1]
      %2720 = vrot.lane.b32.xlu0 %v2711, 112
      %v2721 = vpop.permute.xlu0 %2720
      %2722 = vrot.lane.b32.xlu0 %v2712, 112
      %v2723 = vpop.permute.xlu0 %2722
      %2724 = vrot.lane.b32.xlu0 %v2713, 112
      %v2725 = vpop.permute.xlu0 %2724
      %2729 = vrot.lane.b32.xlu0 %v2708, 80
      %v2730 = vpop.permute.xlu0 %2729
      %2731 = vrot.lane.b32.xlu0 %v2709, 80
      %v2732 = vpop.permute.xlu0 %2731
      %2733 = vrot.lane.b32.xlu0 %v2710, 80
      %v2734 = vpop.permute.xlu0 %2733
      %v2735 = vsel %vm1152, %v2721, 0
      %v2737 = vsel %vm1152, %v2723, 0
      %v2739 = vsel %vm1152, %v2725, 0
      %v2741 = vsel %vm1152, %v2730, 0
      %v2743 = vsel %vm1152, %v2732, 0
      %v2745 = vsel %vm1152, %v2734, 0
      %2747 = vmatprep.subr.mxu0 0.0
      %2748 = vmatpush1.xpose.msra.mxu0 0.0
      %2749 = vmatprep.subr.mxu0 0.0
      %2750 = vmatpush1.xpose.msra.mxu0 0.0
      %2751 = vmatprep.subr.mxu0 0.0
      %2752 = vmatpush1.xpose.msra.mxu0 0.0
      %2753 = vmatprep.subr.mxu0 0.0
      %2754 = vmatpush1.xpose.msra.mxu0 0.0
      %2755 = vmatprep.subr.mxu0 0.0
      %2756 = vmatpush1.xpose.msra.mxu0 0.0
      %2757 = vmatprep.subr.mxu0 0.0
      %2758 = vmatpush1.xpose.msra.mxu0 0.0
      %2759 = vmatprep.subr.mxu0 0.0
      %2760 = vmatpush1.xpose.msra.mxu0 0.0
      %2761 = vmatprep.subr.mxu0 0.0
      %2762 = vmatpush1.xpose.msra.mxu0 0.0
      %2763 = vmatprep.subr.mxu0 0.0
      %2764 = vmatpush1.xpose.msra.mxu0 0.0
      %2765 = vmatprep.subr.mxu0 0.0
      %2766 = vmatpush1.xpose.msra.mxu0 0.0
      %2767 = vmatprep.subr.mxu0 0.0
      %2768 = vmatpush1.xpose.msra.mxu0 0.0
      %2769 = vmatprep.subr.mxu0 0.0
      %2770 = vmatpush1.xpose.msra.mxu0 0.0
      %2771 = vmatprep.subr.mxu0 0.0
      %2772 = vmatpush1.xpose.msra.mxu0 0.0
      %2773 = vmatprep.subr.mxu0 0.0
      %2774 = vmatpush1.xpose.msra.mxu0 %v2745
      %2775 = vmatprep.subr.mxu0 0.0
      %2776 = vmatpush1.xpose.msra.mxu0 %v2743
      %2777 = vmatprep.subr.mxu0 0.0
      %2778 = vmatpush1.xpose.msra.mxu0 %v2741
      %2779 = vmatprep.subr.mxu0 0.0
      %2780 = vmatpush2.xpose.msra.mxu0 0.0
      %2781 = vmatprep.subr.mxu0 0.0
      %2782 = vmatpush2.xpose.msra.mxu0 0.0
      %2783 = vmatprep.subr.mxu0 0.0
      %2784 = vmatpush2.xpose.msra.mxu0 0.0
      %2785 = vmatprep.subr.mxu0 0.0
      %2786 = vmatpush2.xpose.msra.mxu0 0.0
      %2787 = vmatprep.subr.mxu0 0.0
      %2788 = vmatpush2.xpose.msra.mxu0 0.0
      %2789 = vmatprep.subr.mxu0 0.0
      %2790 = vmatpush2.xpose.msra.mxu0 0.0
      %2791 = vmatprep.subr.mxu0 0.0
      %2792 = vmatpush2.xpose.msra.mxu0 0.0
      %2793 = vmatprep.subr.mxu0 0.0
      %2794 = vmatpush2.xpose.msra.mxu0 0.0
      %2795 = vmatprep.subr.mxu0 0.0
      %2796 = vmatpush2.xpose.msra.mxu0 0.0
      %2797 = vmatprep.subr.mxu0 0.0
      %2798 = vmatpush2.xpose.msra.mxu0 0.0
      %2799 = vmatprep.subr.mxu0 0.0
      %2800 = vmatpush2.xpose.msra.mxu0 0.0
      %2801 = vmatprep.subr.mxu0 0.0
      %2802 = vmatpush2.xpose.msra.mxu0 0.0
      %2803 = vmatprep.subr.mxu0 0.0
      %2804 = vmatpush2.xpose.msra.mxu0 0.0
      %2805 = vmatprep.subr.mxu0 0.0
      %2806 = vmatpush2.xpose.msra.mxu0 0.0
      %2807 = vmatprep.subr.mxu0 0.0
      %2808 = vmatpush2.xpose.msra.mxu0 0.0
      %2809 = vmatprep.subr.mxu0 0.0
      %2810 = vmatpush2.xpose.msra.mxu0 0.0
      %2811 = vmatprep.mubr.f32.mxu0 0.0
      %2812 = vmatmul.mubr.f32.gmra.mxu0 %v2735
      %v2813 = vpop.f32.mrf.mxu0
      %v2814 = vadd.f32 %v2714, %v2813
      %v2815 = vpop.f32.mrf.mxu0
      %2816 = vmatprep.mubr.f32.mxu0 0.0
      %2817 = vmatmul.mubr.f32.gmra.mxu0 %v2737
      %v2818 = vpop.f32.mrf.mxu0
      %v2819 = vadd.f32 %v2715, %v2818
      %v2820 = vpop.f32.mrf.mxu0
      %2821 = vmatprep.mubr.f32.mxu0 0.0
      %2822 = vmatmul.mubr.f32.gmra.mxu0 %v2739
      %v2823 = vpop.f32.mrf.mxu0
      %v2824 = vadd.f32 %v2716, %v2823
      %v2825 = vpop.f32.mrf.mxu0
      %2826 = vdwg.mxu0
      %v2827 = vsel %vm1248, %v2814, -inf
      %2828 = vmax.xlane.f32.xlu0 %v2827
      %v2829 = vpop.xlane.xlu0 %2828
      %v2830 = vsel %vm1248, %v2819, -inf
      %2831 = vmax.xlane.f32.xlu0 %v2830
      %v2832 = vpop.xlane.xlu0 %2831
      %v2833 = vsel %vm1255, %v2824, -inf
      %2834 = vmax.xlane.f32.xlu0 %v2833
      %v2835 = vpop.xlane.xlu0 %2834
      %v2836 = vsub.f32 %v2814, %v2829
      %v2837 = vsub.f32 %v2819, %v2832
      %v2838 = vsub.f32 %v2824, %v2835
      %v2839 = vmul.f32 %v2836, 1.442695
      %v2840 = vpow.pop %v2839
      %v2841 = vmul.f32 %v2837, 1.442695
      %v2842 = vpow.pop %v2841
      %v2843 = vmul.f32 %v2838, 1.442695
      %v2844 = vpow.pop %v2843
      %v2845 = vsel %vm1248, %v2840, 0.0
      %2846 = vadd.xlane.f32.xlu0 %v2845
      %v2847 = vpop.xlane.xlu0 %2846
      %v2848 = vsel %vm1248, %v2842, 0.0
      %2849 = vadd.xlane.f32.xlu0 %v2848
      %v2850 = vpop.xlane.xlu0 %2849
      %v2851 = vsel %vm1255, %v2844, 0.0
      %2852 = vadd.xlane.f32.xlu0 %v2851
      %v2853 = vpop.xlane.xlu0 %2852
      %v2854 = vrcp.pop %v2847
      %v2855 = vrcp.pop %v2850
      %v2856 = vrcp.pop %v2853
      %v2857 = vmul.f32 %v2840, %v2854
      %v2858 = vmul.f32 %v2842, %v2855
      %v2859 = vmul.f32 %v2844, %v2856
      %2860 = vrot.lane.b32.xlu0 %v2708, 48
      %v2861 = vpop.permute.xlu0 %2860
      %2862 = vrot.lane.b32.xlu0 %v2709, 48
      %v2863 = vpop.permute.xlu0 %2862
      %2864 = vrot.lane.b32.xlu0 %v2710, 48
      %v2865 = vpop.permute.xlu0 %2864
      %v2869 = vsel %vm1248, %v2857, 0
      %v2872 = vsel %vm1248, %v2858, 0
      %v2875 = vsel %vm1248, %v2859, 0
      %v2877 = vsel %vm1300, %v2865, 0
      %2879 = vmatprep.subr.mxu0 0.0
      %2880 = vmatpush1.msra.mxu0 0.0
      %2881 = vmatprep.subr.mxu0 0.0
      %2882 = vmatpush1.msra.mxu0 0.0
      %2883 = vmatprep.subr.mxu0 0.0
      %2884 = vmatpush1.msra.mxu0 0.0
      %2885 = vmatprep.subr.mxu0 0.0
      %2886 = vmatpush1.msra.mxu0 0.0
      %2887 = vmatprep.subr.mxu0 0.0
      %2888 = vmatpush1.msra.mxu0 0.0
      %2889 = vmatprep.subr.mxu0 0.0
      %2890 = vmatpush1.msra.mxu0 0.0
      %2891 = vmatprep.subr.mxu0 0.0
      %2892 = vmatpush1.msra.mxu0 0.0
      %2893 = vmatprep.subr.mxu0 0.0
      %2894 = vmatpush1.msra.mxu0 0.0
      %2895 = vmatprep.subr.mxu0 0.0
      %2896 = vmatpush1.msra.mxu0 0.0
      %2897 = vmatprep.subr.mxu0 0.0
      %2898 = vmatpush1.msra.mxu0 0.0
      %2899 = vmatprep.subr.mxu0 0.0
      %2900 = vmatpush1.msra.mxu0 0.0
      %2901 = vmatprep.subr.mxu0 0.0
      %2902 = vmatpush1.msra.mxu0 0.0
      %2903 = vmatprep.subr.mxu0 0.0
      %2904 = vmatpush1.msra.mxu0 0.0
      %2905 = vmatprep.subr.mxu0 0.0
      %2906 = vmatpush1.msra.mxu0 %v2877
      %2907 = vmatprep.subr.mxu0 0.0
      %2908 = vmatpush1.msra.mxu0 %v2863
      %2909 = vmatprep.subr.mxu0 0.0
      %2910 = vmatpush1.msra.mxu0 %v2861
      %2911 = vmatprep.subr.mxu0 0.0
      %2912 = vmatpush2.msra.mxu0 0.0
      %2913 = vmatprep.subr.mxu0 0.0
      %2914 = vmatpush2.msra.mxu0 0.0
      %2915 = vmatprep.subr.mxu0 0.0
      %2916 = vmatpush2.msra.mxu0 0.0
      %2917 = vmatprep.subr.mxu0 0.0
      %2918 = vmatpush2.msra.mxu0 0.0
      %2919 = vmatprep.subr.mxu0 0.0
      %2920 = vmatpush2.msra.mxu0 0.0
      %2921 = vmatprep.subr.mxu0 0.0
      %2922 = vmatpush2.msra.mxu0 0.0
      %2923 = vmatprep.subr.mxu0 0.0
      %2924 = vmatpush2.msra.mxu0 0.0
      %2925 = vmatprep.subr.mxu0 0.0
      %2926 = vmatpush2.msra.mxu0 0.0
      %2927 = vmatprep.subr.mxu0 0.0
      %2928 = vmatpush2.msra.mxu0 0.0
      %2929 = vmatprep.subr.mxu0 0.0
      %2930 = vmatpush2.msra.mxu0 0.0
      %2931 = vmatprep.subr.mxu0 0.0
      %2932 = vmatpush2.msra.mxu0 0.0
      %2933 = vmatprep.subr.mxu0 0.0
      %2934 = vmatpush2.msra.mxu0 0.0
      %2935 = vmatprep.subr.mxu0 0.0
      %2936 = vmatpush2.msra.mxu0 0.0
      %2937 = vmatprep.subr.mxu0 0.0
      %2938 = vmatpush2.msra.mxu0 0.0
      %2939 = vmatprep.subr.mxu0 0.0
      %2940 = vmatpush2.msra.mxu0 0.0
      %2941 = vmatprep.subr.mxu0 0.0
      %2942 = vmatpush2.msra.mxu0 0.0
      %2943 = vmatprep.mubr.f32.mxu0 0.0
      %2944 = vmatmul.mubr.f32.gmra.mxu0 %v2869
      %v2945 = vpop.f32.mrf.mxu0
      %v2946 = vadd.f32 0.0, %v2945
      %v2947 = vpop.f32.mrf.mxu0
      %2948 = vmatprep.mubr.f32.mxu0 0.0
      %2949 = vmatmul.mubr.f32.gmra.mxu0 %v2872
      %v2950 = vpop.f32.mrf.mxu0
      %v2951 = vadd.f32 0.0, %v2950
      %v2952 = vpop.f32.mrf.mxu0
      %2953 = vmatprep.mubr.f32.mxu0 0.0
      %2954 = vmatmul.mubr.f32.gmra.mxu0 %v2875
      %v2955 = vpop.f32.mrf.mxu0
      %v2956 = vadd.f32 0.0, %v2955
      %v2957 = vpop.f32.mrf.mxu0
      %2958 = vdwg.mxu0
      %2962 = vrot.lane.b32.xlu0 %v2946, 16
      %v2963 = vpop.permute.xlu0 %2962
      %2964 = vrot.lane.b32.xlu0 %v2951, 16
      %v2965 = vpop.permute.xlu0 %2964
      %2966 = vrot.lane.b32.xlu0 %v2956, 16
      %v2967 = vpop.permute.xlu0 %2966
      %2971 = vst.msk [vmem:[#allocation3 + $0x11] sm:$0xff] %vm1920, %v2963
      %2972 = vst.msk [vmem:[#allocation3 + $0x19] sm:$0xff] %vm1920, %v2965
      %2973 = vst.msk [vmem:[#allocation3 + $0x21] sm:$0x1] %vm1923, %v2967
      %v2974 = vld [vmem:[#allocation2 + $0x11] sm:$0xff]
      %v2975 = vld [vmem:[#allocation2 + $0x19] sm:$0xff]
      %v2976 = vld [vmem:[#allocation2 + $0x21] sm:$0x1]
      %v2977 = vmul.f32 %v2974, 0.35355338
      %v2978 = vmul.f32 %v2975, 0.35355338
      %v2979 = vmul.f32 %v2976, 0.35355338
      %v2980 = vld [vmem:[%s1931] sm:$0xff]
      %v2981 = vld [vmem:[%s1931 + $0x8] sm:$0xff]
      %v2982 = vld [vmem:[%s1931 + $0x10] sm:$0x1]
      %2986 = vrot.lane.b32.xlu0 %v2977, 104
      %v2987 = vpop.permute.xlu0 %2986
      %2988 = vrot.lane.b32.xlu0 %v2978, 104
      %v2989 = vpop.permute.xlu0 %2988
      %2990 = vrot.lane.b32.xlu0 %v2979, 104
      %v2991 = vpop.permute.xlu0 %2990
      %2995 = vrot.lane.b32.xlu0 %v2974, 72
      %v2996 = vpop.permute.xlu0 %2995
      %2997 = vrot.lane.b32.xlu0 %v2975, 72
      %v2998 = vpop.permute.xlu0 %2997
      %2999 = vrot.lane.b32.xlu0 %v2976, 72
      %v3000 = vpop.permute.xlu0 %2999
      %v3001 = vsel %vm1152, %v2987, 0
      %v3003 = vsel %vm1152, %v2989, 0
      %v3005 = vsel %vm1152, %v2991, 0
      %v3007 = vsel %vm1152, %v2996, 0
      %v3009 = vsel %vm1152, %v2998, 0
      %v3011 = vsel %vm1152, %v3000, 0
      %3013 = vmatprep.subr.mxu0 0.0
      %3014 = vmatpush1.xpose.msra.mxu0 0.0
      %3015 = vmatprep.subr.mxu0 0.0
      %3016 = vmatpush1.xpose.msra.mxu0 0.0
      %3017 = vmatprep.subr.mxu0 0.0
      %3018 = vmatpush1.xpose.msra.mxu0 0.0
      %3019 = vmatprep.subr.mxu0 0.0
      %3020 = vmatpush1.xpose.msra.mxu0 0.0
      %3021 = vmatprep.subr.mxu0 0.0
      %3022 = vmatpush1.xpose.msra.mxu0 0.0
      %3023 = vmatprep.subr.mxu0 0.0
      %3024 = vmatpush1.xpose.msra.mxu0 0.0
      %3025 = vmatprep.subr.mxu0 0.0
      %3026 = vmatpush1.xpose.msra.mxu0 0.0
      %3027 = vmatprep.subr.mxu0 0.0
      %3028 = vmatpush1.xpose.msra.mxu0 0.0
      %3029 = vmatprep.subr.mxu0 0.0
      %3030 = vmatpush1.xpose.msra.mxu0 0.0
      %3031 = vmatprep.subr.mxu0 0.0
      %3032 = vmatpush1.xpose.msra.mxu0 0.0
      %3033 = vmatprep.subr.mxu0 0.0
      %3034 = vmatpush1.xpose.msra.mxu0 0.0
      %3035 = vmatprep.subr.mxu0 0.0
      %3036 = vmatpush1.xpose.msra.mxu0 0.0
      %3037 = vmatprep.subr.mxu0 0.0
      %3038 = vmatpush1.xpose.msra.mxu0 0.0
      %3039 = vmatprep.subr.mxu0 0.0
      %3040 = vmatpush1.xpose.msra.mxu0 %v3011
      %3041 = vmatprep.subr.mxu0 0.0
      %3042 = vmatpush1.xpose.msra.mxu0 %v3009
      %3043 = vmatprep.subr.mxu0 0.0
      %3044 = vmatpush1.xpose.msra.mxu0 %v3007
      %3045 = vmatprep.subr.mxu0 0.0
      %3046 = vmatpush2.xpose.msra.mxu0 0.0
      %3047 = vmatprep.subr.mxu0 0.0
      %3048 = vmatpush2.xpose.msra.mxu0 0.0
      %3049 = vmatprep.subr.mxu0 0.0
      %3050 = vmatpush2.xpose.msra.mxu0 0.0
      %3051 = vmatprep.subr.mxu0 0.0
      %3052 = vmatpush2.xpose.msra.mxu0 0.0
      %3053 = vmatprep.subr.mxu0 0.0
      %3054 = vmatpush2.xpose.msra.mxu0 0.0
      %3055 = vmatprep.subr.mxu0 0.0
      %3056 = vmatpush2.xpose.msra.mxu0 0.0
      %3057 = vmatprep.subr.mxu0 0.0
      %3058 = vmatpush2.xpose.msra.mxu0 0.0
      %3059 = vmatprep.subr.mxu0 0.0
      %3060 = vmatpush2.xpose.msra.mxu0 0.0
      %3061 = vmatprep.subr.mxu0 0.0
      %3062 = vmatpush2.xpose.msra.mxu0 0.0
      %3063 = vmatprep.subr.mxu0 0.0
      %3064 = vmatpush2.xpose.msra.mxu0 0.0
      %3065 = vmatprep.subr.mxu0 0.0
      %3066 = vmatpush2.xpose.msra.mxu0 0.0
      %3067 = vmatprep.subr.mxu0 0.0
      %3068 = vmatpush2.xpose.msra.mxu0 0.0
      %3069 = vmatprep.subr.mxu0 0.0
      %3070 = vmatpush2.xpose.msra.mxu0 0.0
      %3071 = vmatprep.subr.mxu0 0.0
      %3072 = vmatpush2.xpose.msra.mxu0 0.0
      %3073 = vmatprep.subr.mxu0 0.0
      %3074 = vmatpush2.xpose.msra.mxu0 0.0
      %3075 = vmatprep.subr.mxu0 0.0
      %3076 = vmatpush2.xpose.msra.mxu0 0.0
      %3077 = vmatprep.mubr.f32.mxu0 0.0
      %3078 = vmatmul.mubr.f32.gmra.mxu0 %v3001
      %v3079 = vpop.f32.mrf.mxu0
      %v3080 = vadd.f32 %v2980, %v3079
      %v3081 = vpop.f32.mrf.mxu0
      %3082 = vmatprep.mubr.f32.mxu0 0.0
      %3083 = vmatmul.mubr.f32.gmra.mxu0 %v3003
      %v3084 = vpop.f32.mrf.mxu0
      %v3085 = vadd.f32 %v2981, %v3084
      %v3086 = vpop.f32.mrf.mxu0
      %3087 = vmatprep.mubr.f32.mxu0 0.0
      %3088 = vmatmul.mubr.f32.gmra.mxu0 %v3005
      %v3089 = vpop.f32.mrf.mxu0
      %v3090 = vadd.f32 %v2982, %v3089
      %v3091 = vpop.f32.mrf.mxu0
      %3092 = vdwg.mxu0
      %v3093 = vsel %vm1248, %v3080, -inf
      %3094 = vmax.xlane.f32.xlu0 %v3093
      %v3095 = vpop.xlane.xlu0 %3094
      %v3096 = vsel %vm1248, %v3085, -inf
      %3097 = vmax.xlane.f32.xlu0 %v3096
      %v3098 = vpop.xlane.xlu0 %3097
      %v3099 = vsel %vm1255, %v3090, -inf
      %3100 = vmax.xlane.f32.xlu0 %v3099
      %v3101 = vpop.xlane.xlu0 %3100
      %v3102 = vsub.f32 %v3080, %v3095
      %v3103 = vsub.f32 %v3085, %v3098
      %v3104 = vsub.f32 %v3090, %v3101
      %v3105 = vmul.f32 %v3102, 1.442695
      %v3106 = vpow.pop %v3105
      %v3107 = vmul.f32 %v3103, 1.442695
      %v3108 = vpow.pop %v3107
      %v3109 = vmul.f32 %v3104, 1.442695
      %v3110 = vpow.pop %v3109
      %v3111 = vsel %vm1248, %v3106, 0.0
      %3112 = vadd.xlane.f32.xlu0 %v3111
      %v3113 = vpop.xlane.xlu0 %3112
      %v3114 = vsel %vm1248, %v3108, 0.0
      %3115 = vadd.xlane.f32.xlu0 %v3114
      %v3116 = vpop.xlane.xlu0 %3115
      %v3117 = vsel %vm1255, %v3110, 0.0
      %3118 = vadd.xlane.f32.xlu0 %v3117
      %v3119 = vpop.xlane.xlu0 %3118
      %v3120 = vrcp.pop %v3113
      %v3121 = vrcp.pop %v3116
      %v3122 = vrcp.pop %v3119
      %v3123 = vmul.f32 %v3106, %v3120
      %v3124 = vmul.f32 %v3108, %v3121
      %v3125 = vmul.f32 %v3110, %v3122
      %3126 = vrot.lane.b32.xlu0 %v2974, 40
      %v3127 = vpop.permute.xlu0 %3126
      %3128 = vrot.lane.b32.xlu0 %v2975, 40
      %v3129 = vpop.permute.xlu0 %3128
      %3130 = vrot.lane.b32.xlu0 %v2976, 40
      %v3131 = vpop.permute.xlu0 %3130
      %v3135 = vsel %vm1248, %v3123, 0
      %v3138 = vsel %vm1248, %v3124, 0
      %v3141 = vsel %vm1248, %v3125, 0
      %v3143 = vsel %vm1300, %v3131, 0
      %3145 = vmatprep.subr.mxu0 0.0
      %3146 = vmatpush1.msra.mxu0 0.0
      %3147 = vmatprep.subr.mxu0 0.0
      %3148 = vmatpush1.msra.mxu0 0.0
      %3149 = vmatprep.subr.mxu0 0.0
      %3150 = vmatpush1.msra.mxu0 0.0
      %3151 = vmatprep.subr.mxu0 0.0
      %3152 = vmatpush1.msra.mxu0 0.0
      %3153 = vmatprep.subr.mxu0 0.0
      %3154 = vmatpush1.msra.mxu0 0.0
      %3155 = vmatprep.subr.mxu0 0.0
      %3156 = vmatpush1.msra.mxu0 0.0
      %3157 = vmatprep.subr.mxu0 0.0
      %3158 = vmatpush1.msra.mxu0 0.0
      %3159 = vmatprep.subr.mxu0 0.0
      %3160 = vmatpush1.msra.mxu0 0.0
      %3161 = vmatprep.subr.mxu0 0.0
      %3162 = vmatpush1.msra.mxu0 0.0
      %3163 = vmatprep.subr.mxu0 0.0
      %3164 = vmatpush1.msra.mxu0 0.0
      %3165 = vmatprep.subr.mxu0 0.0
      %3166 = vmatpush1.msra.mxu0 0.0
      %3167 = vmatprep.subr.mxu0 0.0
      %3168 = vmatpush1.msra.mxu0 0.0
      %3169 = vmatprep.subr.mxu0 0.0
      %3170 = vmatpush1.msra.mxu0 0.0
      %3171 = vmatprep.subr.mxu0 0.0
      %3172 = vmatpush1.msra.mxu0 %v3143
      %3173 = vmatprep.subr.mxu0 0.0
      %3174 = vmatpush1.msra.mxu0 %v3129
      %3175 = vmatprep.subr.mxu0 0.0
      %3176 = vmatpush1.msra.mxu0 %v3127
      %3177 = vmatprep.subr.mxu0 0.0
      %3178 = vmatpush2.msra.mxu0 0.0
      %3179 = vmatprep.subr.mxu0 0.0
      %3180 = vmatpush2.msra.mxu0 0.0
      %3181 = vmatprep.subr.mxu0 0.0
      %3182 = vmatpush2.msra.mxu0 0.0
      %3183 = vmatprep.subr.mxu0 0.0
      %3184 = vmatpush2.msra.mxu0 0.0
      %3185 = vmatprep.subr.mxu0 0.0
      %3186 = vmatpush2.msra.mxu0 0.0
      %3187 = vmatprep.subr.mxu0 0.0
      %3188 = vmatpush2.msra.mxu0 0.0
      %3189 = vmatprep.subr.mxu0 0.0
      %3190 = vmatpush2.msra.mxu0 0.0
      %3191 = vmatprep.subr.mxu0 0.0
      %3192 = vmatpush2.msra.mxu0 0.0
      %3193 = vmatprep.subr.mxu0 0.0
      %3194 = vmatpush2.msra.mxu0 0.0
      %3195 = vmatprep.subr.mxu0 0.0
      %3196 = vmatpush2.msra.mxu0 0.0
      %3197 = vmatprep.subr.mxu0 0.0
      %3198 = vmatpush2.msra.mxu0 0.0
      %3199 = vmatprep.subr.mxu0 0.0
      %3200 = vmatpush2.msra.mxu0 0.0
      %3201 = vmatprep.subr.mxu0 0.0
      %3202 = vmatpush2.msra.mxu0 0.0
      %3203 = vmatprep.subr.mxu0 0.0
      %3204 = vmatpush2.msra.mxu0 0.0
      %3205 = vmatprep.subr.mxu0 0.0
      %3206 = vmatpush2.msra.mxu0 0.0
      %3207 = vmatprep.subr.mxu0 0.0
      %3208 = vmatpush2.msra.mxu0 0.0
      %3209 = vmatprep.mubr.f32.mxu0 0.0
      %3210 = vmatmul.mubr.f32.gmra.mxu0 %v3135
      %v3211 = vpop.f32.mrf.mxu0
      %v3212 = vadd.f32 0.0, %v3211
      %v3213 = vpop.f32.mrf.mxu0
      %3214 = vmatprep.mubr.f32.mxu0 0.0
      %3215 = vmatmul.mubr.f32.gmra.mxu0 %v3138
      %v3216 = vpop.f32.mrf.mxu0
      %v3217 = vadd.f32 0.0, %v3216
      %v3218 = vpop.f32.mrf.mxu0
      %3219 = vmatprep.mubr.f32.mxu0 0.0
      %3220 = vmatmul.mubr.f32.gmra.mxu0 %v3141
      %v3221 = vpop.f32.mrf.mxu0
      %v3222 = vadd.f32 0.0, %v3221
      %v3223 = vpop.f32.mrf.mxu0
      %3224 = vdwg.mxu0
      %3228 = vrot.lane.b32.xlu0 %v3212, 24
      %v3229 = vpop.permute.xlu0 %3228
      %3230 = vrot.lane.b32.xlu0 %v3217, 24
      %v3231 = vpop.permute.xlu0 %3230
      %3232 = vrot.lane.b32.xlu0 %v3222, 24
      %v3233 = vpop.permute.xlu0 %3232
      %3237 = vst.msk [vmem:[#allocation3 + $0x11] sm:$0xff] %vm2189, %v3229
      %3238 = vst.msk [vmem:[#allocation3 + $0x19] sm:$0xff] %vm2189, %v3231
      %3239 = vst.msk [vmem:[#allocation3 + $0x21] sm:$0x1] %vm2192, %v3233
      %v3240 = vld [vmem:[#allocation3] sm:$0xff]
      %v3241 = vld [vmem:[#allocation3 + $0x8] sm:$0xff]
      %v3242 = vld [vmem:[#allocation3 + $0x10] sm:$0xff]
      %v3243 = vld [vmem:[#allocation3 + $0x18] sm:$0xff]
      %v3244 = vld [vmem:[#allocation3 + $0x20] sm:$0x3]
      %v3245 = vld [vmem:[%s749] sm:$0xff]
      %v3246 = vld [vmem:[%s749 + $0x8] sm:$0xff]
      %v3247 = vld [vmem:[%s749 + $0x10] sm:$0xff]
      %v3248 = vld [vmem:[%s749 + $0x18] sm:$0xff]
      %v3249 = vld [vmem:[%s752] sm:$0x1]
      %v3251 = vlaneseq
      %v3252 = vshrl.u32 %v3251, 7
      %v3253 = vsub.s32 0, %v3252
      %v3254 = vrot.slane %v3249, %v3253
      %v3257 = vsel %vm919, %v3240, 0
      %v3260 = vsel %vm919, %v3241, 0
      %v3263 = vsel %vm919, %v3242, 0
      %v3266 = vsel %vm919, %v3243, 0
      %v3269 = vsel %vm919, %v3244, 0
      %3271 = vmatprep.subr.mxu0 0.0
      %3272 = vmatpush1.msra.mxu0 0.0
      %3273 = vmatprep.subr.mxu0 0.0
      %3274 = vmatpush1.msra.mxu0 0.0
      %3275 = vmatprep.subr.mxu0 0.0
      %3276 = vmatpush1.msra.mxu0 0.0
      %3277 = vmatprep.subr.mxu0 0.0
      %3278 = vmatpush1.msra.mxu0 0.0
      %3279 = vmatprep.subr.mxu0 0.0
      %3280 = vmatpush1.msra.mxu0 0.0
      %3281 = vmatprep.subr.mxu0 0.0
      %3282 = vmatpush1.msra.mxu0 0.0
      %3283 = vmatprep.subr.mxu0 0.0
      %3284 = vmatpush1.msra.mxu0 0.0
      %3285 = vmatprep.subr.mxu0 0.0
      %3286 = vmatpush1.msra.mxu0 0.0
      %3287 = vmatprep.subr.mxu0 0.0
      %3288 = vmatpush1.msra.mxu0 0.0
      %3289 = vmatprep.subr.mxu0 0.0
      %3290 = vmatpush1.msra.mxu0 0.0
      %3291 = vmatprep.subr.mxu0 0.0
      %3292 = vmatpush1.msra.mxu0 0.0
      %3293 = vmatprep.subr.mxu0 0.0
      %3294 = vmatpush1.msra.mxu0 0.0
      %3295 = vmatprep.subr.mxu0 0.0
      %3296 = vmatpush1.msra.mxu0 %v3248
      %3297 = vmatprep.subr.mxu0 0.0
      %3298 = vmatpush1.msra.mxu0 %v3247
      %3299 = vmatprep.subr.mxu0 0.0
      %3300 = vmatpush1.msra.mxu0 %v3246
      %3301 = vmatprep.subr.mxu0 0.0
      %3302 = vmatpush1.msra.mxu0 %v3245
      %3303 = vmatprep.subr.mxu0 0.0
      %3304 = vmatpush2.msra.mxu0 0.0
      %3305 = vmatprep.subr.mxu0 0.0
      %3306 = vmatpush2.msra.mxu0 0.0
      %3307 = vmatprep.subr.mxu0 0.0
      %3308 = vmatpush2.msra.mxu0 0.0
      %3309 = vmatprep.subr.mxu0 0.0
      %3310 = vmatpush2.msra.mxu0 0.0
      %3311 = vmatprep.subr.mxu0 0.0
      %3312 = vmatpush2.msra.mxu0 0.0
      %3313 = vmatprep.subr.mxu0 0.0
      %3314 = vmatpush2.msra.mxu0 0.0
      %3315 = vmatprep.subr.mxu0 0.0
      %3316 = vmatpush2.msra.mxu0 0.0
      %3317 = vmatprep.subr.mxu0 0.0
      %3318 = vmatpush2.msra.mxu0 0.0
      %3319 = vmatprep.subr.mxu0 0.0
      %3320 = vmatpush2.msra.mxu0 0.0
      %3321 = vmatprep.subr.mxu0 0.0
      %3322 = vmatpush2.msra.mxu0 0.0
      %3323 = vmatprep.subr.mxu0 0.0
      %3324 = vmatpush2.msra.mxu0 0.0
      %3325 = vmatprep.subr.mxu0 0.0
      %3326 = vmatpush2.msra.mxu0 0.0
      %3327 = vmatprep.subr.mxu0 0.0
      %3328 = vmatpush2.msra.mxu0 0.0
      %3329 = vmatprep.subr.mxu0 0.0
      %3330 = vmatpush2.msra.mxu0 0.0
      %3331 = vmatprep.subr.mxu0 0.0
      %3332 = vmatpush2.msra.mxu0 0.0
      %3333 = vmatprep.subr.mxu0 0.0
      %3334 = vmatpush2.msra.mxu0 0.0
      %3335 = vmatprep.mubr.f32.mxu0 0.0
      %3336 = vmatmul.mubr.f32.gmra.mxu0 %v3257
      %v3337 = vpop.f32.mrf.mxu0
      %v3338 = vadd.f32 %v3254, %v3337
      %v3339 = vpop.f32.mrf.mxu0
      %3340 = vmatprep.mubr.f32.mxu0 0.0
      %3341 = vmatmul.mubr.f32.gmra.mxu0 %v3260
      %v3342 = vpop.f32.mrf.mxu0
      %v3343 = vadd.f32 %v3254, %v3342
      %v3344 = vpop.f32.mrf.mxu0
      %3345 = vmatprep.mubr.f32.mxu0 0.0
      %3346 = vmatmul.mubr.f32.gmra.mxu0 %v3263
      %v3347 = vpop.f32.mrf.mxu0
      %v3348 = vadd.f32 %v3254, %v3347
      %v3349 = vpop.f32.mrf.mxu0
      %3350 = vmatprep.mubr.f32.mxu0 0.0
      %3351 = vmatmul.mubr.f32.gmra.mxu0 %v3266
      %v3352 = vpop.f32.mrf.mxu0
      %v3353 = vadd.f32 %v3254, %v3352
      %v3354 = vpop.f32.mrf.mxu0
      %3355 = vmatprep.mubr.f32.mxu0 0.0
      %3356 = vmatmul.mubr.f32.gmra.mxu0 %v3269
      %v3357 = vpop.f32.mrf.mxu0
      %v3358 = vadd.f32 %v3254, %v3357
      %v3359 = vpop.f32.mrf.mxu0
      %3360 = vdwg.mxu0
      %v3361 = vld [vmem:[%s755] sm:$0x1]
      %v3363 = vlaneseq
      %v3364 = vshrl.u32 %v3363, 7
      %v3365 = vsub.s32 0, %v3364
      %v3366 = vrot.slane %v3361, %v3365
      %v3368 = vmul.f32 %v3366, %v3338
      %v3369 = vmul.f32 %v3366, %v3343
      %v3370 = vmul.f32 %v3366, %v3348
      %v3371 = vmul.f32 %v3366, %v3353
      %v3372 = vmul.f32 %v3366, %v3358
      %v3373 = vadd.f32 %v914, %v3368
      %v3374 = vadd.f32 %v915, %v3369
      %v3375 = vadd.f32 %v916, %v3370
      %v3376 = vadd.f32 %v917, %v3371
      %v3377 = vadd.f32 %v918, %v3372
      %v3378 = vsel %vm919, %v3373, 0.0
      %3379 = vadd.xlane.f32.xlu0 %v3378
      %v3380 = vpop.xlane.xlu0 %3379
      %v3381 = vsel %vm919, %v3374, 0.0
      %3382 = vadd.xlane.f32.xlu0 %v3381
      %v3383 = vpop.xlane.xlu0 %3382
      %v3384 = vsel %vm919, %v3375, 0.0
      %3385 = vadd.xlane.f32.xlu0 %v3384
      %v3386 = vpop.xlane.xlu0 %3385
      %v3387 = vsel %vm919, %v3376, 0.0
      %3388 = vadd.xlane.f32.xlu0 %v3387
      %v3389 = vpop.xlane.xlu0 %3388
      %v3390 = vsel %vm932, %v3377, 0.0
      %3391 = vadd.xlane.f32.xlu0 %v3390
      %v3392 = vpop.xlane.xlu0 %3391
      %v3393 = vmul.f32 %v3380, %v936
      %v3394 = vmul.f32 %v3383, %v936
      %v3395 = vmul.f32 %v3386, %v936
      %v3396 = vmul.f32 %v3389, %v936
      %v3397 = vmul.f32 %v3392, %v936
      %v3398 = vsub.f32 %v3373, %v3393
      %v3399 = vsub.f32 %v3374, %v3394
      %v3400 = vsub.f32 %v3375, %v3395
      %v3401 = vsub.f32 %v3376, %v3396
      %v3402 = vsub.f32 %v3377, %v3397
      %v3403 = vmul.f32 %v3398, %v3398
      %v3404 = vmul.f32 %v3399, %v3399
      %v3405 = vmul.f32 %v3400, %v3400
      %v3406 = vmul.f32 %v3401, %v3401
      %v3407 = vmul.f32 %v3402, %v3402
      %v3408 = vsel %vm919, %v3403, 0.0
      %3409 = vadd.xlane.f32.xlu0 %v3408
      %v3410 = vpop.xlane.xlu0 %3409
      %v3411 = vsel %vm919, %v3404, 0.0
      %3412 = vadd.xlane.f32.xlu0 %v3411
      %v3413 = vpop.xlane.xlu0 %3412
      %v3414 = vsel %vm919, %v3405, 0.0
      %3415 = vadd.xlane.f32.xlu0 %v3414
      %v3416 = vpop.xlane.xlu0 %3415
      %v3417 = vsel %vm919, %v3406, 0.0
      %3418 = vadd.xlane.f32.xlu0 %v3417
      %v3419 = vpop.xlane.xlu0 %3418
      %v3420 = vsel %vm932, %v3407, 0.0
      %3421 = vadd.xlane.f32.xlu0 %v3420
      %v3422 = vpop.xlane.xlu0 %3421
      %v3423 = vmul.f32 %v3410, %v936
      %v3424 = vmul.f32 %v3413, %v936
      %v3425 = vmul.f32 %v3416, %v936
      %v3426 = vmul.f32 %v3419, %v936
      %v3427 = vmul.f32 %v3422, %v936
      %v3428 = vadd.f32 %v3423, 1e-06
      %v3429 = vadd.f32 %v3424, 1e-06
      %v3430 = vadd.f32 %v3425, 1e-06
      %v3431 = vadd.f32 %v3426, 1e-06
      %v3432 = vadd.f32 %v3427, 1e-06
      %v3433 = vrsqrt.pop %v3428
      %v3434 = vrsqrt.pop %v3429
      %v3435 = vrsqrt.pop %v3430
      %v3436 = vrsqrt.pop %v3431
      %v3437 = vrsqrt.pop %v3432
      %v3438 = vmul.f32 %v3398, %v3433
      %v3439 = vmul.f32 %v3399, %v3434
      %v3440 = vmul.f32 %v3400, %v3435
      %v3441 = vmul.f32 %v3401, %v3436
      %v3442 = vmul.f32 %v3402, %v3437
      %v3443 = vld [vmem:[%s758] sm:$0x1]
      %v3445 = vlaneseq
      %v3446 = vshrl.u32 %v3445, 7
      %v3447 = vsub.s32 0, %v3446
      %v3448 = vrot.slane %v3443, %v3447
      %v3450 = vmul.f32 %v3438, %v3448
      %v3451 = vmul.f32 %v3439, %v3448
      %v3452 = vmul.f32 %v3440, %v3448
      %v3453 = vmul.f32 %v3441, %v3448
      %v3454 = vmul.f32 %v3442, %v3448
      %v3455 = vld [vmem:[%s761] sm:$0x1]
      %v3457 = vlaneseq
      %v3458 = vshrl.u32 %v3457, 7
      %v3459 = vsub.s32 0, %v3458
      %v3460 = vrot.slane %v3455, %v3459
      %v3462 = vadd.f32 %v3450, %v3460
      %v3463 = vadd.f32 %v3451, %v3460
      %v3464 = vadd.f32 %v3452, %v3460
      %v3465 = vadd.f32 %v3453, %v3460
      %v3466 = vadd.f32 %v3454, %v3460
      %v3467 = vld [vmem:[%s766] sm:$0xff]
      %v3468 = vld [vmem:[%s766 + $0x8] sm:$0xff]
      %v3469 = vld [vmem:[%s766 + $0x10] sm:$0xff]
      %v3470 = vld [vmem:[%s766 + $0x18] sm:$0xff]
      %v3471 = vld [vmem:[%s769] sm:$0x1]
      %v3473 = vlaneseq
      %v3474 = vshrl.u32 %v3473, 7
      %v3475 = vsub.s32 0, %v3474
      %v3476 = vrot.slane %v3471, %v3475
      %v3479 = vsel %vm919, %v3462, 0
      %v3482 = vsel %vm919, %v3463, 0
      %v3485 = vsel %vm919, %v3464, 0
      %v3488 = vsel %vm919, %v3465, 0
      %v3491 = vsel %vm919, %v3466, 0
      %3493 = vmatprep.subr.mxu0 0.0
      %3494 = vmatpush1.msra.mxu0 0.0
      %3495 = vmatprep.subr.mxu0 0.0
      %3496 = vmatpush1.msra.mxu0 0.0
      %3497 = vmatprep.subr.mxu0 0.0
      %3498 = vmatpush1.msra.mxu0 0.0
      %3499 = vmatprep.subr.mxu0 0.0
      %3500 = vmatpush1.msra.mxu0 0.0
      %3501 = vmatprep.subr.mxu0 0.0
      %3502 = vmatpush1.msra.mxu0 0.0
      %3503 = vmatprep.subr.mxu0 0.0
      %3504 = vmatpush1.msra.mxu0 0.0
      %3505 = vmatprep.subr.mxu0 0.0
      %3506 = vmatpush1.msra.mxu0 0.0
      %3507 = vmatprep.subr.mxu0 0.0
      %3508 = vmatpush1.msra.mxu0 0.0
      %3509 = vmatprep.subr.mxu0 0.0
      %3510 = vmatpush1.msra.mxu0 0.0
      %3511 = vmatprep.subr.mxu0 0.0
      %3512 = vmatpush1.msra.mxu0 0.0
      %3513 = vmatprep.subr.mxu0 0.0
      %3514 = vmatpush1.msra.mxu0 0.0
      %3515 = vmatprep.subr.mxu0 0.0
      %3516 = vmatpush1.msra.mxu0 0.0
      %3517 = vmatprep.subr.mxu0 0.0
      %3518 = vmatpush1.msra.mxu0 %v3470
      %3519 = vmatprep.subr.mxu0 0.0
      %3520 = vmatpush1.msra.mxu0 %v3469
      %3521 = vmatprep.subr.mxu0 0.0
      %3522 = vmatpush1.msra.mxu0 %v3468
      %3523 = vmatprep.subr.mxu0 0.0
      %3524 = vmatpush1.msra.mxu0 %v3467
      %3525 = vmatprep.subr.mxu0 0.0
      %3526 = vmatpush2.msra.mxu0 0.0
      %3527 = vmatprep.subr.mxu0 0.0
      %3528 = vmatpush2.msra.mxu0 0.0
      %3529 = vmatprep.subr.mxu0 0.0
      %3530 = vmatpush2.msra.mxu0 0.0
      %3531 = vmatprep.subr.mxu0 0.0
      %3532 = vmatpush2.msra.mxu0 0.0
      %3533 = vmatprep.subr.mxu0 0.0
      %3534 = vmatpush2.msra.mxu0 0.0
      %3535 = vmatprep.subr.mxu0 0.0
      %3536 = vmatpush2.msra.mxu0 0.0
      %3537 = vmatprep.subr.mxu0 0.0
      %3538 = vmatpush2.msra.mxu0 0.0
      %3539 = vmatprep.subr.mxu0 0.0
      %3540 = vmatpush2.msra.mxu0 0.0
      %3541 = vmatprep.subr.mxu0 0.0
      %3542 = vmatpush2.msra.mxu0 0.0
      %3543 = vmatprep.subr.mxu0 0.0
      %3544 = vmatpush2.msra.mxu0 0.0
      %3545 = vmatprep.subr.mxu0 0.0
      %3546 = vmatpush2.msra.mxu0 0.0
      %3547 = vmatprep.subr.mxu0 0.0
      %3548 = vmatpush2.msra.mxu0 0.0
      %3549 = vmatprep.subr.mxu0 0.0
      %3550 = vmatpush2.msra.mxu0 0.0
      %3551 = vmatprep.subr.mxu0 0.0
      %3552 = vmatpush2.msra.mxu0 0.0
      %3553 = vmatprep.subr.mxu0 0.0
      %3554 = vmatpush2.msra.mxu0 0.0
      %3555 = vmatprep.subr.mxu0 0.0
      %3556 = vmatpush2.msra.mxu0 0.0
      %3557 = vmatprep.mubr.f32.mxu0 0.0
      %3558 = vmatmul.mubr.f32.gmra.mxu0 %v3479
      %v3559 = vpop.f32.mrf.mxu0
      %v3560 = vadd.f32 %v3476, %v3559
      %v3561 = vpop.f32.mrf.mxu0
      %3562 = vmatprep.mubr.f32.mxu0 0.0
      %3563 = vmatmul.mubr.f32.gmra.mxu0 %v3482
      %v3564 = vpop.f32.mrf.mxu0
      %v3565 = vadd.f32 %v3476, %v3564
      %v3566 = vpop.f32.mrf.mxu0
      %3567 = vmatprep.mubr.f32.mxu0 0.0
      %3568 = vmatmul.mubr.f32.gmra.mxu0 %v3485
      %v3569 = vpop.f32.mrf.mxu0
      %v3570 = vadd.f32 %v3476, %v3569
      %v3571 = vpop.f32.mrf.mxu0
      %3572 = vmatprep.mubr.f32.mxu0 0.0
      %3573 = vmatmul.mubr.f32.gmra.mxu0 %v3488
      %v3574 = vpop.f32.mrf.mxu0
      %v3575 = vadd.f32 %v3476, %v3574
      %v3576 = vpop.f32.mrf.mxu0
      %3577 = vmatprep.mubr.f32.mxu0 0.0
      %3578 = vmatmul.mubr.f32.gmra.mxu0 %v3491
      %v3579 = vpop.f32.mrf.mxu0
      %v3580 = vadd.f32 %v3476, %v3579
      %v3581 = vpop.f32.mrf.mxu0
      %3582 = vdwg.mxu0
      %v3583 = vmul.f32 %v3560, 0.5
      %v3584 = vmul.f32 %v3565, 0.5
      %v3585 = vmul.f32 %v3570, 0.5
      %v3586 = vmul.f32 %v3575, 0.5
      %v3587 = vmul.f32 %v3580, 0.5
      %v3588 = vmul.f32 %v3560, 0.70710677
      %v3589 = vmul.f32 %v3565, 0.70710677
      %v3590 = vmul.f32 %v3570, 0.70710677
      %v3591 = vmul.f32 %v3575, 0.70710677
      %v3592 = vmul.f32 %v3580, 0.70710677
      %v3593 = verf.f32.pop %v3588
      %v3594 = verf.f32.pop %v3589
      %v3595 = verf.f32.pop %v3590
      %v3596 = verf.f32.pop %v3591
      %v3597 = verf.f32.pop %v3592
      %v3598 = vadd.f32 %v3593, 1.0
      %v3599 = vadd.f32 %v3594, 1.0
      %v3600 = vadd.f32 %v3595, 1.0
      %v3601 = vadd.f32 %v3596, 1.0
      %v3602 = vadd.f32 %v3597, 1.0
      %v3603 = vmul.f32 %v3583, %v3598
      %v3604 = vmul.f32 %v3584, %v3599
      %v3605 = vmul.f32 %v3585, %v3600
      %v3606 = vmul.f32 %v3586, %v3601
      %v3607 = vmul.f32 %v3587, %v3602
      %v3608 = vld [vmem:[%s774] sm:$0xff]
      %v3609 = vld [vmem:[%s774 + $0x8] sm:$0xff]
      %v3610 = vld [vmem:[%s774 + $0x10] sm:$0xff]
      %v3611 = vld [vmem:[%s774 + $0x18] sm:$0xff]
      %v3612 = vld [vmem:[%s774 + $0x20] sm:$0xff]
      %v3613 = vld [vmem:[%s774 + $0x28] sm:$0xff]
      %v3614 = vld [vmem:[%s774 + $0x30] sm:$0xff]
      %v3615 = vld [vmem:[%s774 + $0x38] sm:$0xff]
      %v3616 = vld [vmem:[%s774 + $0x40] sm:$0xff]
      %v3617 = vld [vmem:[%s774 + $0x48] sm:$0xff]
      %v3618 = vld [vmem:[%s774 + $0x50] sm:$0xff]
      %v3619 = vld [vmem:[%s774 + $0x58] sm:$0xff]
      %v3620 = vld [vmem:[%s774 + $0x60] sm:$0xff]
      %v3621 = vld [vmem:[%s774 + $0x68] sm:$0xff]
      %v3622 = vld [vmem:[%s774 + $0x70] sm:$0xff]
      %v3623 = vld [vmem:[%s774 + $0x78] sm:$0xff]
      %v3624 = vld [vmem:[%s777] sm:$0x1]
      %v3626 = vlaneseq
      %v3627 = vshrl.u32 %v3626, 7
      %v3628 = vsub.s32 0, %v3627
      %v3629 = vrot.slane %v3624, %v3628
      %3631 = vmatprep.subr.mxu0 0.0
      %3632 = vmatpush1.msra.mxu0 %v3623
      %3633 = vmatprep.subr.mxu0 0.0
      %3634 = vmatpush1.msra.mxu0 %v3622
      %3635 = vmatprep.subr.mxu0 0.0
      %3636 = vmatpush1.msra.mxu0 %v3621
      %3637 = vmatprep.subr.mxu0 0.0
      %3638 = vmatpush1.msra.mxu0 %v3620
      %3639 = vmatprep.subr.mxu0 0.0
      %3640 = vmatpush1.msra.mxu0 %v3619
      %3641 = vmatprep.subr.mxu0 0.0
      %3642 = vmatpush1.msra.mxu0 %v3618
      %3643 = vmatprep.subr.mxu0 0.0
      %3644 = vmatpush1.msra.mxu0 %v3617
      %3645 = vmatprep.subr.mxu0 0.0
      %3646 = vmatpush1.msra.mxu0 %v3616
      %3647 = vmatprep.subr.mxu0 0.0
      %3648 = vmatpush1.msra.mxu0 %v3615
      %3649 = vmatprep.subr.mxu0 0.0
      %3650 = vmatpush1.msra.mxu0 %v3614
      %3651 = vmatprep.subr.mxu0 0.0
      %3652 = vmatpush1.msra.mxu0 %v3613
      %3653 = vmatprep.subr.mxu0 0.0
      %3654 = vmatpush1.msra.mxu0 %v3612
      %3655 = vmatprep.subr.mxu0 0.0
      %3656 = vmatpush1.msra.mxu0 %v3611
      %3657 = vmatprep.subr.mxu0 0.0
      %3658 = vmatpush1.msra.mxu0 %v3610
      %3659 = vmatprep.subr.mxu0 0.0
      %3660 = vmatpush1.msra.mxu0 %v3609
      %3661 = vmatprep.subr.mxu0 0.0
      %3662 = vmatpush1.msra.mxu0 %v3608
      %3663 = vmatprep.subr.mxu0 0.0
      %3664 = vmatpush2.msra.mxu0 0.0
      %3665 = vmatprep.subr.mxu0 0.0
      %3666 = vmatpush2.msra.mxu0 0.0
      %3667 = vmatprep.subr.mxu0 0.0
      %3668 = vmatpush2.msra.mxu0 0.0
      %3669 = vmatprep.subr.mxu0 0.0
      %3670 = vmatpush2.msra.mxu0 0.0
      %3671 = vmatprep.subr.mxu0 0.0
      %3672 = vmatpush2.msra.mxu0 0.0
      %3673 = vmatprep.subr.mxu0 0.0
      %3674 = vmatpush2.msra.mxu0 0.0
      %3675 = vmatprep.subr.mxu0 0.0
      %3676 = vmatpush2.msra.mxu0 0.0
      %3677 = vmatprep.subr.mxu0 0.0
      %3678 = vmatpush2.msra.mxu0 0.0
      %3679 = vmatprep.subr.mxu0 0.0
      %3680 = vmatpush2.msra.mxu0 0.0
      %3681 = vmatprep.subr.mxu0 0.0
      %3682 = vmatpush2.msra.mxu0 0.0
      %3683 = vmatprep.subr.mxu0 0.0
      %3684 = vmatpush2.msra.mxu0 0.0
      %3685 = vmatprep.subr.mxu0 0.0
      %3686 = vmatpush2.msra.mxu0 0.0
      %3687 = vmatprep.subr.mxu0 0.0
      %3688 = vmatpush2.msra.mxu0 0.0
      %3689 = vmatprep.subr.mxu0 0.0
      %3690 = vmatpush2.msra.mxu0 0.0
      %3691 = vmatprep.subr.mxu0 0.0
      %3692 = vmatpush2.msra.mxu0 0.0
      %3693 = vmatprep.subr.mxu0 0.0
      %3694 = vmatpush2.msra.mxu0 0.0
      %3695 = vmatprep.mubr.f32.mxu0 0.0
      %3696 = vmatmul.mubr.f32.gmra.mxu0 %v3603
      %v3697 = vpop.f32.mrf.mxu0
      %v3698 = vadd.f32 %v3629, %v3697
      %v3699 = vpop.f32.mrf.mxu0
      %3700 = vmatprep.mubr.f32.mxu0 0.0
      %3701 = vmatmul.mubr.f32.gmra.mxu0 %v3604
      %v3702 = vpop.f32.mrf.mxu0
      %v3703 = vadd.f32 %v3629, %v3702
      %v3704 = vpop.f32.mrf.mxu0
      %3705 = vmatprep.mubr.f32.mxu0 0.0
      %3706 = vmatmul.mubr.f32.gmra.mxu0 %v3605
      %v3707 = vpop.f32.mrf.mxu0
      %v3708 = vadd.f32 %v3629, %v3707
      %v3709 = vpop.f32.mrf.mxu0
      %3710 = vmatprep.mubr.f32.mxu0 0.0
      %3711 = vmatmul.mubr.f32.gmra.mxu0 %v3606
      %v3712 = vpop.f32.mrf.mxu0
      %v3713 = vadd.f32 %v3629, %v3712
      %v3714 = vpop.f32.mrf.mxu0
      %3715 = vmatprep.mubr.f32.mxu0 0.0
      %3716 = vmatmul.mubr.f32.gmra.mxu0 %v3607
      %v3717 = vpop.f32.mrf.mxu0
      %v3718 = vadd.f32 %v3629, %v3717
      %v3719 = vpop.f32.mrf.mxu0
      %3720 = vdwg.mxu0
      %v3721 = vld [vmem:[%s780] sm:$0x1]
      %v3723 = vlaneseq
      %v3724 = vshrl.u32 %v3723, 7
      %v3725 = vsub.s32 0, %v3724
      %v3726 = vrot.slane %v3721, %v3725
      %v3728 = vmul.f32 %v3726, %v3698
      %v3729 = vmul.f32 %v3726, %v3703
      %v3730 = vmul.f32 %v3726, %v3708
      %v3731 = vmul.f32 %v3726, %v3713
      %v3732 = vmul.f32 %v3726, %v3718
      %v3733 = vadd.f32 %v3373, %v3728
      %v3734 = vadd.f32 %v3374, %v3729
      %v3735 = vadd.f32 %v3375, %v3730
      %v3736 = vadd.f32 %v3376, %v3731
      %v3737 = vadd.f32 %v3377, %v3732
      %3738 = vst.msk [vmem:[%s18] sm:$0xff] %vm919, %v3733
      %3739 = vst.msk [vmem:[%s18 + $0x8] sm:$0xff] %vm919, %v3734
      %3740 = vst.msk [vmem:[%s18 + $0x10] sm:$0xff] %vm919, %v3735
      %3741 = vst.msk [vmem:[%s18 + $0x18] sm:$0xff] %vm919, %v3736
      %3742 = vst.msk [vmem:[%s18 + $0x20] sm:$0x3] %vm932, %v3737
      // Predicated region
      $region97: #{beit_forward.1} parent=91 // pred_check
        %p3743 = pneg %p495
      $region98: #{beit_forward.1} parent=91 // pred_check_branch
        %3745 = sbr.rel (%p3743) target = $region100
      $region99: #{beit_forward.1} parent=91 // pred_region
        _
      $region100: #{beit_forward.1} parent=91 // pred_fallthru
        _
      // Predicated region
      $region101: #{beit_forward.1} parent=91 // pred_check
        %p3746 = pneg %p495
      $region102: #{beit_forward.1} parent=91 // pred_check_branch
        %3748 = sbr.rel (%p3746) target = $region104
      $region103: #{beit_forward.1} parent=91 // pred_region
        _
      $region104: #{beit_forward.1} parent=91 // pred_fallthru
        _
    $region92: #{beit_forward.1} parent=5 // pred_fallthru
      _
    %p3749 = scmp.le.s32.totalorder 2, %s24
    // Predicated region
    $region105: #{beit_forward.1} parent=5 // pred_check
      %p3750 = pneg %p3749
    $region106: #{beit_forward.1} parent=5 // pred_check_branch
      %3752 = sbr.rel (%p3750) target = $region108
    $region107: #{beit_forward.1} parent=5 // pred_region
      %s3753 = ssub.s32 %s24, 2
    $region108: #{beit_forward.1} parent=5 // pred_fallthru
      _
  $region6: #{beit_forward.1} parent=0 // loop_footer
    %s28 = sadd.s32 1, %s24
  $region7: #{beit_forward.1} parent=0 // loop_footer_branch
    %23 = sbr.rel target = $region3
  $region8: #{beit_forward.1} parent=0 // loop_exit
    _

</llo_original>
